<compile_context>
chip_gen: v6e
topology: v6e:2x2x1
jax: 0.10.0
libtpu: 0.0.40
codegen_flags: <defaults>
</compile_context>

<pallas_src>
import functools

import jax
import jax.numpy as jnp
from jax.experimental import pallas as pl
from jax.experimental.pallas import tpu as pltpu


STRUCTURE = [(64, 1), (128, 2)]
INIT_LAYER = (64, 7)
INPUT_DIM = (3, 32, 32)


def _round_up(x, m):
    return ((x + m - 1) // m) * m


# ----------------------------------------------------------------------------
# Tiled matmul + bias kernel (bf16 MXU inputs, f32 accumulation)
# ----------------------------------------------------------------------------
def _matmul_bias_kernel(x_ref, w_ref, b_ref, o_ref, acc_ref):
    k = pl.program_id(2)

    @pl.when(k == 0)
    def _():
        acc_ref[...] = jnp.zeros_like(acc_ref)

    acc_ref[...] += jnp.dot(x_ref[...], w_ref[...],
                            preferred_element_type=jnp.float32)

    @pl.when(k == pl.num_programs(2) - 1)
    def _():
        o_ref[...] = (acc_ref[...] + b_ref[...]).astype(o_ref.dtype)


def matmul_bias(x, w, b):
    """x: (M, K), w: (K, N), b: (N,) -> (M, N) f32.  x/w are fed to the MXU as bf16."""
    M, K = x.shape
    K2, N = w.shape
    assert K == K2
    x = x.astype(jnp.bfloat16)
    w = w.astype(jnp.bfloat16)

    # Tile selection: lane-dense N/K tiles (multiples of 128), 8-multiple M tiles,
    # capped so double-buffered (x, w) blocks + acc + out stay well under the
    # scoped-VMEM budget on all of v5e / v6e / v7x.
    Mp = _round_up(M, 8)
    if Mp > 256:
        tm = 256
        Mp = _round_up(M, tm)
    else:
        tm = Mp
    Np = _round_up(N, 128)
    if Np > 512:
        tn = 256
        Np = _round_up(N, tn)
    else:
        tn = Np
    Kp = _round_up(K, 128)
    if Kp > 1024:
        tk = 512
        Kp = _round_up(K, tk)
    else:
        tk = Kp

    # Zero padding keeps the K-tail / N-tail contributions exact.
    if (Mp, Kp) != (M, K):
        x = jnp.pad(x, ((0, Mp - M), (0, Kp - K)))
    if (Kp, Np) != (K, N):
        w = jnp.pad(w, ((0, Kp - K), (0, Np - N)))
    b2 = jnp.pad(b.astype(jnp.float32), (0, Np - N)).reshape(1, Np)

    out = pl.pallas_call(
        _matmul_bias_kernel,
        out_shape=jax.ShapeDtypeStruct((Mp, Np), jnp.float32),
        grid_spec=pltpu.PrefetchScalarGridSpec(
            num_scalar_prefetch=0,
            grid=(Mp // tm, Np // tn, Kp // tk),
            in_specs=[
                pl.BlockSpec((tm, tk), lambda i, j, k: (i, k)),
                pl.BlockSpec((tk, tn), lambda i, j, k: (k, j)),
                pl.BlockSpec((1, tn), lambda i, j, k: (0, j)),
            ],
            out_specs=pl.BlockSpec((tm, tn), lambda i, j, k: (i, j)),
            scratch_shapes=[pltpu.VMEM((tm, tn), jnp.float32)],
        ),
        compiler_params=pltpu.CompilerParams(
            dimension_semantics=("parallel", "parallel", "arbitrary")),
    )(x, w, b2)
    return out[:M, :N]


# ----------------------------------------------------------------------------
# Fused MaxPool2d((3,3), stride=2) kernel (NHWC, 2x2 phase split, pure VPU max)
# ----------------------------------------------------------------------------
def _maxpool_kernel(x00_ref, x01_ref, x10_ref, x11_ref, o_ref, *, oh, ow):
    x00 = x00_ref[...]
    x01 = x01_ref[...]
    x10 = x10_ref[...]
    x11 = x11_ref[...]
    # Width pooling (window 3, stride 2): out col j <- input cols {2j, 2j+1, 2j+2}.
    w0 = jnp.maximum(jnp.maximum(x00[:, :, :ow, :], x01[:, :, :ow, :]),
                     x00[:, :, 1:ow + 1, :])
    w1 = jnp.maximum(jnp.maximum(x10[:, :, :ow, :], x11[:, :, :ow, :]),
                     x10[:, :, 1:ow + 1, :])
    # Height pooling (window 3, stride 2): out row i <- input rows {2i, 2i+1, 2i+2}.
    o_ref[...] = jnp.maximum(jnp.maximum(w0[:, :oh, :, :], w1[:, :oh, :, :]),
                             w0[:, 1:oh + 1, :, :])


def maxpool2d_3x3_s2(x):
    """PyTorch-semantics MaxPool2d((3,3), 2) on an NHWC tensor, fused in one kernel."""
    B, H, W, C = x.shape
    assert H % 2 == 0 and W % 2 == 0, "fused maxpool assumes even spatial dims"
    oh = (H - 3) // 2 + 1
    ow = (W - 3) // 2 + 1
    assert oh + 1 <= H // 2 and ow + 1 <= W // 2
    # 2x2 spatial phase split in XLA (same total bytes as the input, no expansion).
    x00 = x[:, 0::2, 0::2, :]
    x01 = x[:, 0::2, 1::2, :]
    x10 = x[:, 1::2, 0::2, :]
    x11 = x[:, 1::2, 1::2, :]
    in_spec = pl.BlockSpec((1, H // 2, W // 2, C), lambda bi: (bi, 0, 0, 0))
    return pl.pallas_call(
        functools.partial(_maxpool_kernel, oh=oh, ow=ow),
        out_shape=jax.ShapeDtypeStruct((B, oh, ow, C), x.dtype),
        grid=(B,),
        in_specs=[in_spec, in_spec, in_spec, in_spec],
        out_specs=pl.BlockSpec((1, oh, ow, C), lambda bi: (bi, 0, 0, 0)),
        compiler_params=pltpu.CompilerParams(dimension_semantics=("parallel",)),
    )(x00, x01, x10, x11)


# ----------------------------------------------------------------------------
# Conv2d (NHWC, im2col taps concatenated on the lane axis -> tiled Pallas matmul)
# ----------------------------------------------------------------------------
def conv2d_nhwc(x, w_mat, b, *, ksize, stride, padding):
    """x: (B, H, W, Cin) NHWC; w_mat: (ksize*ksize*Cin, Cout) prepared; b: (Cout,)."""
    B, H, W, C = x.shape
    cout = w_mat.shape[1]
    x = x.astype(jnp.bfloat16)          # cast BEFORE the tap gather: half the bytes
    xp = jnp.pad(x, ((0, 0), (padding, padding), (padding, padding), (0, 0)))
    Hp, Wp = H + 2 * padding, W + 2 * padding
    oh = (Hp - ksize) // stride + 1
    ow = (Wp - ksize) // stride + 1
    # TODO(synk): the window-tap gather below runs as XLA strided slices feeding the
    # Pallas matmul; a stride-2 spatial gather on the sublane axis has no clean
    # in-kernel Pallas/Mosaic equivalent, so it stays as (transpose-free) XLA glue.
    taps = []
    for i in range(ksize):
        for j in range(ksize):
            taps.append(
                xp[:, i:i + stride * (oh - 1) + 1:stride,
                      j:j + stride * (ow - 1) + 1:stride, :])
    p = jnp.concatenate(taps, axis=-1)                 # (B, oh, ow, KK*Cin), no transpose
    p = p.reshape(B * oh * ow, ksize * ksize * C)      # column order = (ki, kj, cin)
    out = matmul_bias(p, w_mat, b)                     # (B*oh*ow, Cout) f32
    return out.reshape(B, oh, ow, cout)                # NHWC, reshape only


# ----------------------------------------------------------------------------
# Parameters (PyTorch shapes) and one-time layout preparation (outside jit)
# ----------------------------------------------------------------------------
def _spatial_chain(h):
    h = (h + 2 * 3 - INIT_LAYER[1]) // 2 + 1     # init conv, k=7, s=2, p=3
    h = (h - 3) // 2 + 1                         # maxpool (3,3), s=2
    for (_out_dim, stride) in STRUCTURE:         # 3x3 convs, p=1
        h = (h + 2 - 3) // stride + 1
    return h


def init_params(key):
    """Deterministic synthetic parameters with the exact PyTorch shapes."""
    params = {}
    keys = jax.random.split(key, 10)
    ki = iter(range(10))

    def conv_w(k, cout, cin, ksz):
        scale = 1.0 / jnp.sqrt(cin * ksz * ksz)
        return jax.random.uniform(k, (cout, cin, ksz, ksz), jnp.float32, -scale, scale)

    def vec(k, n, fan_in):
        scale = 1.0 / jnp.sqrt(fan_in)
        return jax.random.uniform(k, (n,), jnp.float32, -scale, scale)

    def lin_w(k, nout, nin):
        scale = 1.0 / jnp.sqrt(nin)
        return jax.random.uniform(k, (nout, nin), jnp.float32, -scale, scale)

    params["conv0_w"] = conv_w(keys[next(ki)], INIT_LAYER[0], INPUT_DIM[0], INIT_LAYER[1])
    params["conv0_b"] = vec(keys[next(ki)], INIT_LAYER[0], INPUT_DIM[0] * INIT_LAYER[1] ** 2)
    in_dim = INIT_LAYER[0]
    for li, (out_dim, _stride) in enumerate(STRUCTURE):
        params[f"conv{li+1}_w"] = conv_w(keys[next(ki)], out_dim, in_dim, 3)
        params[f"conv{li+1}_b"] = vec(keys[next(ki)], out_dim, in_dim * 9)
        in_dim = out_dim

    fh = _spatial_chain(INPUT_DIM[1])
    fw = _spatial_chain(INPUT_DIM[2])
    fc_input_dim = 1 * in_dim * fh * fw   # matches PyTorch (includes sample batch of 1)

    params["fc1_w"] = lin_w(keys[next(ki)], 1000, fc_input_dim)
    params["fc1_b"] = vec(keys[next(ki)], 1000, fc_input_dim)
    params["fc2_w"] = lin_w(keys[next(ki)], 10, 1000)
    params["fc2_b"] = vec(keys[next(ki)], 10, 1000)
    return params


def prepare_params(params):
    """One-time weight layout prep (outside jit): conv kernels -> (KH*KW*Cin, Cout)
    matmul matrices in tap-major column order, FC weights -> (K, N) with fc1's
    columns permuted from torch's NCHW flatten order to the NHWC order used here;
    everything cast to bf16 (biases stay f32)."""
    prep = {}

    def conv_mat(w):   # (Cout, Cin, KH, KW) -> (KH*KW*Cin, Cout)
        cout, cin, kh, kw = w.shape
        return jnp.transpose(w, (2, 3, 1, 0)).reshape(kh * kw * cin, cout).astype(jnp.bfloat16)

    prep["w0"] = conv_mat(params["conv0_w"])
    prep["b0"] = params["conv0_b"]
    for li in range(len(STRUCTURE)):
        prep[f"w{li+1}"] = conv_mat(params[f"conv{li+1}_w"])
        prep[f"b{li+1}"] = params[f"conv{li+1}_b"]

    fh = _spatial_chain(INPUT_DIM[1])
    fw = _spatial_chain(INPUT_DIM[2])
    fc = STRUCTURE[-1][0]
    hh, ww, cc = jnp.meshgrid(jnp.arange(fh), jnp.arange(fw), jnp.arange(fc), indexing="ij")
    torch_cols = (cc * fh * fw + hh * fw + ww).reshape(-1)   # NHWC position -> torch column
    prep["fc1_w"] = params["fc1_w"][:, torch_cols].T.astype(jnp.bfloat16)   # (2048, 1000)
    prep["fc1_b"] = params["fc1_b"]
    prep["fc2_w"] = params["fc2_w"].T.astype(jnp.bfloat16)                  # (1000, 10)
    prep["fc2_b"] = params["fc2_b"]
    return prep


# ----------------------------------------------------------------------------
# Forward pass
# ----------------------------------------------------------------------------
@jax.jit
def resnet_forward(prep, x):
    """x: (B, 3, 32, 32) f32 NCHW -> logits (B, 10) f32."""
    B = x.shape[0]
    h = jnp.transpose(x, (0, 2, 3, 1))              # single NCHW->NHWC conversion
    h = conv2d_nhwc(h, prep["w0"], prep["b0"],
                    ksize=INIT_LAYER[1], stride=2, padding=3)
    h = maxpool2d_3x3_s2(h)
    for li, (_out_dim, stride) in enumerate(STRUCTURE):
        h = conv2d_nhwc(h, prep[f"w{li+1}"], prep[f"b{li+1}"],
                        ksize=3, stride=stride, padding=1)
    h = h.reshape(B, -1)                            # NHWC flatten (fc1 cols pre-permuted)
    h = matmul_bias(h, prep["fc1_w"], prep["fc1_b"])
    h = matmul_bias(h, prep["fc2_w"], prep["fc2_b"])
    return h
    # NOTE: self.softmax exists on the PyTorch module but is never applied in forward().


if __name__ == "__main__":
    key = jax.random.PRNGKey(0)
    pkey, xkey = jax.random.split(key)
    params = init_params(pkey)
    prep = prepare_params(params)
    x = jax.random.normal(xkey, (2, *INPUT_DIM), dtype=jnp.float32)
    out = resnet_forward(prep, x)
    out = jax.block_until_ready(out)
    assert out.shape == (2, 10), out.shape
    assert out.dtype == jnp.float32
    print("KERNEL_OK")
</pallas_src>

<mosaic_0001>
module attributes {stable_mosaic.version = 11 : i64} {
  func.func @_maxpool_kernel(%arg0: i32, %arg1: memref<1x8x8x64xf32, #tpu.memory_space<vmem>>, %arg2: memref<1x8x8x64xf32, #tpu.memory_space<vmem>>, %arg3: memref<1x8x8x64xf32, #tpu.memory_space<vmem>>, %arg4: memref<1x8x8x64xf32, #tpu.memory_space<vmem>>, %arg5: memref<1x7x7x64xf32, #tpu.memory_space<vmem>>) attributes {dimension_semantics = [#tpu.dimension_semantics<parallel>], iteration_bounds = array<i64: 2>, scalar_prefetch = 0 : i64, scratch_operands = 0 : i64, tpu.core_type = #tpu.core_type<tc>, window_params = [{transform_indices = @transform_0, window_bounds = array<i64: 1, 8, 8, 64>}, {transform_indices = @transform_1, window_bounds = array<i64: 1, 8, 8, 64>}, {transform_indices = @transform_2, window_bounds = array<i64: 1, 8, 8, 64>}, {transform_indices = @transform_3, window_bounds = array<i64: 1, 8, 8, 64>}, {transform_indices = @transform_4, window_bounds = array<i64: 1, 7, 7, 64>}]} {
    %c0 = arith.constant 0 : index
    %c0_0 = arith.constant 0 : index
    %c0_1 = arith.constant 0 : index
    %c0_2 = arith.constant 0 : index
    %0 = vector.load %arg1[%c0, %c0_0, %c0_1, %c0_2] : memref<1x8x8x64xf32, #tpu.memory_space<vmem>>, vector<1x8x8x64xf32>
    %c0_3 = arith.constant 0 : index
    %c0_4 = arith.constant 0 : index
    %c0_5 = arith.constant 0 : index
    %c0_6 = arith.constant 0 : index
    %1 = vector.load %arg2[%c0_3, %c0_4, %c0_5, %c0_6] : memref<1x8x8x64xf32, #tpu.memory_space<vmem>>, vector<1x8x8x64xf32>
    %c0_7 = arith.constant 0 : index
    %c0_8 = arith.constant 0 : index
    %c0_9 = arith.constant 0 : index
    %c0_10 = arith.constant 0 : index
    %2 = vector.load %arg3[%c0_7, %c0_8, %c0_9, %c0_10] : memref<1x8x8x64xf32, #tpu.memory_space<vmem>>, vector<1x8x8x64xf32>
    %c0_11 = arith.constant 0 : index
    %c0_12 = arith.constant 0 : index
    %c0_13 = arith.constant 0 : index
    %c0_14 = arith.constant 0 : index
    %3 = vector.load %arg4[%c0_11, %c0_12, %c0_13, %c0_14] : memref<1x8x8x64xf32, #tpu.memory_space<vmem>>, vector<1x8x8x64xf32>
    %4 = vector.extract_strided_slice %0 {offsets = [0, 0, 0, 0], sizes = [1, 8, 7, 64], strides = [1, 1, 1, 1]} : vector<1x8x8x64xf32> to vector<1x8x7x64xf32>
    %5 = vector.extract_strided_slice %1 {offsets = [0, 0, 0, 0], sizes = [1, 8, 7, 64], strides = [1, 1, 1, 1]} : vector<1x8x8x64xf32> to vector<1x8x7x64xf32>
    %6 = arith.maximumf %4, %5 : vector<1x8x7x64xf32>
    %7 = vector.extract_strided_slice %0 {offsets = [0, 0, 1, 0], sizes = [1, 8, 7, 64], strides = [1, 1, 1, 1]} : vector<1x8x8x64xf32> to vector<1x8x7x64xf32>
    %8 = arith.maximumf %6, %7 : vector<1x8x7x64xf32>
    %9 = vector.extract_strided_slice %2 {offsets = [0, 0, 0, 0], sizes = [1, 8, 7, 64], strides = [1, 1, 1, 1]} : vector<1x8x8x64xf32> to vector<1x8x7x64xf32>
    %10 = vector.extract_strided_slice %3 {offsets = [0, 0, 0, 0], sizes = [1, 8, 7, 64], strides = [1, 1, 1, 1]} : vector<1x8x8x64xf32> to vector<1x8x7x64xf32>
    %11 = arith.maximumf %9, %10 : vector<1x8x7x64xf32>
    %12 = vector.extract_strided_slice %2 {offsets = [0, 0, 1, 0], sizes = [1, 8, 7, 64], strides = [1, 1, 1, 1]} : vector<1x8x8x64xf32> to vector<1x8x7x64xf32>
    %13 = arith.maximumf %11, %12 : vector<1x8x7x64xf32>
    %14 = vector.extract_strided_slice %8 {offsets = [0, 0, 0, 0], sizes = [1, 7, 7, 64], strides = [1, 1, 1, 1]} : vector<1x8x7x64xf32> to vector<1x7x7x64xf32>
    %15 = vector.extract_strided_slice %13 {offsets = [0, 0, 0, 0], sizes = [1, 7, 7, 64], strides = [1, 1, 1, 1]} : vector<1x8x7x64xf32> to vector<1x7x7x64xf32>
    %16 = arith.maximumf %14, %15 : vector<1x7x7x64xf32>
    %17 = vector.extract_strided_slice %8 {offsets = [0, 1, 0, 0], sizes = [1, 7, 7, 64], strides = [1, 1, 1, 1]} : vector<1x8x7x64xf32> to vector<1x7x7x64xf32>
    %18 = arith.maximumf %16, %17 : vector<1x7x7x64xf32>
    %c0_15 = arith.constant 0 : index
    %c0_16 = arith.constant 0 : index
    %c0_17 = arith.constant 0 : index
    %c0_18 = arith.constant 0 : index
    %19 = vector.load %arg5[%c0_15, %c0_16, %c0_17, %c0_18] : memref<1x7x7x64xf32, #tpu.memory_space<vmem>>, vector<1x7x7x64xf32>
    tpu.vector_store %arg5[%c0_15, %c0_16, %c0_17, %c0_18], %18 {strides = array<i32>} : memref<1x7x7x64xf32, #tpu.memory_space<vmem>>, vector<1x7x7x64xf32>,
    return
  }
  func.func @transform_0(%arg0: i32) -> (i32, i32, i32, i32) {
    %c0_i32 = arith.constant 0 : i32
    %c0_i32_0 = arith.constant 0 : i32
    %c0_i32_1 = arith.constant 0 : i32
    %c0_i32_2 = arith.constant 0 : i32
    return %arg0, %c0_i32, %c0_i32_0, %c0_i32_1 : i32, i32, i32, i32
  }
  func.func @transform_1(%arg0: i32) -> (i32, i32, i32, i32) {
    %c0_i32 = arith.constant 0 : i32
    %c0_i32_0 = arith.constant 0 : i32
    %c0_i32_1 = arith.constant 0 : i32
    %c0_i32_2 = arith.constant 0 : i32
    return %arg0, %c0_i32, %c0_i32_0, %c0_i32_1 : i32, i32, i32, i32
  }
  func.func @transform_2(%arg0: i32) -> (i32, i32, i32, i32) {
    %c0_i32 = arith.constant 0 : i32
    %c0_i32_0 = arith.constant 0 : i32
    %c0_i32_1 = arith.constant 0 : i32
    %c0_i32_2 = arith.constant 0 : i32
    return %arg0, %c0_i32, %c0_i32_0, %c0_i32_1 : i32, i32, i32, i32
  }
  func.func @transform_3(%arg0: i32) -> (i32, i32, i32, i32) {
    %c0_i32 = arith.constant 0 : i32
    %c0_i32_0 = arith.constant 0 : i32
    %c0_i32_1 = arith.constant 0 : i32
    %c0_i32_2 = arith.constant 0 : i32
    return %arg0, %c0_i32, %c0_i32_0, %c0_i32_1 : i32, i32, i32, i32
  }
  func.func @transform_4(%arg0: i32) -> (i32, i32, i32, i32) {
    %c0_i32 = arith.constant 0 : i32
    %c0_i32_0 = arith.constant 0 : i32
    %c0_i32_1 = arith.constant 0 : i32
    %c0_i32_2 = arith.constant 0 : i32
    return %arg0, %c0_i32, %c0_i32_0, %c0_i32_1 : i32, i32, i32, i32
  }
}

module attributes {stable_mosaic.version = 11 : i64} {
  func.func @_matmul_bias_kernel(%arg0: i32, %arg1: i32, %arg2: i32, %arg3: memref<256x256xbf16, #tpu.memory_space<vmem>>, %arg4: memref<256x128xbf16, #tpu.memory_space<vmem>>, %arg5: memref<1x128xf32, #tpu.memory_space<vmem>>, %arg6: memref<256x128xf32, #tpu.memory_space<vmem>>, %arg7: memref<256x128xf32, #tpu.memory_space<vmem>>) attributes {dimension_semantics = [#tpu.dimension_semantics<parallel>, #tpu.dimension_semantics<parallel>, #tpu.dimension_semantics<arbitrary>], iteration_bounds = array<i64: 2, 1, 1>, scalar_prefetch = 0 : i64, scratch_operands = 1 : i64, tpu.core_type = #tpu.core_type<tc>, window_params = [{transform_indices = @transform_0, window_bounds = array<i64: 256, 256>}, {transform_indices = @transform_1, window_bounds = array<i64: 256, 128>}, {transform_indices = @transform_2, window_bounds = array<i64: 1, 128>}, {transform_indices = @transform_3, window_bounds = array<i64: 256, 128>}]} {
    %c0_i32 = arith.constant 0 : i32
    %0 = arith.cmpi eq, %arg2, %c0_i32 : i32
    %1 = arith.extui %0 : i1 to i32
    %c0_i32_0 = arith.constant 0 : i32
    %2 = arith.cmpi ne, %1, %c0_i32_0 : i32
    scf.if %2 {
      %cst_10 = arith.constant 0.000000e+00 : f32
      %12 = vector.broadcast %cst_10 : f32 to vector<256x128xf32>
      %c0_11 = arith.constant 0 : index
      %c0_12 = arith.constant 0 : index
      %13 = vector.load %arg7[%c0_11, %c0_12] : memref<256x128xf32, #tpu.memory_space<vmem>>, vector<256x128xf32>
      tpu.vector_store %arg7[%c0_11, %c0_12], %12 {strides = array<i32>} : memref<256x128xf32, #tpu.memory_space<vmem>>, vector<256x128xf32>,
    } else {
    }
    %c0 = arith.constant 0 : index
    %c0_1 = arith.constant 0 : index
    %3 = vector.load %arg7[%c0, %c0_1] : memref<256x128xf32, #tpu.memory_space<vmem>>, vector<256x128xf32>
    %c0_2 = arith.constant 0 : index
    %c0_3 = arith.constant 0 : index
    %4 = vector.load %arg3[%c0_2, %c0_3] : memref<256x256xbf16, #tpu.memory_space<vmem>>, vector<256x256xbf16>
    %c0_4 = arith.constant 0 : index
    %c0_5 = arith.constant 0 : index
    %5 = vector.load %arg4[%c0_4, %c0_5] : memref<256x128xbf16, #tpu.memory_space<vmem>>, vector<256x128xbf16>
    %cst = arith.constant dense<0.000000e+00> : vector<256x128xf32>
    %6 = tpu.matmul %4, %5, %cst {dimension_numbers = #tpu.dot_dimension_numbers<[1], [0], [0], [1], [0, 0, 1, 1], [], []>} : vector<256x256xbf16>, vector<256x128xbf16>, vector<256x128xf32> -> vector<256x128xf32>
    %7 = arith.addf %3, %6 : vector<256x128xf32>
    %c0_6 = arith.constant 0 : index
    %c0_7 = arith.constant 0 : index
    %8 = vector.load %arg7[%c0_6, %c0_7] : memref<256x128xf32, #tpu.memory_space<vmem>>, vector<256x128xf32>
    tpu.vector_store %arg7[%c0_6, %c0_7], %7 {strides = array<i32>} : memref<256x128xf32, #tpu.memory_space<vmem>>, vector<256x128xf32>,
    %c0_i32_8 = arith.constant 0 : i32
    %9 = arith.cmpi eq, %arg2, %c0_i32_8 : i32
    %10 = arith.extui %9 : i1 to i32
    %c0_i32_9 = arith.constant 0 : i32
    %11 = arith.cmpi ne, %10, %c0_i32_9 : i32
    scf.if %11 {
      %c0_10 = arith.constant 0 : index
      %c0_11 = arith.constant 0 : index
      %12 = vector.load %arg7[%c0_10, %c0_11] : memref<256x128xf32, #tpu.memory_space<vmem>>, vector<256x128xf32>
      %c0_12 = arith.constant 0 : index
      %c0_13 = arith.constant 0 : index
      %13 = vector.load %arg5[%c0_12, %c0_13] : memref<1x128xf32, #tpu.memory_space<vmem>>, vector<1x128xf32>
      %14 = vector.broadcast %13 : vector<1x128xf32> to vector<256x128xf32>
      %15 = arith.addf %12, %14 : vector<256x128xf32>
      %c0_14 = arith.constant 0 : index
      %c0_15 = arith.constant 0 : index
      %16 = vector.load %arg6[%c0_14, %c0_15] : memref<256x128xf32, #tpu.memory_space<vmem>>, vector<256x128xf32>
      tpu.vector_store %arg6[%c0_14, %c0_15], %15 {strides = array<i32>} : memref<256x128xf32, #tpu.memory_space<vmem>>, vector<256x128xf32>,
    } else {
    }
    return
  }
  func.func @transform_0(%arg0: i32, %arg1: i32, %arg2: i32) -> (i32, i32) {
    %c0_i32 = arith.constant 0 : i32
    return %arg0, %arg2 : i32, i32
  }
  func.func @transform_1(%arg0: i32, %arg1: i32, %arg2: i32) -> (i32, i32) {
    %c0_i32 = arith.constant 0 : i32
    return %arg2, %arg1 : i32, i32
  }
  func.func @transform_2(%arg0: i32, %arg1: i32, %arg2: i32) -> (i32, i32) {
    %c0_i32 = arith.constant 0 : i32
    %c0_i32_0 = arith.constant 0 : i32
    return %c0_i32, %arg1 : i32, i32
  }
  func.func @transform_3(%arg0: i32, %arg1: i32, %arg2: i32) -> (i32, i32) {
    %c0_i32 = arith.constant 0 : i32
    return %arg0, %arg1 : i32, i32
  }
}

module attributes {stable_mosaic.version = 11 : i64} {
  func.func @_matmul_bias_kernel(%arg0: i32, %arg1: i32, %arg2: i32, %arg3: memref<104x640xbf16, #tpu.memory_space<vmem>>, %arg4: memref<640x128xbf16, #tpu.memory_space<vmem>>, %arg5: memref<1x128xf32, #tpu.memory_space<vmem>>, %arg6: memref<104x128xf32, #tpu.memory_space<vmem>>, %arg7: memref<104x128xf32, #tpu.memory_space<vmem>>) attributes {dimension_semantics = [#tpu.dimension_semantics<parallel>, #tpu.dimension_semantics<parallel>, #tpu.dimension_semantics<arbitrary>], iteration_bounds = array<i64: 1, 1, 1>, scalar_prefetch = 0 : i64, scratch_operands = 1 : i64, tpu.core_type = #tpu.core_type<tc>, window_params = [{transform_indices = @transform_0, window_bounds = array<i64: 104, 640>}, {transform_indices = @transform_1, window_bounds = array<i64: 640, 128>}, {transform_indices = @transform_2, window_bounds = array<i64: 1, 128>}, {transform_indices = @transform_3, window_bounds = array<i64: 104, 128>}]} {
    %c0_i32 = arith.constant 0 : i32
    %0 = arith.cmpi eq, %arg2, %c0_i32 : i32
    %1 = arith.extui %0 : i1 to i32
    %c0_i32_0 = arith.constant 0 : i32
    %2 = arith.cmpi ne, %1, %c0_i32_0 : i32
    scf.if %2 {
      %cst_10 = arith.constant 0.000000e+00 : f32
      %12 = vector.broadcast %cst_10 : f32 to vector<104x128xf32>
      %c0_11 = arith.constant 0 : index
      %c0_12 = arith.constant 0 : index
      %13 = vector.load %arg7[%c0_11, %c0_12] : memref<104x128xf32, #tpu.memory_space<vmem>>, vector<104x128xf32>
      tpu.vector_store %arg7[%c0_11, %c0_12], %12 {strides = array<i32>} : memref<104x128xf32, #tpu.memory_space<vmem>>, vector<104x128xf32>,
    } else {
    }
    %c0 = arith.constant 0 : index
    %c0_1 = arith.constant 0 : index
    %3 = vector.load %arg7[%c0, %c0_1] : memref<104x128xf32, #tpu.memory_space<vmem>>, vector<104x128xf32>
    %c0_2 = arith.constant 0 : index
    %c0_3 = arith.constant 0 : index
    %4 = vector.load %arg3[%c0_2, %c0_3] : memref<104x640xbf16, #tpu.memory_space<vmem>>, vector<104x640xbf16>
    %c0_4 = arith.constant 0 : index
    %c0_5 = arith.constant 0 : index
    %5 = vector.load %arg4[%c0_4, %c0_5] : memref<640x128xbf16, #tpu.memory_space<vmem>>, vector<640x128xbf16>
    %cst = arith.constant dense<0.000000e+00> : vector<104x128xf32>
    %6 = tpu.matmul %4, %5, %cst {dimension_numbers = #tpu.dot_dimension_numbers<[1], [0], [0], [1], [0, 0, 1, 1], [], []>} : vector<104x640xbf16>, vector<640x128xbf16>, vector<104x128xf32> -> vector<104x128xf32>
    %7 = arith.addf %3, %6 : vector<104x128xf32>
    %c0_6 = arith.constant 0 : index
    %c0_7 = arith.constant 0 : index
    %8 = vector.load %arg7[%c0_6, %c0_7] : memref<104x128xf32, #tpu.memory_space<vmem>>, vector<104x128xf32>
    tpu.vector_store %arg7[%c0_6, %c0_7], %7 {strides = array<i32>} : memref<104x128xf32, #tpu.memory_space<vmem>>, vector<104x128xf32>,
    %c0_i32_8 = arith.constant 0 : i32
    %9 = arith.cmpi eq, %arg2, %c0_i32_8 : i32
    %10 = arith.extui %9 : i1 to i32
    %c0_i32_9 = arith.constant 0 : i32
    %11 = arith.cmpi ne, %10, %c0_i32_9 : i32
    scf.if %11 {
      %c0_10 = arith.constant 0 : index
      %c0_11 = arith.constant 0 : index
      %12 = vector.load %arg7[%c0_10, %c0_11] : memref<104x128xf32, #tpu.memory_space<vmem>>, vector<104x128xf32>
      %c0_12 = arith.constant 0 : index
      %c0_13 = arith.constant 0 : index
      %13 = vector.load %arg5[%c0_12, %c0_13] : memref<1x128xf32, #tpu.memory_space<vmem>>, vector<1x128xf32>
      %14 = vector.broadcast %13 : vector<1x128xf32> to vector<104x128xf32>
      %15 = arith.addf %12, %14 : vector<104x128xf32>
      %c0_14 = arith.constant 0 : index
      %c0_15 = arith.constant 0 : index
      %16 = vector.load %arg6[%c0_14, %c0_15] : memref<104x128xf32, #tpu.memory_space<vmem>>, vector<104x128xf32>
      tpu.vector_store %arg6[%c0_14, %c0_15], %15 {strides = array<i32>} : memref<104x128xf32, #tpu.memory_space<vmem>>, vector<104x128xf32>,
    } else {
    }
    return
  }
  func.func @transform_0(%arg0: i32, %arg1: i32, %arg2: i32) -> (i32, i32) {
    %c0_i32 = arith.constant 0 : i32
    return %arg0, %arg2 : i32, i32
  }
  func.func @transform_1(%arg0: i32, %arg1: i32, %arg2: i32) -> (i32, i32) {
    %c0_i32 = arith.constant 0 : i32
    return %arg2, %arg1 : i32, i32
  }
  func.func @transform_2(%arg0: i32, %arg1: i32, %arg2: i32) -> (i32, i32) {
    %c0_i32 = arith.constant 0 : i32
    %c0_i32_0 = arith.constant 0 : i32
    return %c0_i32, %arg1 : i32, i32
  }
  func.func @transform_3(%arg0: i32, %arg1: i32, %arg2: i32) -> (i32, i32) {
    %c0_i32 = arith.constant 0 : i32
    return %arg0, %arg1 : i32, i32
  }
}

module attributes {stable_mosaic.version = 11 : i64} {
  func.func @_matmul_bias_kernel(%arg0: i32, %arg1: i32, %arg2: i32, %arg3: memref<32x640xbf16, #tpu.memory_space<vmem>>, %arg4: memref<640x128xbf16, #tpu.memory_space<vmem>>, %arg5: memref<1x128xf32, #tpu.memory_space<vmem>>, %arg6: memref<32x128xf32, #tpu.memory_space<vmem>>, %arg7: memref<32x128xf32, #tpu.memory_space<vmem>>) attributes {dimension_semantics = [#tpu.dimension_semantics<parallel>, #tpu.dimension_semantics<parallel>, #tpu.dimension_semantics<arbitrary>], iteration_bounds = array<i64: 1, 1, 1>, scalar_prefetch = 0 : i64, scratch_operands = 1 : i64, tpu.core_type = #tpu.core_type<tc>, window_params = [{transform_indices = @transform_0, window_bounds = array<i64: 32, 640>}, {transform_indices = @transform_1, window_bounds = array<i64: 640, 128>}, {transform_indices = @transform_2, window_bounds = array<i64: 1, 128>}, {transform_indices = @transform_3, window_bounds = array<i64: 32, 128>}]} {
    %c0_i32 = arith.constant 0 : i32
    %0 = arith.cmpi eq, %arg2, %c0_i32 : i32
    %1 = arith.extui %0 : i1 to i32
    %c0_i32_0 = arith.constant 0 : i32
    %2 = arith.cmpi ne, %1, %c0_i32_0 : i32
    scf.if %2 {
      %cst_10 = arith.constant 0.000000e+00 : f32
      %12 = vector.broadcast %cst_10 : f32 to vector<32x128xf32>
      %c0_11 = arith.constant 0 : index
      %c0_12 = arith.constant 0 : index
      %13 = vector.load %arg7[%c0_11, %c0_12] : memref<32x128xf32, #tpu.memory_space<vmem>>, vector<32x128xf32>
      tpu.vector_store %arg7[%c0_11, %c0_12], %12 {strides = array<i32>} : memref<32x128xf32, #tpu.memory_space<vmem>>, vector<32x128xf32>,
    } else {
    }
    %c0 = arith.constant 0 : index
    %c0_1 = arith.constant 0 : index
    %3 = vector.load %arg7[%c0, %c0_1] : memref<32x128xf32, #tpu.memory_space<vmem>>, vector<32x128xf32>
    %c0_2 = arith.constant 0 : index
    %c0_3 = arith.constant 0 : index
    %4 = vector.load %arg3[%c0_2, %c0_3] : memref<32x640xbf16, #tpu.memory_space<vmem>>, vector<32x640xbf16>
    %c0_4 = arith.constant 0 : index
    %c0_5 = arith.constant 0 : index
    %5 = vector.load %arg4[%c0_4, %c0_5] : memref<640x128xbf16, #tpu.memory_space<vmem>>, vector<640x128xbf16>
    %cst = arith.constant dense<0.000000e+00> : vector<32x128xf32>
    %6 = tpu.matmul %4, %5, %cst {dimension_numbers = #tpu.dot_dimension_numbers<[1], [0], [0], [1], [0, 0, 1, 1], [], []>} : vector<32x640xbf16>, vector<640x128xbf16>, vector<32x128xf32> -> vector<32x128xf32>
    %7 = arith.addf %3, %6 : vector<32x128xf32>
    %c0_6 = arith.constant 0 : index
    %c0_7 = arith.constant 0 : index
    %8 = vector.load %arg7[%c0_6, %c0_7] : memref<32x128xf32, #tpu.memory_space<vmem>>, vector<32x128xf32>
    tpu.vector_store %arg7[%c0_6, %c0_7], %7 {strides = array<i32>} : memref<32x128xf32, #tpu.memory_space<vmem>>, vector<32x128xf32>,
    %c0_i32_8 = arith.constant 0 : i32
    %9 = arith.cmpi eq, %arg2, %c0_i32_8 : i32
    %10 = arith.extui %9 : i1 to i32
    %c0_i32_9 = arith.constant 0 : i32
    %11 = arith.cmpi ne, %10, %c0_i32_9 : i32
    scf.if %11 {
      %c0_10 = arith.constant 0 : index
      %c0_11 = arith.constant 0 : index
      %12 = vector.load %arg7[%c0_10, %c0_11] : memref<32x128xf32, #tpu.memory_space<vmem>>, vector<32x128xf32>
      %c0_12 = arith.constant 0 : index
      %c0_13 = arith.constant 0 : index
      %13 = vector.load %arg5[%c0_12, %c0_13] : memref<1x128xf32, #tpu.memory_space<vmem>>, vector<1x128xf32>
      %14 = vector.broadcast %13 : vector<1x128xf32> to vector<32x128xf32>
      %15 = arith.addf %12, %14 : vector<32x128xf32>
      %c0_14 = arith.constant 0 : index
      %c0_15 = arith.constant 0 : index
      %16 = vector.load %arg6[%c0_14, %c0_15] : memref<32x128xf32, #tpu.memory_space<vmem>>, vector<32x128xf32>
      tpu.vector_store %arg6[%c0_14, %c0_15], %15 {strides = array<i32>} : memref<32x128xf32, #tpu.memory_space<vmem>>, vector<32x128xf32>,
    } else {
    }
    return
  }
  func.func @transform_0(%arg0: i32, %arg1: i32, %arg2: i32) -> (i32, i32) {
    %c0_i32 = arith.constant 0 : i32
    return %arg0, %arg2 : i32, i32
  }
  func.func @transform_1(%arg0: i32, %arg1: i32, %arg2: i32) -> (i32, i32) {
    %c0_i32 = arith.constant 0 : i32
    return %arg2, %arg1 : i32, i32
  }
  func.func @transform_2(%arg0: i32, %arg1: i32, %arg2: i32) -> (i32, i32) {
    %c0_i32 = arith.constant 0 : i32
    %c0_i32_0 = arith.constant 0 : i32
    return %c0_i32, %arg1 : i32, i32
  }
  func.func @transform_3(%arg0: i32, %arg1: i32, %arg2: i32) -> (i32, i32) {
    %c0_i32 = arith.constant 0 : i32
    return %arg0, %arg1 : i32, i32
  }
}

module attributes {stable_mosaic.version = 11 : i64} {
  func.func @_matmul_bias_kernel(%arg0: i32, %arg1: i32, %arg2: i32, %arg3: memref<8x512xbf16, #tpu.memory_space<vmem>>, %arg4: memref<512x256xbf16, #tpu.memory_space<vmem>>, %arg5: memref<1x256xf32, #tpu.memory_space<vmem>>, %arg6: memref<8x256xf32, #tpu.memory_space<vmem>>, %arg7: memref<8x256xf32, #tpu.memory_space<vmem>>) attributes {dimension_semantics = [#tpu.dimension_semantics<parallel>, #tpu.dimension_semantics<parallel>, #tpu.dimension_semantics<arbitrary>], iteration_bounds = array<i64: 1, 4, 4>, scalar_prefetch = 0 : i64, scratch_operands = 1 : i64, tpu.core_type = #tpu.core_type<tc>, window_params = [{transform_indices = @transform_0, window_bounds = array<i64: 8, 512>}, {transform_indices = @transform_1, window_bounds = array<i64: 512, 256>}, {transform_indices = @transform_2, window_bounds = array<i64: 1, 256>}, {transform_indices = @transform_3, window_bounds = array<i64: 8, 256>}]} {
    %c0_i32 = arith.constant 0 : i32
    %0 = arith.cmpi eq, %arg2, %c0_i32 : i32
    %1 = arith.extui %0 : i1 to i32
    %c0_i32_0 = arith.constant 0 : i32
    %2 = arith.cmpi ne, %1, %c0_i32_0 : i32
    scf.if %2 {
      %cst_9 = arith.constant 0.000000e+00 : f32
      %12 = vector.broadcast %cst_9 : f32 to vector<8x256xf32>
      %c0_10 = arith.constant 0 : index
      %c0_11 = arith.constant 0 : index
      %13 = vector.load %arg7[%c0_10, %c0_11] : memref<8x256xf32, #tpu.memory_space<vmem>>, vector<8x256xf32>
      tpu.vector_store %arg7[%c0_10, %c0_11], %12 {strides = array<i32>} : memref<8x256xf32, #tpu.memory_space<vmem>>, vector<8x256xf32>,
    } else {
    }
    %c0 = arith.constant 0 : index
    %c0_1 = arith.constant 0 : index
    %3 = vector.load %arg7[%c0, %c0_1] : memref<8x256xf32, #tpu.memory_space<vmem>>, vector<8x256xf32>
    %c0_2 = arith.constant 0 : index
    %c0_3 = arith.constant 0 : index
    %4 = vector.load %arg3[%c0_2, %c0_3] : memref<8x512xbf16, #tpu.memory_space<vmem>>, vector<8x512xbf16>
    %c0_4 = arith.constant 0 : index
    %c0_5 = arith.constant 0 : index
    %5 = vector.load %arg4[%c0_4, %c0_5] : memref<512x256xbf16, #tpu.memory_space<vmem>>, vector<512x256xbf16>
    %cst = arith.constant dense<0.000000e+00> : vector<8x256xf32>
    %6 = tpu.matmul %4, %5, %cst {dimension_numbers = #tpu.dot_dimension_numbers<[1], [0], [0], [1], [0, 0, 1, 1], [], []>} : vector<8x512xbf16>, vector<512x256xbf16>, vector<8x256xf32> -> vector<8x256xf32>
    %7 = arith.addf %3, %6 : vector<8x256xf32>
    %c0_6 = arith.constant 0 : index
    %c0_7 = arith.constant 0 : index
    %8 = vector.load %arg7[%c0_6, %c0_7] : memref<8x256xf32, #tpu.memory_space<vmem>>, vector<8x256xf32>
    tpu.vector_store %arg7[%c0_6, %c0_7], %7 {strides = array<i32>} : memref<8x256xf32, #tpu.memory_space<vmem>>, vector<8x256xf32>,
    %c3_i32 = arith.constant 3 : i32
    %9 = arith.cmpi eq, %arg2, %c3_i32 : i32
    %10 = arith.extui %9 : i1 to i32
    %c0_i32_8 = arith.constant 0 : i32
    %11 = arith.cmpi ne, %10, %c0_i32_8 : i32
    scf.if %11 {
      %c0_9 = arith.constant 0 : index
      %c0_10 = arith.constant 0 : index
      %12 = vector.load %arg7[%c0_9, %c0_10] : memref<8x256xf32, #tpu.memory_space<vmem>>, vector<8x256xf32>
      %c0_11 = arith.constant 0 : index
      %c0_12 = arith.constant 0 : index
      %13 = vector.load %arg5[%c0_11, %c0_12] : memref<1x256xf32, #tpu.memory_space<vmem>>, vector<1x256xf32>
      %14 = vector.broadcast %13 : vector<1x256xf32> to vector<8x256xf32>
      %15 = arith.addf %12, %14 : vector<8x256xf32>
      %c0_13 = arith.constant 0 : index
      %c0_14 = arith.constant 0 : index
      %16 = vector.load %arg6[%c0_13, %c0_14] : memref<8x256xf32, #tpu.memory_space<vmem>>, vector<8x256xf32>
      tpu.vector_store %arg6[%c0_13, %c0_14], %15 {strides = array<i32>} : memref<8x256xf32, #tpu.memory_space<vmem>>, vector<8x256xf32>,
    } else {
    }
    return
  }
  func.func @transform_0(%arg0: i32, %arg1: i32, %arg2: i32) -> (i32, i32) {
    %c0_i32 = arith.constant 0 : i32
    return %arg0, %arg2 : i32, i32
  }
  func.func @transform_1(%arg0: i32, %arg1: i32, %arg2: i32) -> (i32, i32) {
    %c0_i32 = arith.constant 0 : i32
    return %arg2, %arg1 : i32, i32
  }
  func.func @transform_2(%arg0: i32, %arg1: i32, %arg2: i32) -> (i32, i32) {
    %c0_i32 = arith.constant 0 : i32
    %c0_i32_0 = arith.constant 0 : i32
    return %c0_i32, %arg1 : i32, i32
  }
  func.func @transform_3(%arg0: i32, %arg1: i32, %arg2: i32) -> (i32, i32) {
    %c0_i32 = arith.constant 0 : i32
    return %arg0, %arg1 : i32, i32
  }
}

module attributes {stable_mosaic.version = 11 : i64} {
  func.func @_matmul_bias_kernel(%arg0: i32, %arg1: i32, %arg2: i32, %arg3: memref<8x1024xbf16, #tpu.memory_space<vmem>>, %arg4: memref<1024x128xbf16, #tpu.memory_space<vmem>>, %arg5: memref<1x128xf32, #tpu.memory_space<vmem>>, %arg6: memref<8x128xf32, #tpu.memory_space<vmem>>, %arg7: memref<8x128xf32, #tpu.memory_space<vmem>>) attributes {dimension_semantics = [#tpu.dimension_semantics<parallel>, #tpu.dimension_semantics<parallel>, #tpu.dimension_semantics<arbitrary>], iteration_bounds = array<i64: 1, 1, 1>, scalar_prefetch = 0 : i64, scratch_operands = 1 : i64, tpu.core_type = #tpu.core_type<tc>, window_params = [{transform_indices = @transform_0, window_bounds = array<i64: 8, 1024>}, {transform_indices = @transform_1, window_bounds = array<i64: 1024, 128>}, {transform_indices = @transform_2, window_bounds = array<i64: 1, 128>}, {transform_indices = @transform_3, window_bounds = array<i64: 8, 128>}]} {
    %c0_i32 = arith.constant 0 : i32
    %0 = arith.cmpi eq, %arg2, %c0_i32 : i32
    %1 = arith.extui %0 : i1 to i32
    %c0_i32_0 = arith.constant 0 : i32
    %2 = arith.cmpi ne, %1, %c0_i32_0 : i32
    scf.if %2 {
      %cst_10 = arith.constant 0.000000e+00 : f32
      %12 = vector.broadcast %cst_10 : f32 to vector<8x128xf32>
      %c0_11 = arith.constant 0 : index
      %c0_12 = arith.constant 0 : index
      %13 = vector.load %arg7[%c0_11, %c0_12] : memref<8x128xf32, #tpu.memory_space<vmem>>, vector<8x128xf32>
      tpu.vector_store %arg7[%c0_11, %c0_12], %12 {strides = array<i32>} : memref<8x128xf32, #tpu.memory_space<vmem>>, vector<8x128xf32>,
    } else {
    }
    %c0 = arith.constant 0 : index
    %c0_1 = arith.constant 0 : index
    %3 = vector.load %arg7[%c0, %c0_1] : memref<8x128xf32, #tpu.memory_space<vmem>>, vector<8x128xf32>
    %c0_2 = arith.constant 0 : index
    %c0_3 = arith.constant 0 : index
    %4 = vector.load %arg3[%c0_2, %c0_3] : memref<8x1024xbf16, #tpu.memory_space<vmem>>, vector<8x1024xbf16>
    %c0_4 = arith.constant 0 : index
    %c0_5 = arith.constant 0 : index
    %5 = vector.load %arg4[%c0_4, %c0_5] : memref<1024x128xbf16, #tpu.memory_space<vmem>>, vector<1024x128xbf16>
    %cst = arith.constant dense<0.000000e+00> : vector<8x128xf32>
    %6 = tpu.matmul %4, %5, %cst {dimension_numbers = #tpu.dot_dimension_numbers<[1], [0], [0], [1], [0, 0, 1, 1], [], []>} : vector<8x1024xbf16>, vector<1024x128xbf16>, vector<8x128xf32> -> vector<8x128xf32>
    %7 = arith.addf %3, %6 : vector<8x128xf32>
    %c0_6 = arith.constant 0 : index
    %c0_7 = arith.constant 0 : index
    %8 = vector.load %arg7[%c0_6, %c0_7] : memref<8x128xf32, #tpu.memory_space<vmem>>, vector<8x128xf32>
    tpu.vector_store %arg7[%c0_6, %c0_7], %7 {strides = array<i32>} : memref<8x128xf32, #tpu.memory_space<vmem>>, vector<8x128xf32>,
    %c0_i32_8 = arith.constant 0 : i32
    %9 = arith.cmpi eq, %arg2, %c0_i32_8 : i32
    %10 = arith.extui %9 : i1 to i32
    %c0_i32_9 = arith.constant 0 : i32
    %11 = arith.cmpi ne, %10, %c0_i32_9 : i32
    scf.if %11 {
      %c0_10 = arith.constant 0 : index
      %c0_11 = arith.constant 0 : index
      %12 = vector.load %arg7[%c0_10, %c0_11] : memref<8x128xf32, #tpu.memory_space<vmem>>, vector<8x128xf32>
      %c0_12 = arith.constant 0 : index
      %c0_13 = arith.constant 0 : index
      %13 = vector.load %arg5[%c0_12, %c0_13] : memref<1x128xf32, #tpu.memory_space<vmem>>, vector<1x128xf32>
      %14 = vector.broadcast %13 : vector<1x128xf32> to vector<8x128xf32>
      %15 = arith.addf %12, %14 : vector<8x128xf32>
      %c0_14 = arith.constant 0 : index
      %c0_15 = arith.constant 0 : index
      %16 = vector.load %arg6[%c0_14, %c0_15] : memref<8x128xf32, #tpu.memory_space<vmem>>, vector<8x128xf32>
      tpu.vector_store %arg6[%c0_14, %c0_15], %15 {strides = array<i32>} : memref<8x128xf32, #tpu.memory_space<vmem>>, vector<8x128xf32>,
    } else {
    }
    return
  }
  func.func @transform_0(%arg0: i32, %arg1: i32, %arg2: i32) -> (i32, i32) {
    %c0_i32 = arith.constant 0 : i32
    return %arg0, %arg2 : i32, i32
  }
  func.func @transform_1(%arg0: i32, %arg1: i32, %arg2: i32) -> (i32, i32) {
    %c0_i32 = arith.constant 0 : i32
    return %arg2, %arg1 : i32, i32
  }
  func.func @transform_2(%arg0: i32, %arg1: i32, %arg2: i32) -> (i32, i32) {
    %c0_i32 = arith.constant 0 : i32
    %c0_i32_0 = arith.constant 0 : i32
    return %c0_i32, %arg1 : i32, i32
  }
  func.func @transform_3(%arg0: i32, %arg1: i32, %arg2: i32) -> (i32, i32) {
    %c0_i32 = arith.constant 0 : i32
    return %arg0, %arg1 : i32, i32
  }
}

</mosaic_0001>

<llo_original>
// kernel: resnet_forward.7
$region0: #{resnet_forward.7}
  #allocation0 [shape = 'u32[]', space=smem, size = 0x4, offset = 0x4, fixed_abs, tag = 'smem constant byte address 0x4 - core index']
  #allocation1 [shape = 'u32[144,128]{1,0:T(1,128)}', space=vmem, size = 0x12000, scoped, tag = 'internal scratch']
  %s0 = inlined_call_operand.vmem [shape: f32[2,8,8,64], index: 0, kind: input, shape index: {}]
  %s1 = inlined_call_operand.vmem [shape: f32[2,8,8,64], index: 1, kind: input, shape index: {}]
  %s2 = inlined_call_operand.vmem [shape: f32[2,8,8,64], index: 2, kind: input, shape index: {}]
  %s3 = inlined_call_operand.vmem [shape: f32[2,8,8,64], index: 3, kind: input, shape index: {}]
  %s4 = inlined_call_operand.vmem [shape: f32[2,7,7,64], index: 4, kind: output, shape index: {}]
  %s5 = sld [smem:[#allocation0]]
  $region49: #{resnet_forward.7} parent=0
    _
  %s7 = ssub.s32 1, %s5
  %s8 = scalar_select 0, %s7, %s5
  loop: start=0, step=1, limit=4
  $region2: #{resnet_forward.7} parent=0 // loop_pre_header
    _
  $region3: #{resnet_forward.7} parent=0 // loop_header
    %s10 = sphi 0, %s14
    %p11 = scmp.ge.s32.totalorder %s10, 4
    %s20 = sphi 0, %s22
    %s23 = sphi 0, %s20
    %s24 = sphi 0, %s23
    %s40 = sphi 0, %s24
    %s46 = sphi 0, %s48
    %s49 = sphi 0, %s46
    %s50 = sphi 0, %s49
    %s66 = sphi 0, %s50
    %s72 = sphi 0, %s74
    %s75 = sphi 0, %s72
    %s76 = sphi 0, %s75
    %s92 = sphi 0, %s76
    %s98 = sphi 0, %s100
    %s101 = sphi 0, %s98
    %s102 = sphi 0, %s101
    %s118 = sphi 0, %s102
    %s124 = sphi 0, %s126
    %s127 = sphi 0, %s124
    %s128 = sphi 0, %s127
    %s144 = sphi 0, %s128
  $region4: #{resnet_forward.7} parent=0 // loop_header_branch
    %13 = sbr.rel (%p11) target = $region8
  $region5: #{resnet_forward.7} parent=0 // loop_body
    %s15 = ssub.s32 %s10, 1
    %s16 = ssub.s32 %s10, 2
    %s17 = sadd.s32 %s10, 1
    %s18 = ssub.s32 %s10, %s17
    %p19 = scmp.eq.s32.totalorder %s18, 0
    %s21 = sadd.s32 %s20, 1
    %s22 = scalar_select %p19, %s20, %s21
    %p25 = pneg %p19
    %p26 = scmp.eq.s32.totalorder %s10, 1
    %p27 = por %p25, %p26
    %p28 = scmp.ne.s32.totalorder %s20, %s23
    %p29 = scmp.eq.s32.totalorder %s10, 0
    %p30 = por %p28, %p29
    %p31 = scmp.ne.s32.totalorder %s20, %s23
    %p32 = scmp.eq.s32.totalorder %s15, 1
    %p33 = por %p31, %p32
    %p34 = scmp.ne.s32.totalorder %s23, %s24
    %p35 = scmp.eq.s32.totalorder %s15, 0
    %p36 = por %p34, %p35
    %p37 = scmp.ne.s32.totalorder %s23, %s24
    %p38 = scmp.eq.s32.totalorder %s16, 1
    %p39 = por %p37, %p38
    %p41 = scmp.ne.s32.totalorder %s24, %s40
    %p42 = scmp.eq.s32.totalorder %s16, 0
    %p43 = por %p41, %p42
    %s44 = ssub.s32 %s10, %s17
    %p45 = scmp.eq.s32.totalorder %s44, 0
    %s47 = sadd.s32 %s46, 1
    %s48 = scalar_select %p45, %s46, %s47
    %p51 = pneg %p45
    %p52 = scmp.eq.s32.totalorder %s10, 1
    %p53 = por %p51, %p52
    %p54 = scmp.ne.s32.totalorder %s46, %s49
    %p55 = scmp.eq.s32.totalorder %s10, 0
    %p56 = por %p54, %p55
    %p57 = scmp.ne.s32.totalorder %s46, %s49
    %p58 = scmp.eq.s32.totalorder %s15, 1
    %p59 = por %p57, %p58
    %p60 = scmp.ne.s32.totalorder %s49, %s50
    %p61 = scmp.eq.s32.totalorder %s15, 0
    %p62 = por %p60, %p61
    %p63 = scmp.ne.s32.totalorder %s49, %s50
    %p64 = scmp.eq.s32.totalorder %s16, 1
    %p65 = por %p63, %p64
    %p67 = scmp.ne.s32.totalorder %s50, %s66
    %p68 = scmp.eq.s32.totalorder %s16, 0
    %p69 = por %p67, %p68
    %s70 = ssub.s32 %s10, %s17
    %p71 = scmp.eq.s32.totalorder %s70, 0
    %s73 = sadd.s32 %s72, 1
    %s74 = scalar_select %p71, %s72, %s73
    %p77 = pneg %p71
    %p78 = scmp.eq.s32.totalorder %s10, 1
    %p79 = por %p77, %p78
    %p80 = scmp.ne.s32.totalorder %s72, %s75
    %p81 = scmp.eq.s32.totalorder %s10, 0
    %p82 = por %p80, %p81
    %p83 = scmp.ne.s32.totalorder %s72, %s75
    %p84 = scmp.eq.s32.totalorder %s15, 1
    %p85 = por %p83, %p84
    %p86 = scmp.ne.s32.totalorder %s75, %s76
    %p87 = scmp.eq.s32.totalorder %s15, 0
    %p88 = por %p86, %p87
    %p89 = scmp.ne.s32.totalorder %s75, %s76
    %p90 = scmp.eq.s32.totalorder %s16, 1
    %p91 = por %p89, %p90
    %p93 = scmp.ne.s32.totalorder %s76, %s92
    %p94 = scmp.eq.s32.totalorder %s16, 0
    %p95 = por %p93, %p94
    %s96 = ssub.s32 %s10, %s17
    %p97 = scmp.eq.s32.totalorder %s96, 0
    %s99 = sadd.s32 %s98, 1
    %s100 = scalar_select %p97, %s98, %s99
    %p103 = pneg %p97
    %p104 = scmp.eq.s32.totalorder %s10, 1
    %p105 = por %p103, %p104
    %p106 = scmp.ne.s32.totalorder %s98, %s101
    %p107 = scmp.eq.s32.totalorder %s10, 0
    %p108 = por %p106, %p107
    %p109 = scmp.ne.s32.totalorder %s98, %s101
    %p110 = scmp.eq.s32.totalorder %s15, 1
    %p111 = por %p109, %p110
    %p112 = scmp.ne.s32.totalorder %s101, %s102
    %p113 = scmp.eq.s32.totalorder %s15, 0
    %p114 = por %p112, %p113
    %p115 = scmp.ne.s32.totalorder %s101, %s102
    %p116 = scmp.eq.s32.totalorder %s16, 1
    %p117 = por %p115, %p116
    %p119 = scmp.ne.s32.totalorder %s102, %s118
    %p120 = scmp.eq.s32.totalorder %s16, 0
    %p121 = por %p119, %p120
    %s122 = ssub.s32 %s10, %s17
    %p123 = scmp.eq.s32.totalorder %s122, 0
    %s125 = sadd.s32 %s124, 1
    %s126 = scalar_select %p123, %s124, %s125
    %p129 = pneg %p123
    %p130 = scmp.eq.s32.totalorder %s10, 1
    %p131 = por %p129, %p130
    %p132 = scmp.ne.s32.totalorder %s124, %s127
    %p133 = scmp.eq.s32.totalorder %s10, 0
    %p134 = por %p132, %p133
    %p135 = scmp.ne.s32.totalorder %s124, %s127
    %p136 = scmp.eq.s32.totalorder %s15, 1
    %p137 = por %p135, %p136
    %p138 = scmp.ne.s32.totalorder %s127, %s128
    %p139 = scmp.eq.s32.totalorder %s15, 0
    %p140 = por %p138, %p139
    %p141 = scmp.ne.s32.totalorder %s127, %s128
    %p142 = scmp.eq.s32.totalorder %s16, 1
    %p143 = por %p141, %p142
    %p145 = scmp.ne.s32.totalorder %s128, %s144
    %p146 = scmp.eq.s32.totalorder %s16, 0
    %p147 = por %p145, %p146
    %p148 = scmp.le.s32.totalorder 1, %s10
    %p149 = scmp.lt.s32.totalorder %s10, 3
    %p150 = pnand %p148, %p149
    %p151 = pneg %p150
    // Predicated region
    $region9: #{resnet_forward.7} parent=5 // pred_check
      _
    $region10: #{resnet_forward.7} parent=5 // pred_check_branch
      %153 = sbr.rel (%p150) target = $region12
    $region11: #{resnet_forward.7} parent=5 // pred_region
      %s154 = ssub.s32 %s10, 1
    $region12: #{resnet_forward.7} parent=5 // pred_fallthru
      _
    %p155 = scmp.lt.s32.totalorder %s10, 2
    // Predicated region
    $region13: #{resnet_forward.7} parent=5 // pred_check
      %p156 = pneg %p155
    $region14: #{resnet_forward.7} parent=5 // pred_check_branch
      %158 = sbr.rel (%p156) target = $region16
    $region15: #{resnet_forward.7} parent=5 // pred_region
      // Predicated region
      $region17: #{resnet_forward.7} parent=15 // pred_check
        %p159 = pneg %p30
      $region18: #{resnet_forward.7} parent=15 // pred_check_branch
        %161 = sbr.rel (%p159) target = $region20
      $region19: #{resnet_forward.7} parent=15 // pred_region
        %p162 = scmp.lt.s32.totalorder %s10, 1
        %s163 = scalar_select %p162, %s10, 1
        %s164 = smul.addr %s163, 8
        %s165 = smul.addr %s164, 8
        %s166 = scalar_lea.vmem %s0, %s165
      $region20: #{resnet_forward.7} parent=15 // pred_fallthru
        _
      // Predicated region
      $region21: #{resnet_forward.7} parent=15 // pred_check
        %p167 = pneg %p56
      $region22: #{resnet_forward.7} parent=15 // pred_check_branch
        %169 = sbr.rel (%p167) target = $region24
      $region23: #{resnet_forward.7} parent=15 // pred_region
        %p170 = scmp.lt.s32.totalorder %s10, 1
        %s171 = scalar_select %p170, %s10, 1
        %s172 = smul.addr %s171, 8
        %s173 = smul.addr %s172, 8
        %s174 = scalar_lea.vmem %s1, %s173
      $region24: #{resnet_forward.7} parent=15 // pred_fallthru
        _
      // Predicated region
      $region25: #{resnet_forward.7} parent=15 // pred_check
        %p175 = pneg %p82
      $region26: #{resnet_forward.7} parent=15 // pred_check_branch
        %177 = sbr.rel (%p175) target = $region28
      $region27: #{resnet_forward.7} parent=15 // pred_region
        %p178 = scmp.lt.s32.totalorder %s10, 1
        %s179 = scalar_select %p178, %s10, 1
        %s180 = smul.addr %s179, 8
        %s181 = smul.addr %s180, 8
        %s182 = scalar_lea.vmem %s2, %s181
      $region28: #{resnet_forward.7} parent=15 // pred_fallthru
        _
      // Predicated region
      $region29: #{resnet_forward.7} parent=15 // pred_check
        %p183 = pneg %p108
      $region30: #{resnet_forward.7} parent=15 // pred_check_branch
        %185 = sbr.rel (%p183) target = $region32
      $region31: #{resnet_forward.7} parent=15 // pred_region
        %p186 = scmp.lt.s32.totalorder %s10, 1
        %s187 = scalar_select %p186, %s10, 1
        %s188 = smul.addr %s187, 8
        %s189 = smul.addr %s188, 8
        %s190 = scalar_lea.vmem %s3, %s189
      $region32: #{resnet_forward.7} parent=15 // pred_fallthru
        _
    $region16: #{resnet_forward.7} parent=5 // pred_fallthru
      _
    %p191 = scmp.le.s32.totalorder 1, %s10
    %p192 = scmp.lt.s32.totalorder %s10, 3
    %p193 = pnand %p191, %p192
    %p194 = pneg %p193
    // Predicated region
    $region33: #{resnet_forward.7} parent=5 // pred_check
      _
    $region34: #{resnet_forward.7} parent=5 // pred_check_branch
      %196 = sbr.rel (%p193) target = $region36
    $region35: #{resnet_forward.7} parent=5 // pred_region
      %s197 = ssub.s32 %s10, 1
      %p198 = scmp.lt.s32.totalorder %s15, 1
      %s199 = scalar_select %p198, %s15, 1
      %s200 = smul.addr %s199, 8
      %s201 = smul.addr %s200, 8
      %s202 = scalar_lea.vmem %s0, %s201
      %p203 = pneg %p36
      %p204 = pneg %p33
      %p205 = scmp.lt.s32.totalorder %s15, 1
      %s206 = scalar_select %p205, %s15, 1
      %s207 = smul.addr %s206, 8
      %s208 = smul.addr %s207, 8
      %s209 = scalar_lea.vmem %s1, %s208
      %p210 = pneg %p62
      %p211 = pneg %p59
      %p212 = scmp.lt.s32.totalorder %s15, 1
      %s213 = scalar_select %p212, %s15, 1
      %s214 = smul.addr %s213, 8
      %s215 = smul.addr %s214, 8
      %s216 = scalar_lea.vmem %s2, %s215
      %p217 = pneg %p88
      %p218 = pneg %p85
      %p219 = scmp.lt.s32.totalorder %s15, 1
      %s220 = scalar_select %p219, %s15, 1
      %s221 = smul.addr %s220, 8
      %s222 = smul.addr %s221, 8
      %s223 = scalar_lea.vmem %s3, %s222
      %p224 = pneg %p114
      %p225 = pneg %p111
      %p226 = pneg %p140
      %p227 = pneg %p137
      %p228 = scmp.lt.s32.totalorder %s15, 1
      %s229 = scalar_select %p228, %s15, 1
      %s230 = smul.addr %s229, 7
      %s231 = smul.addr %s230, 8
      %s232 = scalar_lea.vmem %s4, %s231
      %p233 = scmp.lt.s32.totalorder %s15, 1
      %s234 = scalar_select %p233, %s15, 1
      %s235 = smul.addr %s234, 8
      %s236 = smul.addr %s235, 8
      %s237 = scalar_lea.vmem %s0, %s236
      %p238 = scmp.lt.s32.totalorder %s15, 1
      %s239 = scalar_select %p238, %s15, 1
      %s240 = smul.addr %s239, 8
      %s241 = smul.addr %s240, 8
      %s242 = scalar_lea.vmem %s1, %s241
      %p243 = scmp.lt.s32.totalorder %s15, 1
      %s244 = scalar_select %p243, %s15, 1
      %s245 = smul.addr %s244, 8
      %s246 = smul.addr %s245, 8
      %s247 = scalar_lea.vmem %s2, %s246
      %p248 = scmp.lt.s32.totalorder %s15, 1
      %s249 = scalar_select %p248, %s15, 1
      %s250 = smul.addr %s249, 8
      %s251 = smul.addr %s250, 8
      %s252 = scalar_lea.vmem %s3, %s251
      %p253 = scmp.lt.s32.totalorder %s15, 1
      %s254 = scalar_select %p253, %s15, 1
      %s255 = smul.addr %s254, 7
      %s256 = smul.addr %s255, 8
      %s257 = scalar_lea.vmem %s4, %s256
      %v258 = vld [vmem:[%s237] sm:$0xff]
      %v259 = vld [vmem:[%s237 + $0x8] sm:$0xff]
      %v260 = vld [vmem:[%s237 + $0x10] sm:$0xff]
      %v261 = vld [vmem:[%s237 + $0x18] sm:$0xff]
      %v262 = vld [vmem:[%s237 + $0x20] sm:$0xff]
      %v263 = vld [vmem:[%s237 + $0x28] sm:$0xff]
      %v264 = vld [vmem:[%s237 + $0x30] sm:$0xff]
      %v265 = vld [vmem:[%s237 + $0x38] sm:$0xff]
      %v266 = vld [vmem:[%s242] sm:$0xff]
      %v267 = vld [vmem:[%s242 + $0x8] sm:$0xff]
      %v268 = vld [vmem:[%s242 + $0x10] sm:$0xff]
      %v269 = vld [vmem:[%s242 + $0x18] sm:$0xff]
      %v270 = vld [vmem:[%s242 + $0x20] sm:$0xff]
      %v271 = vld [vmem:[%s242 + $0x28] sm:$0xff]
      %v272 = vld [vmem:[%s242 + $0x30] sm:$0xff]
      %v273 = vld [vmem:[%s242 + $0x38] sm:$0xff]
      %v274 = vld [vmem:[%s247] sm:$0xff]
      %v275 = vld [vmem:[%s247 + $0x8] sm:$0xff]
      %v276 = vld [vmem:[%s247 + $0x10] sm:$0xff]
      %v277 = vld [vmem:[%s247 + $0x18] sm:$0xff]
      %v278 = vld [vmem:[%s247 + $0x20] sm:$0xff]
      %v279 = vld [vmem:[%s247 + $0x28] sm:$0xff]
      %v280 = vld [vmem:[%s247 + $0x30] sm:$0xff]
      %v281 = vld [vmem:[%s252] sm:$0xff]
      %v282 = vld [vmem:[%s252 + $0x8] sm:$0xff]
      %v283 = vld [vmem:[%s252 + $0x10] sm:$0xff]
      %v284 = vld [vmem:[%s252 + $0x18] sm:$0xff]
      %v285 = vld [vmem:[%s252 + $0x20] sm:$0xff]
      %v286 = vld [vmem:[%s252 + $0x28] sm:$0xff]
      %v287 = vld [vmem:[%s252 + $0x30] sm:$0xff]
      %v288 = vmax.f32 %v258, %v266
      %v289 = vmax.f32 %v259, %v267
      %v290 = vmax.f32 %v260, %v268
      %v291 = vmax.f32 %v261, %v269
      %v292 = vmax.f32 %v262, %v270
      %v293 = vmax.f32 %v263, %v271
      %v294 = vmax.f32 %v264, %v272
      %v295 = vmax.f32 %v265, %v273
      %v304 = vrot.slane %v258, 1
      %v305 = vrot.slane %v259, 1
      %v306 = vrot.slane %v260, 1
      %v307 = vrot.slane %v261, 1
      %v308 = vrot.slane %v262, 1
      %v309 = vrot.slane %v263, 1
      %v310 = vrot.slane %v264, 1
      %v311 = vrot.slane %v265, 1
      %v320 = vmax.f32 %v288, %v304
      %v321 = vmax.f32 %v289, %v305
      %v322 = vmax.f32 %v290, %v306
      %v323 = vmax.f32 %v291, %v307
      %v324 = vmax.f32 %v292, %v308
      %v325 = vmax.f32 %v293, %v309
      %v326 = vmax.f32 %v294, %v310
      %v327 = vmax.f32 %v295, %v311
      %v328 = vmax.f32 %v274, %v281
      %v329 = vmax.f32 %v275, %v282
      %v330 = vmax.f32 %v276, %v283
      %v331 = vmax.f32 %v277, %v284
      %v332 = vmax.f32 %v278, %v285
      %v333 = vmax.f32 %v279, %v286
      %v334 = vmax.f32 %v280, %v287
      %v342 = vrot.slane %v274, 1
      %v343 = vrot.slane %v275, 1
      %v344 = vrot.slane %v276, 1
      %v345 = vrot.slane %v277, 1
      %v346 = vrot.slane %v278, 1
      %v347 = vrot.slane %v279, 1
      %v348 = vrot.slane %v280, 1
      %v356 = vmax.f32 %v328, %v342
      %v357 = vmax.f32 %v329, %v343
      %v358 = vmax.f32 %v330, %v344
      %v359 = vmax.f32 %v331, %v345
      %v360 = vmax.f32 %v332, %v346
      %v361 = vmax.f32 %v333, %v347
      %v362 = vmax.f32 %v334, %v348
      %v363 = vmax.f32 %v320, %v356
      %v364 = vmax.f32 %v321, %v357
      %v365 = vmax.f32 %v322, %v358
      %v366 = vmax.f32 %v323, %v359
      %v367 = vmax.f32 %v324, %v360
      %v368 = vmax.f32 %v325, %v361
      %v369 = vmax.f32 %v326, %v362
      %v370 = vmax.f32 %v363, %v321
      %v371 = vmax.f32 %v364, %v322
      %v372 = vmax.f32 %v365, %v323
      %v373 = vmax.f32 %v366, %v324
      %v374 = vmax.f32 %v367, %v325
      %v375 = vmax.f32 %v368, %v326
      %v376 = vmax.f32 %v369, %v327
      %vm377 = vcmask 522240
      %378 = vst.msk [vmem:[%s257] sm:$0x7f] %vm377, %v370
      %379 = vst.msk [vmem:[%s257 + $0x8] sm:$0x7f] %vm377, %v371
      %380 = vst.msk [vmem:[%s257 + $0x10] sm:$0x7f] %vm377, %v372
      %381 = vst.msk [vmem:[%s257 + $0x18] sm:$0x7f] %vm377, %v373
      %382 = vst.msk [vmem:[%s257 + $0x20] sm:$0x7f] %vm377, %v374
      %383 = vst.msk [vmem:[%s257 + $0x28] sm:$0x7f] %vm377, %v375
      %384 = vst.msk [vmem:[%s257 + $0x30] sm:$0x7f] %vm377, %v376
      %p385 = scmp.lt.s32.totalorder %s15, 1
      %s386 = scalar_select %p385, %s15, 1
      %s387 = smul.addr %s386, 7
      %s388 = smul.addr %s387, 8
      %s389 = scalar_lea.vmem %s4, %s388
      // Predicated region
      $region37: #{resnet_forward.7} parent=35 // pred_check
        %p390 = pneg %p137
      $region38: #{resnet_forward.7} parent=35 // pred_check_branch
        %392 = sbr.rel (%p390) target = $region40
      $region39: #{resnet_forward.7} parent=35 // pred_region
        _
      $region40: #{resnet_forward.7} parent=35 // pred_fallthru
        _
    $region36: #{resnet_forward.7} parent=5 // pred_fallthru
      _
    %p393 = scmp.le.s32.totalorder 2, %s10
    // Predicated region
    $region41: #{resnet_forward.7} parent=5 // pred_check
      %p394 = pneg %p393
    $region42: #{resnet_forward.7} parent=5 // pred_check_branch
      %396 = sbr.rel (%p394) target = $region44
    $region43: #{resnet_forward.7} parent=5 // pred_region
      %s397 = ssub.s32 %s10, 2
      // Predicated region
      $region45: #{resnet_forward.7} parent=43 // pred_check
        %p398 = pneg %p143
      $region46: #{resnet_forward.7} parent=43 // pred_check_branch
        %400 = sbr.rel (%p398) target = $region48
      $region47: #{resnet_forward.7} parent=43 // pred_region
        %p401 = scmp.lt.s32.totalorder %s16, 1
        %s402 = scalar_select %p401, %s16, 1
        %s403 = smul.addr %s402, 7
        %s404 = smul.addr %s403, 8
        %s405 = scalar_lea.vmem %s4, %s404
      $region48: #{resnet_forward.7} parent=43 // pred_fallthru
        _
    $region44: #{resnet_forward.7} parent=5 // pred_fallthru
      _
  $region6: #{resnet_forward.7} parent=0 // loop_footer
    %s14 = sadd.s32 1, %s10
  $region7: #{resnet_forward.7} parent=0 // loop_footer_branch
    %9 = sbr.rel target = $region3
  $region8: #{resnet_forward.7} parent=0 // loop_exit
    _

// kernel: resnet_forward.6
$region0: #{resnet_forward.6}
  #allocation0 [shape = 'u32[]', space=smem, size = 0x4, offset = 0x4, fixed_abs, tag = 'smem constant byte address 0x4 - core index']
  #allocation1 [shape = 'u32[144,128]{1,0:T(1,128)}', space=vmem, size = 0x12000, scoped, tag = 'internal scratch']
  #allocation2 [shape = 'f32[256,128]{1,0:T(8,128)}', space=vmem, size = 0x20000, scoped, tag = 'scratch operand']
  %s0 = inlined_call_operand.vmem [shape: bf16[512,256], index: 0, kind: input, shape index: {}]
  %s1 = inlined_call_operand.vmem [shape: bf16[256,128], index: 1, kind: input, shape index: {}]
  %s2 = inlined_call_operand.vmem [shape: f32[1,128], index: 2, kind: input, shape index: {}]
  %s3 = inlined_call_operand.vmem [shape: f32[512,128], index: 3, kind: output, shape index: {}]
  %s4 = sld [smem:[#allocation0]]
  $region53: #{resnet_forward.6} parent=0
    _
  %s6 = ssub.s32 1, %s4
  %s7 = scalar_select 0, %s6, %s4
  loop: start=0, step=1, limit=4
  $region2: #{resnet_forward.6} parent=0 // loop_pre_header
    _
  $region3: #{resnet_forward.6} parent=0 // loop_header
    %s9 = sphi 0, %s13
    %p10 = scmp.ge.s32.totalorder %s9, 4
    %s16 = sphi 0, %s35
    %s17 = sphi 0, %s31
    %s18 = sphi 0, %s27
    %s19 = sphi 0, %s16
    %s20 = sphi 0, %s17
    %s21 = sphi 0, %s18
    %s22 = sphi 0, %s19
    %s23 = sphi 0, %s20
    %s24 = sphi 0, %s21
    %s40 = sphi 0, %s42
    %s43 = sphi 0, %s40
    %s44 = sphi 0, %s43
    %s60 = sphi 0, %s44
    %s68 = sphi 0, %s70
    %s71 = sphi 0, %s68
    %s72 = sphi 0, %s71
    %s88 = sphi 0, %s72
    %s94 = sphi 0, %s96
    %s97 = sphi 0, %s94
    %s98 = sphi 0, %s97
    %s114 = sphi 0, %s98
    %s122 = sphi 0, %s124
    %s125 = sphi 0, %s122
    %s126 = sphi 0, %s125
    %s142 = sphi 0, %s126
  $region4: #{resnet_forward.6} parent=0 // loop_header_branch
    %12 = sbr.rel (%p10) target = $region8
  $region5: #{resnet_forward.6} parent=0 // loop_body
    %s14 = ssub.s32 %s9, 1
    %s15 = ssub.s32 %s9, 2
    %s25 = sadd.s32 1, %s18
    %p26 = scmp.ge.s32.totalorder %s25, 1
    %s27 = scalar_select %p26, 0, %s25
    %s28 = sadd.s32 1, %s17
    %s29 = scalar_select %p26, %s28, %s17
    %p30 = scmp.ge.s32.totalorder %s29, 1
    %s31 = scalar_select %p30, 0, %s29
    %s32 = sadd.s32 1, %s16
    %s33 = scalar_select %p30, %s32, %s16
    %p34 = scmp.ge.s32.totalorder %s33, 2
    %s35 = scalar_select %p34, 0, %s33
    %s36 = ssub.s32 %s16, %s35
    %s37 = ssub.s32 %s18, %s27
    %s38 = sor.u32 %s36, %s37
    %p39 = scmp.eq.s32.totalorder %s38, 0
    %s41 = sadd.s32 %s40, 1
    %s42 = scalar_select %p39, %s40, %s41
    %p45 = pneg %p39
    %p46 = scmp.eq.s32.totalorder %s9, 1
    %p47 = por %p45, %p46
    %p48 = scmp.ne.s32.totalorder %s40, %s43
    %p49 = scmp.eq.s32.totalorder %s9, 0
    %p50 = por %p48, %p49
    %p51 = scmp.ne.s32.totalorder %s40, %s43
    %p52 = scmp.eq.s32.totalorder %s14, 1
    %p53 = por %p51, %p52
    %p54 = scmp.ne.s32.totalorder %s43, %s44
    %p55 = scmp.eq.s32.totalorder %s14, 0
    %p56 = por %p54, %p55
    %p57 = scmp.ne.s32.totalorder %s43, %s44
    %p58 = scmp.eq.s32.totalorder %s15, 1
    %p59 = por %p57, %p58
    %p61 = scmp.ne.s32.totalorder %s44, %s60
    %p62 = scmp.eq.s32.totalorder %s15, 0
    %p63 = por %p61, %p62
    %s64 = ssub.s32 %s18, %s27
    %s65 = ssub.s32 %s17, %s31
    %s66 = sor.u32 %s64, %s65
    %p67 = scmp.eq.s32.totalorder %s66, 0
    %s69 = sadd.s32 %s68, 1
    %s70 = scalar_select %p67, %s68, %s69
    %p73 = pneg %p67
    %p74 = scmp.eq.s32.totalorder %s9, 1
    %p75 = por %p73, %p74
    %p76 = scmp.ne.s32.totalorder %s68, %s71
    %p77 = scmp.eq.s32.totalorder %s9, 0
    %p78 = por %p76, %p77
    %p79 = scmp.ne.s32.totalorder %s68, %s71
    %p80 = scmp.eq.s32.totalorder %s14, 1
    %p81 = por %p79, %p80
    %p82 = scmp.ne.s32.totalorder %s71, %s72
    %p83 = scmp.eq.s32.totalorder %s14, 0
    %p84 = por %p82, %p83
    %p85 = scmp.ne.s32.totalorder %s71, %s72
    %p86 = scmp.eq.s32.totalorder %s15, 1
    %p87 = por %p85, %p86
    %p89 = scmp.ne.s32.totalorder %s72, %s88
    %p90 = scmp.eq.s32.totalorder %s15, 0
    %p91 = por %p89, %p90
    %s92 = ssub.s32 %s17, %s31
    %p93 = scmp.eq.s32.totalorder %s92, 0
    %s95 = sadd.s32 %s94, 1
    %s96 = scalar_select %p93, %s94, %s95
    %p99 = pneg %p93
    %p100 = scmp.eq.s32.totalorder %s9, 1
    %p101 = por %p99, %p100
    %p102 = scmp.ne.s32.totalorder %s94, %s97
    %p103 = scmp.eq.s32.totalorder %s9, 0
    %p104 = por %p102, %p103
    %p105 = scmp.ne.s32.totalorder %s94, %s97
    %p106 = scmp.eq.s32.totalorder %s14, 1
    %p107 = por %p105, %p106
    %p108 = scmp.ne.s32.totalorder %s97, %s98
    %p109 = scmp.eq.s32.totalorder %s14, 0
    %p110 = por %p108, %p109
    %p111 = scmp.ne.s32.totalorder %s97, %s98
    %p112 = scmp.eq.s32.totalorder %s15, 1
    %p113 = por %p111, %p112
    %p115 = scmp.ne.s32.totalorder %s98, %s114
    %p116 = scmp.eq.s32.totalorder %s15, 0
    %p117 = por %p115, %p116
    %s118 = ssub.s32 %s16, %s35
    %s119 = ssub.s32 %s17, %s31
    %s120 = sor.u32 %s118, %s119
    %p121 = scmp.eq.s32.totalorder %s120, 0
    %s123 = sadd.s32 %s122, 1
    %s124 = scalar_select %p121, %s122, %s123
    %p127 = pneg %p121
    %p128 = scmp.eq.s32.totalorder %s9, 1
    %p129 = por %p127, %p128
    %p130 = scmp.ne.s32.totalorder %s122, %s125
    %p131 = scmp.eq.s32.totalorder %s9, 0
    %p132 = por %p130, %p131
    %p133 = scmp.ne.s32.totalorder %s122, %s125
    %p134 = scmp.eq.s32.totalorder %s14, 1
    %p135 = por %p133, %p134
    %p136 = scmp.ne.s32.totalorder %s125, %s126
    %p137 = scmp.eq.s32.totalorder %s14, 0
    %p138 = por %p136, %p137
    %p139 = scmp.ne.s32.totalorder %s125, %s126
    %p140 = scmp.eq.s32.totalorder %s15, 1
    %p141 = por %p139, %p140
    %p143 = scmp.ne.s32.totalorder %s126, %s142
    %p144 = scmp.eq.s32.totalorder %s15, 0
    %p145 = por %p143, %p144
    %p146 = scmp.le.s32.totalorder 1, %s9
    %p147 = scmp.lt.s32.totalorder %s9, 3
    %p148 = pnand %p146, %p147
    %p149 = pneg %p148
    // Predicated region
    $region9: #{resnet_forward.6} parent=5 // pred_check
      _
    $region10: #{resnet_forward.6} parent=5 // pred_check_branch
      %151 = sbr.rel (%p148) target = $region12
    $region11: #{resnet_forward.6} parent=5 // pred_region
      %s152 = ssub.s32 %s9, 1
      // Predicated region
      $region13: #{resnet_forward.6} parent=11 // pred_check
        %p153 = pneg %p84
      $region14: #{resnet_forward.6} parent=11 // pred_check_branch
        %155 = sbr.rel (%p153) target = $region16
      $region15: #{resnet_forward.6} parent=11 // pred_region
        %s156 = smul.u32 32, %s21
        %p157 = scmp.lt.s32.totalorder %s156, 31
        %s158 = scalar_select %p157, %s156, 31
        %p159 = scmp.lt.s32.totalorder %s20, 0
        %s160 = scalar_select %p159, %s20, 0
        %s161 = sadd.s32 %s160, %s158
        %s162 = smul.addr %s161, 4
        %s163 = scalar_lea.vmem %s1, %s162
        %s164 = smul.u32 32, %s21
      $region16: #{resnet_forward.6} parent=11 // pred_fallthru
        _
      // Predicated region
      $region17: #{resnet_forward.6} parent=11 // pred_check
        %p165 = pneg %p110
      $region18: #{resnet_forward.6} parent=11 // pred_check_branch
        %167 = sbr.rel (%p165) target = $region20
      $region19: #{resnet_forward.6} parent=11 // pred_region
        %p168 = scmp.lt.s32.totalorder %s20, 0
        %s169 = scalar_select %p168, %s20, 0
        %s170 = scalar_lea.vmem %s2, %s169
      $region20: #{resnet_forward.6} parent=11 // pred_fallthru
        _
    $region12: #{resnet_forward.6} parent=5 // pred_fallthru
      _
    %p171 = scmp.lt.s32.totalorder %s9, 2
    // Predicated region
    $region21: #{resnet_forward.6} parent=5 // pred_check
      %p172 = pneg %p171
    $region22: #{resnet_forward.6} parent=5 // pred_check_branch
      %174 = sbr.rel (%p172) target = $region24
    $region23: #{resnet_forward.6} parent=5 // pred_region
      // Predicated region
      $region25: #{resnet_forward.6} parent=23 // pred_check
        %p175 = pneg %p50
      $region26: #{resnet_forward.6} parent=23 // pred_check_branch
        %177 = sbr.rel (%p175) target = $region28
      $region27: #{resnet_forward.6} parent=23 // pred_region
        %s178 = smul.u32 32, %s16
        %s179 = smul.u32 2, %s18
        %p180 = scmp.lt.s32.totalorder %s178, 63
        %s181 = scalar_select %p180, %s178, 63
        %p182 = scmp.lt.s32.totalorder %s179, 1
        %s183 = scalar_select %p182, %s179, 1
        %s184 = smul.addr %s181, 2
        %s185 = sadd.s32 %s183, %s184
        %s186 = smul.addr %s185, 4
        %s187 = scalar_lea.vmem %s0, %s186
        %s188 = smul.u32 32, %s16
        %s189 = smul.u32 2, %s18
      $region28: #{resnet_forward.6} parent=23 // pred_fallthru
        _
    $region24: #{resnet_forward.6} parent=5 // pred_fallthru
      _
    %p190 = scmp.le.s32.totalorder 1, %s9
    %p191 = scmp.lt.s32.totalorder %s9, 3
    %p192 = pnand %p190, %p191
    %p193 = pneg %p192
    // Predicated region
    $region29: #{resnet_forward.6} parent=5 // pred_check
      _
    $region30: #{resnet_forward.6} parent=5 // pred_check_branch
      %195 = sbr.rel (%p192) target = $region32
    $region31: #{resnet_forward.6} parent=5 // pred_region
      %s196 = ssub.s32 %s9, 1
      %s197 = smul.u32 32, %s19
      %s198 = smul.u32 2, %s21
      %p199 = scmp.lt.s32.totalorder %s197, 63
      %s200 = scalar_select %p199, %s197, 63
      %p201 = scmp.lt.s32.totalorder %s198, 1
      %s202 = scalar_select %p201, %s198, 1
      %s203 = smul.addr %s200, 2
      %s204 = sadd.s32 %s202, %s203
      %s205 = smul.addr %s204, 4
      %s206 = scalar_lea.vmem %s0, %s205
      %p207 = pneg %p56
      %p208 = pneg %p53
      %s209 = smul.u32 32, %s21
      %p210 = scmp.lt.s32.totalorder %s209, 31
      %s211 = scalar_select %p210, %s209, 31
      %p212 = scmp.lt.s32.totalorder %s20, 0
      %s213 = scalar_select %p212, %s20, 0
      %s214 = sadd.s32 %s213, %s211
      %s215 = smul.addr %s214, 4
      %s216 = scalar_lea.vmem %s1, %s215
      %p217 = pneg %p84
      %p218 = pneg %p81
      %p219 = scmp.lt.s32.totalorder %s20, 0
      %s220 = scalar_select %p219, %s20, 0
      %s221 = scalar_lea.vmem %s2, %s220
      %p222 = pneg %p110
      %p223 = pneg %p107
      %p224 = pneg %p138
      %p225 = pneg %p135
      %s226 = smul.u32 32, %s19
      %p227 = scmp.lt.s32.totalorder %s226, 63
      %s228 = scalar_select %p227, %s226, 63
      %p229 = scmp.lt.s32.totalorder %s20, 0
      %s230 = scalar_select %p229, %s20, 0
      %s231 = sadd.s32 %s230, %s228
      %s232 = smul.addr %s231, 8
      %s233 = scalar_lea.vmem %s3, %s232
      %s234 = smul.u32 32, %s19
      %s235 = smul.u32 2, %s21
      %p236 = scmp.lt.s32.totalorder %s234, 63
      %s237 = scalar_select %p236, %s234, 63
      %p238 = scmp.lt.s32.totalorder %s235, 1
      %s239 = scalar_select %p238, %s235, 1
      %s240 = smul.addr %s237, 2
      %s241 = sadd.s32 %s239, %s240
      %s242 = smul.addr %s241, 4
      %s243 = scalar_lea.vmem %s0, %s242
      %s244 = smul.u32 32, %s19
      %s245 = smul.u32 2, %s21
      %s246 = smul.u32 32, %s21
      %p247 = scmp.lt.s32.totalorder %s246, 31
      %s248 = scalar_select %p247, %s246, 31
      %p249 = scmp.lt.s32.totalorder %s20, 0
      %s250 = scalar_select %p249, %s20, 0
      %s251 = sadd.s32 %s250, %s248
      %s252 = smul.addr %s251, 4
      %s253 = scalar_lea.vmem %s1, %s252
      %s254 = smul.u32 32, %s21
      %p255 = scmp.lt.s32.totalorder %s20, 0
      %s256 = scalar_select %p255, %s20, 0
      %s257 = scalar_lea.vmem %s2, %s256
      %s258 = smul.u32 32, %s19
      %p259 = scmp.lt.s32.totalorder %s258, 63
      %s260 = scalar_select %p259, %s258, 63
      %p261 = scmp.lt.s32.totalorder %s20, 0
      %s262 = scalar_select %p261, %s20, 0
      %s263 = sadd.s32 %s262, %s260
      %s264 = smul.addr %s263, 8
      %s265 = scalar_lea.vmem %s3, %s264
      %s266 = smul.u32 32, %s19
      %p268 = scmp.eq.s32.totalorder %s21, 0
      // Predicated region
      $region33: #{resnet_forward.6} parent=31 // pred_check
        %p269 = pneg %p268
      $region34: #{resnet_forward.6} parent=31 // pred_check_branch
        %271 = sbr.rel (%p269) target = $region36
      $region35: #{resnet_forward.6} parent=31 // pred_region
        %272 = vst [vmem:[#allocation2] sm:$0xff] 0.0
        %273 = vst [vmem:[#allocation2 + $0x8] sm:$0xff] 0.0
        %274 = vst [vmem:[#allocation2 + $0x10] sm:$0xff] 0.0
        %275 = vst [vmem:[#allocation2 + $0x18] sm:$0xff] 0.0
        %276 = vst [vmem:[#allocation2 + $0x20] sm:$0xff] 0.0
        %277 = vst [vmem:[#allocation2 + $0x28] sm:$0xff] 0.0
        %278 = vst [vmem:[#allocation2 + $0x30] sm:$0xff] 0.0
        %279 = vst [vmem:[#allocation2 + $0x38] sm:$0xff] 0.0
        %280 = vst [vmem:[#allocation2 + $0x40] sm:$0xff] 0.0
        %281 = vst [vmem:[#allocation2 + $0x48] sm:$0xff] 0.0
        %282 = vst [vmem:[#allocation2 + $0x50] sm:$0xff] 0.0
        %283 = vst [vmem:[#allocation2 + $0x58] sm:$0xff] 0.0
        %284 = vst [vmem:[#allocation2 + $0x60] sm:$0xff] 0.0
        %285 = vst [vmem:[#allocation2 + $0x68] sm:$0xff] 0.0
        %286 = vst [vmem:[#allocation2 + $0x70] sm:$0xff] 0.0
        %287 = vst [vmem:[#allocation2 + $0x78] sm:$0xff] 0.0
        %288 = vst [vmem:[#allocation2 + $0x80] sm:$0xff] 0.0
        %289 = vst [vmem:[#allocation2 + $0x88] sm:$0xff] 0.0
        %290 = vst [vmem:[#allocation2 + $0x90] sm:$0xff] 0.0
        %291 = vst [vmem:[#allocation2 + $0x98] sm:$0xff] 0.0
        %292 = vst [vmem:[#allocation2 + $0xa0] sm:$0xff] 0.0
        %293 = vst [vmem:[#allocation2 + $0xa8] sm:$0xff] 0.0
        %294 = vst [vmem:[#allocation2 + $0xb0] sm:$0xff] 0.0
        %295 = vst [vmem:[#allocation2 + $0xb8] sm:$0xff] 0.0
        %296 = vst [vmem:[#allocation2 + $0xc0] sm:$0xff] 0.0
        %297 = vst [vmem:[#allocation2 + $0xc8] sm:$0xff] 0.0
        %298 = vst [vmem:[#allocation2 + $0xd0] sm:$0xff] 0.0
        %299 = vst [vmem:[#allocation2 + $0xd8] sm:$0xff] 0.0
        %300 = vst [vmem:[#allocation2 + $0xe0] sm:$0xff] 0.0
        %301 = vst [vmem:[#allocation2 + $0xe8] sm:$0xff] 0.0
        %302 = vst [vmem:[#allocation2 + $0xf0] sm:$0xff] 0.0
        %303 = vst [vmem:[#allocation2 + $0xf8] sm:$0xff] 0.0
      $region36: #{resnet_forward.6} parent=31 // pred_fallthru
        _
      %v304 = vld [vmem:[#allocation2] sm:$0xff]
      %v305 = vld [vmem:[#allocation2 + $0x8] sm:$0xff]
      %v306 = vld [vmem:[#allocation2 + $0x10] sm:$0xff]
      %v307 = vld [vmem:[#allocation2 + $0x18] sm:$0xff]
      %v308 = vld [vmem:[#allocation2 + $0x20] sm:$0xff]
      %v309 = vld [vmem:[#allocation2 + $0x28] sm:$0xff]
      %v310 = vld [vmem:[#allocation2 + $0x30] sm:$0xff]
      %v311 = vld [vmem:[#allocation2 + $0x38] sm:$0xff]
      %v312 = vld [vmem:[#allocation2 + $0x40] sm:$0xff]
      %v313 = vld [vmem:[#allocation2 + $0x48] sm:$0xff]
      %v314 = vld [vmem:[#allocation2 + $0x50] sm:$0xff]
      %v315 = vld [vmem:[#allocation2 + $0x58] sm:$0xff]
      %v316 = vld [vmem:[#allocation2 + $0x60] sm:$0xff]
      %v317 = vld [vmem:[#allocation2 + $0x68] sm:$0xff]
      %v318 = vld [vmem:[#allocation2 + $0x70] sm:$0xff]
      %v319 = vld [vmem:[#allocation2 + $0x78] sm:$0xff]
      %v320 = vld [vmem:[#allocation2 + $0x80] sm:$0xff]
      %v321 = vld [vmem:[#allocation2 + $0x88] sm:$0xff]
      %v322 = vld [vmem:[#allocation2 + $0x90] sm:$0xff]
      %v323 = vld [vmem:[#allocation2 + $0x98] sm:$0xff]
      %v324 = vld [vmem:[#allocation2 + $0xa0] sm:$0xff]
      %v325 = vld [vmem:[#allocation2 + $0xa8] sm:$0xff]
      %v326 = vld [vmem:[#allocation2 + $0xb0] sm:$0xff]
      %v327 = vld [vmem:[#allocation2 + $0xb8] sm:$0xff]
      %v328 = vld [vmem:[#allocation2 + $0xc0] sm:$0xff]
      %v329 = vld [vmem:[#allocation2 + $0xc8] sm:$0xff]
      %v330 = vld [vmem:[#allocation2 + $0xd0] sm:$0xff]
      %v331 = vld [vmem:[#allocation2 + $0xd8] sm:$0xff]
      %v332 = vld [vmem:[#allocation2 + $0xe0] sm:$0xff]
      %v333 = vld [vmem:[#allocation2 + $0xe8] sm:$0xff]
      %v334 = vld [vmem:[#allocation2 + $0xf0] sm:$0xff]
      %v335 = vld [vmem:[#allocation2 + $0xf8] sm:$0xff]
      %v336 = vld [vmem:[%s243] sm:$0xff]
      %v337 = vld [vmem:[%s243 + $0x8] sm:$0xff]
      %v338 = vld [vmem:[%s243 + $0x10] sm:$0xff]
      %v339 = vld [vmem:[%s243 + $0x18] sm:$0xff]
      %v340 = vld [vmem:[%s243 + $0x20] sm:$0xff]
      %v341 = vld [vmem:[%s243 + $0x28] sm:$0xff]
      %v342 = vld [vmem:[%s243 + $0x30] sm:$0xff]
      %v343 = vld [vmem:[%s243 + $0x38] sm:$0xff]
      %v344 = vld [vmem:[%s243 + $0x40] sm:$0xff]
      %v345 = vld [vmem:[%s243 + $0x48] sm:$0xff]
      %v346 = vld [vmem:[%s243 + $0x50] sm:$0xff]
      %v347 = vld [vmem:[%s243 + $0x58] sm:$0xff]
      %v348 = vld [vmem:[%s243 + $0x60] sm:$0xff]
      %v349 = vld [vmem:[%s243 + $0x68] sm:$0xff]
      %v350 = vld [vmem:[%s243 + $0x70] sm:$0xff]
      %v351 = vld [vmem:[%s243 + $0x78] sm:$0xff]
      %v352 = vld [vmem:[%s243 + $0x80] sm:$0xff]
      %v353 = vld [vmem:[%s243 + $0x88] sm:$0xff]
      %v354 = vld [vmem:[%s243 + $0x90] sm:$0xff]
      %v355 = vld [vmem:[%s243 + $0x98] sm:$0xff]
      %v356 = vld [vmem:[%s243 + $0xa0] sm:$0xff]
      %v357 = vld [vmem:[%s243 + $0xa8] sm:$0xff]
      %v358 = vld [vmem:[%s243 + $0xb0] sm:$0xff]
      %v359 = vld [vmem:[%s243 + $0xb8] sm:$0xff]
      %v360 = vld [vmem:[%s243 + $0xc0] sm:$0xff]
      %v361 = vld [vmem:[%s243 + $0xc8] sm:$0xff]
      %v362 = vld [vmem:[%s243 + $0xd0] sm:$0xff]
      %v363 = vld [vmem:[%s243 + $0xd8] sm:$0xff]
      %v364 = vld [vmem:[%s243 + $0xe0] sm:$0xff]
      %v365 = vld [vmem:[%s243 + $0xe8] sm:$0xff]
      %v366 = vld [vmem:[%s243 + $0xf0] sm:$0xff]
      %v367 = vld [vmem:[%s243 + $0xf8] sm:$0xff]
      %v368 = vld [vmem:[%s253] sm:$0xf]
      %v369 = vld [vmem:[%s253 + $0x4] sm:$0xf]
      %v370 = vld [vmem:[%s253 + $0x8] sm:$0xf]
      %v371 = vld [vmem:[%s253 + $0xc] sm:$0xf]
      %v372 = vld [vmem:[%s253 + $0x10] sm:$0xf]
      %v373 = vld [vmem:[%s253 + $0x14] sm:$0xf]
      %v374 = vld [vmem:[%s253 + $0x18] sm:$0xf]
      %v375 = vld [vmem:[%s253 + $0x1c] sm:$0xf]
      %v376 = vld [vmem:[%s253 + $0x20] sm:$0xf]
      %v377 = vld [vmem:[%s253 + $0x24] sm:$0xf]
      %v378 = vld [vmem:[%s253 + $0x28] sm:$0xf]
      %v379 = vld [vmem:[%s253 + $0x2c] sm:$0xf]
      %v380 = vld [vmem:[%s253 + $0x30] sm:$0xf]
      %v381 = vld [vmem:[%s253 + $0x34] sm:$0xf]
      %v382 = vld [vmem:[%s253 + $0x38] sm:$0xf]
      %v383 = vld [vmem:[%s253 + $0x3c] sm:$0xf]
      %v384 = vld [vmem:[%s253 + $0x40] sm:$0xf]
      %v385 = vld [vmem:[%s253 + $0x44] sm:$0xf]
      %v386 = vld [vmem:[%s253 + $0x48] sm:$0xf]
      %v387 = vld [vmem:[%s253 + $0x4c] sm:$0xf]
      %v388 = vld [vmem:[%s253 + $0x50] sm:$0xf]
      %v389 = vld [vmem:[%s253 + $0x54] sm:$0xf]
      %v390 = vld [vmem:[%s253 + $0x58] sm:$0xf]
      %v391 = vld [vmem:[%s253 + $0x5c] sm:$0xf]
      %v392 = vld [vmem:[%s253 + $0x60] sm:$0xf]
      %v393 = vld [vmem:[%s253 + $0x64] sm:$0xf]
      %v394 = vld [vmem:[%s253 + $0x68] sm:$0xf]
      %v395 = vld [vmem:[%s253 + $0x6c] sm:$0xf]
      %v396 = vld [vmem:[%s253 + $0x70] sm:$0xf]
      %v397 = vld [vmem:[%s253 + $0x74] sm:$0xf]
      %v398 = vld [vmem:[%s253 + $0x78] sm:$0xf]
      %v399 = vld [vmem:[%s253 + $0x7c] sm:$0xf]
      %v432 = vunpack.c.l.b16 %v336
      %v433 = vunpack.c.h.b16 %v336
      %v434 = vunpack.c.l.b16 %v337
      %v435 = vunpack.c.h.b16 %v337
      %v436 = vunpack.c.l.b16 %v338
      %v437 = vunpack.c.h.b16 %v338
      %v438 = vunpack.c.l.b16 %v339
      %v439 = vunpack.c.h.b16 %v339
      %v440 = vunpack.c.l.b16 %v340
      %v441 = vunpack.c.h.b16 %v340
      %v442 = vunpack.c.l.b16 %v341
      %v443 = vunpack.c.h.b16 %v341
      %v444 = vunpack.c.l.b16 %v342
      %v445 = vunpack.c.h.b16 %v342
      %v446 = vunpack.c.l.b16 %v343
      %v447 = vunpack.c.h.b16 %v343
      %v448 = vunpack.c.l.b16 %v344
      %v449 = vunpack.c.h.b16 %v344
      %v450 = vunpack.c.l.b16 %v345
      %v451 = vunpack.c.h.b16 %v345
      %v452 = vunpack.c.l.b16 %v346
      %v453 = vunpack.c.h.b16 %v346
      %v454 = vunpack.c.l.b16 %v347
      %v455 = vunpack.c.h.b16 %v347
      %v456 = vunpack.c.l.b16 %v348
      %v457 = vunpack.c.h.b16 %v348
      %v458 = vunpack.c.l.b16 %v349
      %v459 = vunpack.c.h.b16 %v349
      %v460 = vunpack.c.l.b16 %v350
      %v461 = vunpack.c.h.b16 %v350
      %v462 = vunpack.c.l.b16 %v351
      %v463 = vunpack.c.h.b16 %v351
      %v464 = vunpack.c.l.b16 %v352
      %v465 = vunpack.c.h.b16 %v352
      %v466 = vunpack.c.l.b16 %v353
      %v467 = vunpack.c.h.b16 %v353
      %v468 = vunpack.c.l.b16 %v354
      %v469 = vunpack.c.h.b16 %v354
      %v470 = vunpack.c.l.b16 %v355
      %v471 = vunpack.c.h.b16 %v355
      %v472 = vunpack.c.l.b16 %v356
      %v473 = vunpack.c.h.b16 %v356
      %v474 = vunpack.c.l.b16 %v357
      %v475 = vunpack.c.h.b16 %v357
      %v476 = vunpack.c.l.b16 %v358
      %v477 = vunpack.c.h.b16 %v358
      %v478 = vunpack.c.l.b16 %v359
      %v479 = vunpack.c.h.b16 %v359
      %v480 = vunpack.c.l.b16 %v360
      %v481 = vunpack.c.h.b16 %v360
      %v482 = vunpack.c.l.b16 %v361
      %v483 = vunpack.c.h.b16 %v361
      %v484 = vunpack.c.l.b16 %v362
      %v485 = vunpack.c.h.b16 %v362
      %v486 = vunpack.c.l.b16 %v363
      %v487 = vunpack.c.h.b16 %v363
      %v488 = vunpack.c.l.b16 %v364
      %v489 = vunpack.c.h.b16 %v364
      %v490 = vunpack.c.l.b16 %v365
      %v491 = vunpack.c.h.b16 %v365
      %v492 = vunpack.c.l.b16 %v366
      %v493 = vunpack.c.h.b16 %v366
      %v494 = vunpack.c.l.b16 %v367
      %v495 = vunpack.c.h.b16 %v367
      %v496 = vpack.c.b16 %v434, %v432
      %v497 = vpack.c.b16 %v435, %v433
      %v498 = vpack.c.b16 %v438, %v436
      %v499 = vpack.c.b16 %v439, %v437
      %v500 = vpack.c.b16 %v442, %v440
      %v501 = vpack.c.b16 %v443, %v441
      %v502 = vpack.c.b16 %v446, %v444
      %v503 = vpack.c.b16 %v447, %v445
      %v504 = vpack.c.b16 %v450, %v448
      %v505 = vpack.c.b16 %v451, %v449
      %v506 = vpack.c.b16 %v454, %v452
      %v507 = vpack.c.b16 %v455, %v453
      %v508 = vpack.c.b16 %v458, %v456
      %v509 = vpack.c.b16 %v459, %v457
      %v510 = vpack.c.b16 %v462, %v460
      %v511 = vpack.c.b16 %v463, %v461
      %v512 = vpack.c.b16 %v466, %v464
      %v513 = vpack.c.b16 %v467, %v465
      %v514 = vpack.c.b16 %v470, %v468
      %v515 = vpack.c.b16 %v471, %v469
      %v516 = vpack.c.b16 %v474, %v472
      %v517 = vpack.c.b16 %v475, %v473
      %v518 = vpack.c.b16 %v478, %v476
      %v519 = vpack.c.b16 %v479, %v477
      %v520 = vpack.c.b16 %v482, %v480
      %v521 = vpack.c.b16 %v483, %v481
      %v522 = vpack.c.b16 %v486, %v484
      %v523 = vpack.c.b16 %v487, %v485
      %v524 = vpack.c.b16 %v490, %v488
      %v525 = vpack.c.b16 %v491, %v489
      %v526 = vpack.c.b16 %v494, %v492
      %v527 = vpack.c.b16 %v495, %v493
      %v592 = vunpack.c.l.b16 %v368
      %v593 = vunpack.c.l.b16 %v369
      %v594 = vunpack.c.l.b16 %v370
      %v595 = vunpack.c.l.b16 %v371
      %v596 = vunpack.c.l.b16 %v372
      %v597 = vunpack.c.l.b16 %v373
      %v598 = vunpack.c.l.b16 %v374
      %v599 = vunpack.c.l.b16 %v375
      %v600 = vunpack.c.l.b16 %v376
      %v601 = vunpack.c.l.b16 %v377
      %v602 = vunpack.c.l.b16 %v378
      %v603 = vunpack.c.l.b16 %v379
      %v604 = vunpack.c.l.b16 %v380
      %v605 = vunpack.c.l.b16 %v381
      %v606 = vunpack.c.l.b16 %v382
      %v607 = vunpack.c.l.b16 %v383
      %v608 = vunpack.c.l.b16 %v384
      %v609 = vunpack.c.l.b16 %v385
      %v610 = vunpack.c.l.b16 %v386
      %v611 = vunpack.c.l.b16 %v387
      %v612 = vunpack.c.l.b16 %v388
      %v613 = vunpack.c.l.b16 %v389
      %v614 = vunpack.c.l.b16 %v390
      %v615 = vunpack.c.l.b16 %v391
      %v616 = vunpack.c.l.b16 %v392
      %v617 = vunpack.c.l.b16 %v393
      %v618 = vunpack.c.l.b16 %v394
      %v619 = vunpack.c.l.b16 %v395
      %v620 = vunpack.c.l.b16 %v396
      %v621 = vunpack.c.l.b16 %v397
      %v622 = vunpack.c.l.b16 %v398
      %v623 = vunpack.c.l.b16 %v399
      %v624 = vpack.c.b16 %v593, %v592
      %v625 = vpack.c.b16 %v595, %v594
      %v626 = vpack.c.b16 %v597, %v596
      %v627 = vpack.c.b16 %v599, %v598
      %v628 = vpack.c.b16 %v601, %v600
      %v629 = vpack.c.b16 %v603, %v602
      %v630 = vpack.c.b16 %v605, %v604
      %v631 = vpack.c.b16 %v607, %v606
      %v632 = vpack.c.b16 %v609, %v608
      %v633 = vpack.c.b16 %v611, %v610
      %v634 = vpack.c.b16 %v613, %v612
      %v635 = vpack.c.b16 %v615, %v614
      %v636 = vpack.c.b16 %v617, %v616
      %v637 = vpack.c.b16 %v619, %v618
      %v638 = vpack.c.b16 %v621, %v620
      %v639 = vpack.c.b16 %v623, %v622
      %656 = vmatprep.subr.bf16.mxu0 0
      %657 = vmatpush1.bf16.msra.mxu0 %v631
      %658 = vmatprep.subr.bf16.mxu0 0
      %659 = vmatpush1.bf16.msra.mxu0 %v630
      %660 = vmatprep.subr.bf16.mxu0 0
      %661 = vmatpush1.bf16.msra.mxu0 %v629
      %662 = vmatprep.subr.bf16.mxu0 0
      %663 = vmatpush1.bf16.msra.mxu0 %v628
      %664 = vmatprep.subr.bf16.mxu0 0
      %665 = vmatpush1.bf16.msra.mxu0 %v627
      %666 = vmatprep.subr.bf16.mxu0 0
      %667 = vmatpush1.bf16.msra.mxu0 %v626
      %668 = vmatprep.subr.bf16.mxu0 0
      %669 = vmatpush1.bf16.msra.mxu0 %v625
      %670 = vmatprep.subr.bf16.mxu0 0
      %671 = vmatpush1.bf16.msra.mxu0 %v624
      %672 = vmatprep.subr.bf16.mxu0 0
      %673 = vmatpush2.bf16.msra.mxu0 %v639
      %674 = vmatprep.subr.bf16.mxu0 0
      %675 = vmatpush2.bf16.msra.mxu0 %v638
      %676 = vmatprep.subr.bf16.mxu0 0
      %677 = vmatpush2.bf16.msra.mxu0 %v637
      %678 = vmatprep.subr.bf16.mxu0 0
      %679 = vmatpush2.bf16.msra.mxu0 %v636
      %680 = vmatprep.subr.bf16.mxu0 0
      %681 = vmatpush2.bf16.msra.mxu0 %v635
      %682 = vmatprep.subr.bf16.mxu0 0
      %683 = vmatpush2.bf16.msra.mxu0 %v634
      %684 = vmatprep.subr.bf16.mxu0 0
      %685 = vmatpush2.bf16.msra.mxu0 %v633
      %686 = vmatprep.subr.bf16.mxu0 0
      %687 = vmatpush2.bf16.msra.mxu0 %v632
      %688 = vmatprep.mubr.bf16.mxu0 %v497
      %689 = vmatmul.mubr.bf16.gmra.mxu0 %v496
      %v690 = vpop.f32.mrf.mxu0
      %v691 = vadd.f32 0.0, %v690
      %v692 = vpop.f32.mrf.mxu0
      %v693 = vpop.f32.mrf.mxu0
      %v694 = vadd.f32 0.0, %v693
      %v695 = vpop.f32.mrf.mxu0
      %696 = vmatprep.mubr.bf16.mxu0 %v499
      %697 = vmatmul.mubr.bf16.gmra.mxu0 %v498
      %v698 = vpop.f32.mrf.mxu0
      %v699 = vadd.f32 0.0, %v698
      %v700 = vpop.f32.mrf.mxu0
      %v701 = vpop.f32.mrf.mxu0
      %v702 = vadd.f32 0.0, %v701
      %v703 = vpop.f32.mrf.mxu0
      %704 = vmatprep.mubr.bf16.mxu0 %v501
      %705 = vmatmul.mubr.bf16.gmra.mxu0 %v500
      %v706 = vpop.f32.mrf.mxu0
      %v707 = vadd.f32 0.0, %v706
      %v708 = vpop.f32.mrf.mxu0
      %v709 = vpop.f32.mrf.mxu0
      %v710 = vadd.f32 0.0, %v709
      %v711 = vpop.f32.mrf.mxu0
      %712 = vmatprep.mubr.bf16.mxu0 %v503
      %713 = vmatmul.mubr.bf16.gmra.mxu0 %v502
      %v714 = vpop.f32.mrf.mxu0
      %v715 = vadd.f32 0.0, %v714
      %v716 = vpop.f32.mrf.mxu0
      %v717 = vpop.f32.mrf.mxu0
      %v718 = vadd.f32 0.0, %v717
      %v719 = vpop.f32.mrf.mxu0
      %720 = vmatprep.mubr.bf16.mxu0 %v505
      %721 = vmatmul.mubr.bf16.gmra.mxu0 %v504
      %v722 = vpop.f32.mrf.mxu0
      %v723 = vadd.f32 0.0, %v722
      %v724 = vpop.f32.mrf.mxu0
      %v725 = vpop.f32.mrf.mxu0
      %v726 = vadd.f32 0.0, %v725
      %v727 = vpop.f32.mrf.mxu0
      %728 = vmatprep.mubr.bf16.mxu0 %v507
      %729 = vmatmul.mubr.bf16.gmra.mxu0 %v506
      %v730 = vpop.f32.mrf.mxu0
      %v731 = vadd.f32 0.0, %v730
      %v732 = vpop.f32.mrf.mxu0
      %v733 = vpop.f32.mrf.mxu0
      %v734 = vadd.f32 0.0, %v733
      %v735 = vpop.f32.mrf.mxu0
      %736 = vmatprep.mubr.bf16.mxu0 %v509
      %737 = vmatmul.mubr.bf16.gmra.mxu0 %v508
      %v738 = vpop.f32.mrf.mxu0
      %v739 = vadd.f32 0.0, %v738
      %v740 = vpop.f32.mrf.mxu0
      %v741 = vpop.f32.mrf.mxu0
      %v742 = vadd.f32 0.0, %v741
      %v743 = vpop.f32.mrf.mxu0
      %744 = vmatprep.mubr.bf16.mxu0 %v511
      %745 = vmatmul.mubr.bf16.gmra.mxu0 %v510
      %v746 = vpop.f32.mrf.mxu0
      %v747 = vadd.f32 0.0, %v746
      %v748 = vpop.f32.mrf.mxu0
      %v749 = vpop.f32.mrf.mxu0
      %v750 = vadd.f32 0.0, %v749
      %v751 = vpop.f32.mrf.mxu0
      %752 = vmatprep.mubr.bf16.mxu0 %v513
      %753 = vmatmul.mubr.bf16.gmra.mxu0 %v512
      %v754 = vpop.f32.mrf.mxu0
      %v755 = vadd.f32 0.0, %v754
      %v756 = vpop.f32.mrf.mxu0
      %v757 = vpop.f32.mrf.mxu0
      %v758 = vadd.f32 0.0, %v757
      %v759 = vpop.f32.mrf.mxu0
      %760 = vmatprep.mubr.bf16.mxu0 %v515
      %761 = vmatmul.mubr.bf16.gmra.mxu0 %v514
      %v762 = vpop.f32.mrf.mxu0
      %v763 = vadd.f32 0.0, %v762
      %v764 = vpop.f32.mrf.mxu0
      %v765 = vpop.f32.mrf.mxu0
      %v766 = vadd.f32 0.0, %v765
      %v767 = vpop.f32.mrf.mxu0
      %768 = vmatprep.mubr.bf16.mxu0 %v517
      %769 = vmatmul.mubr.bf16.gmra.mxu0 %v516
      %v770 = vpop.f32.mrf.mxu0
      %v771 = vadd.f32 0.0, %v770
      %v772 = vpop.f32.mrf.mxu0
      %v773 = vpop.f32.mrf.mxu0
      %v774 = vadd.f32 0.0, %v773
      %v775 = vpop.f32.mrf.mxu0
      %776 = vmatprep.mubr.bf16.mxu0 %v519
      %777 = vmatmul.mubr.bf16.gmra.mxu0 %v518
      %v778 = vpop.f32.mrf.mxu0
      %v779 = vadd.f32 0.0, %v778
      %v780 = vpop.f32.mrf.mxu0
      %v781 = vpop.f32.mrf.mxu0
      %v782 = vadd.f32 0.0, %v781
      %v783 = vpop.f32.mrf.mxu0
      %784 = vmatprep.mubr.bf16.mxu0 %v521
      %785 = vmatmul.mubr.bf16.gmra.mxu0 %v520
      %v786 = vpop.f32.mrf.mxu0
      %v787 = vadd.f32 0.0, %v786
      %v788 = vpop.f32.mrf.mxu0
      %v789 = vpop.f32.mrf.mxu0
      %v790 = vadd.f32 0.0, %v789
      %v791 = vpop.f32.mrf.mxu0
      %792 = vmatprep.mubr.bf16.mxu0 %v523
      %793 = vmatmul.mubr.bf16.gmra.mxu0 %v522
      %v794 = vpop.f32.mrf.mxu0
      %v795 = vadd.f32 0.0, %v794
      %v796 = vpop.f32.mrf.mxu0
      %v797 = vpop.f32.mrf.mxu0
      %v798 = vadd.f32 0.0, %v797
      %v799 = vpop.f32.mrf.mxu0
      %800 = vmatprep.mubr.bf16.mxu0 %v525
      %801 = vmatmul.mubr.bf16.gmra.mxu0 %v524
      %v802 = vpop.f32.mrf.mxu0
      %v803 = vadd.f32 0.0, %v802
      %v804 = vpop.f32.mrf.mxu0
      %v805 = vpop.f32.mrf.mxu0
      %v806 = vadd.f32 0.0, %v805
      %v807 = vpop.f32.mrf.mxu0
      %808 = vmatprep.mubr.bf16.mxu0 %v527
      %809 = vmatmul.mubr.bf16.gmra.mxu0 %v526
      %v810 = vpop.f32.mrf.mxu0
      %v811 = vadd.f32 0.0, %v810
      %v812 = vpop.f32.mrf.mxu0
      %v813 = vpop.f32.mrf.mxu0
      %v814 = vadd.f32 0.0, %v813
      %v815 = vpop.f32.mrf.mxu0
      %816 = vdwg.mxu0
      %v817 = vadd.f32 %v304, %v691
      %v818 = vadd.f32 %v305, %v694
      %v819 = vadd.f32 %v306, %v699
      %v820 = vadd.f32 %v307, %v702
      %v821 = vadd.f32 %v308, %v707
      %v822 = vadd.f32 %v309, %v710
      %v823 = vadd.f32 %v310, %v715
      %v824 = vadd.f32 %v311, %v718
      %v825 = vadd.f32 %v312, %v723
      %v826 = vadd.f32 %v313, %v726
      %v827 = vadd.f32 %v314, %v731
      %v828 = vadd.f32 %v315, %v734
      %v829 = vadd.f32 %v316, %v739
      %v830 = vadd.f32 %v317, %v742
      %v831 = vadd.f32 %v318, %v747
      %v832 = vadd.f32 %v319, %v750
      %v833 = vadd.f32 %v320, %v755
      %v834 = vadd.f32 %v321, %v758
      %v835 = vadd.f32 %v322, %v763
      %v836 = vadd.f32 %v323, %v766
      %v837 = vadd.f32 %v324, %v771
      %v838 = vadd.f32 %v325, %v774
      %v839 = vadd.f32 %v326, %v779
      %v840 = vadd.f32 %v327, %v782
      %v841 = vadd.f32 %v328, %v787
      %v842 = vadd.f32 %v329, %v790
      %v843 = vadd.f32 %v330, %v795
      %v844 = vadd.f32 %v331, %v798
      %v845 = vadd.f32 %v332, %v803
      %v846 = vadd.f32 %v333, %v806
      %v847 = vadd.f32 %v334, %v811
      %v848 = vadd.f32 %v335, %v814
      %849 = vst [vmem:[#allocation2] sm:$0xff] %v817
      %850 = vst [vmem:[#allocation2 + $0x8] sm:$0xff] %v818
      %851 = vst [vmem:[#allocation2 + $0x10] sm:$0xff] %v819
      %852 = vst [vmem:[#allocation2 + $0x18] sm:$0xff] %v820
      %853 = vst [vmem:[#allocation2 + $0x20] sm:$0xff] %v821
      %854 = vst [vmem:[#allocation2 + $0x28] sm:$0xff] %v822
      %855 = vst [vmem:[#allocation2 + $0x30] sm:$0xff] %v823
      %856 = vst [vmem:[#allocation2 + $0x38] sm:$0xff] %v824
      %857 = vst [vmem:[#allocation2 + $0x40] sm:$0xff] %v825
      %858 = vst [vmem:[#allocation2 + $0x48] sm:$0xff] %v826
      %859 = vst [vmem:[#allocation2 + $0x50] sm:$0xff] %v827
      %860 = vst [vmem:[#allocation2 + $0x58] sm:$0xff] %v828
      %861 = vst [vmem:[#allocation2 + $0x60] sm:$0xff] %v829
      %862 = vst [vmem:[#allocation2 + $0x68] sm:$0xff] %v830
      %863 = vst [vmem:[#allocation2 + $0x70] sm:$0xff] %v831
      %864 = vst [vmem:[#allocation2 + $0x78] sm:$0xff] %v832
      %865 = vst [vmem:[#allocation2 + $0x80] sm:$0xff] %v833
      %866 = vst [vmem:[#allocation2 + $0x88] sm:$0xff] %v834
      %867 = vst [vmem:[#allocation2 + $0x90] sm:$0xff] %v835
      %868 = vst [vmem:[#allocation2 + $0x98] sm:$0xff] %v836
      %869 = vst [vmem:[#allocation2 + $0xa0] sm:$0xff] %v837
      %870 = vst [vmem:[#allocation2 + $0xa8] sm:$0xff] %v838
      %871 = vst [vmem:[#allocation2 + $0xb0] sm:$0xff] %v839
      %872 = vst [vmem:[#allocation2 + $0xb8] sm:$0xff] %v840
      %873 = vst [vmem:[#allocation2 + $0xc0] sm:$0xff] %v841
      %874 = vst [vmem:[#allocation2 + $0xc8] sm:$0xff] %v842
      %875 = vst [vmem:[#allocation2 + $0xd0] sm:$0xff] %v843
      %876 = vst [vmem:[#allocation2 + $0xd8] sm:$0xff] %v844
      %877 = vst [vmem:[#allocation2 + $0xe0] sm:$0xff] %v845
      %878 = vst [vmem:[#allocation2 + $0xe8] sm:$0xff] %v846
      %879 = vst [vmem:[#allocation2 + $0xf0] sm:$0xff] %v847
      %880 = vst [vmem:[#allocation2 + $0xf8] sm:$0xff] %v848
      // Predicated region
      $region37: #{resnet_forward.6} parent=31 // pred_check
        %p881 = pneg %p268
      $region38: #{resnet_forward.6} parent=31 // pred_check_branch
        %883 = sbr.rel (%p881) target = $region40
      $region39: #{resnet_forward.6} parent=31 // pred_region
        %v884 = vld [vmem:[#allocation2] sm:$0xff]
        %v885 = vld [vmem:[#allocation2 + $0x8] sm:$0xff]
        %v886 = vld [vmem:[#allocation2 + $0x10] sm:$0xff]
        %v887 = vld [vmem:[#allocation2 + $0x18] sm:$0xff]
        %v888 = vld [vmem:[#allocation2 + $0x20] sm:$0xff]
        %v889 = vld [vmem:[#allocation2 + $0x28] sm:$0xff]
        %v890 = vld [vmem:[#allocation2 + $0x30] sm:$0xff]
        %v891 = vld [vmem:[#allocation2 + $0x38] sm:$0xff]
        %v892 = vld [vmem:[#allocation2 + $0x40] sm:$0xff]
        %v893 = vld [vmem:[#allocation2 + $0x48] sm:$0xff]
        %v894 = vld [vmem:[#allocation2 + $0x50] sm:$0xff]
        %v895 = vld [vmem:[#allocation2 + $0x58] sm:$0xff]
        %v896 = vld [vmem:[#allocation2 + $0x60] sm:$0xff]
        %v897 = vld [vmem:[#allocation2 + $0x68] sm:$0xff]
        %v898 = vld [vmem:[#allocation2 + $0x70] sm:$0xff]
        %v899 = vld [vmem:[#allocation2 + $0x78] sm:$0xff]
        %v900 = vld [vmem:[#allocation2 + $0x80] sm:$0xff]
        %v901 = vld [vmem:[#allocation2 + $0x88] sm:$0xff]
        %v902 = vld [vmem:[#allocation2 + $0x90] sm:$0xff]
        %v903 = vld [vmem:[#allocation2 + $0x98] sm:$0xff]
        %v904 = vld [vmem:[#allocation2 + $0xa0] sm:$0xff]
        %v905 = vld [vmem:[#allocation2 + $0xa8] sm:$0xff]
        %v906 = vld [vmem:[#allocation2 + $0xb0] sm:$0xff]
        %v907 = vld [vmem:[#allocation2 + $0xb8] sm:$0xff]
        %v908 = vld [vmem:[#allocation2 + $0xc0] sm:$0xff]
        %v909 = vld [vmem:[#allocation2 + $0xc8] sm:$0xff]
        %v910 = vld [vmem:[#allocation2 + $0xd0] sm:$0xff]
        %v911 = vld [vmem:[#allocation2 + $0xd8] sm:$0xff]
        %v912 = vld [vmem:[#allocation2 + $0xe0] sm:$0xff]
        %v913 = vld [vmem:[#allocation2 + $0xe8] sm:$0xff]
        %v914 = vld [vmem:[#allocation2 + $0xf0] sm:$0xff]
        %v915 = vld [vmem:[#allocation2 + $0xf8] sm:$0xff]
        %v916 = vld [vmem:[%s257] sm:$0x1]
        %v918 = vlaneseq
        %v919 = vshrl.u32 %v918, 7
        %v920 = vsub.s32 0, %v919
        %v921 = vrot.slane %v916, %v920
        %v923 = vadd.f32 %v884, %v921
        %v924 = vadd.f32 %v885, %v921
        %v925 = vadd.f32 %v886, %v921
        %v926 = vadd.f32 %v887, %v921
        %v927 = vadd.f32 %v888, %v921
        %v928 = vadd.f32 %v889, %v921
        %v929 = vadd.f32 %v890, %v921
        %v930 = vadd.f32 %v891, %v921
        %v931 = vadd.f32 %v892, %v921
        %v932 = vadd.f32 %v893, %v921
        %v933 = vadd.f32 %v894, %v921
        %v934 = vadd.f32 %v895, %v921
        %v935 = vadd.f32 %v896, %v921
        %v936 = vadd.f32 %v897, %v921
        %v937 = vadd.f32 %v898, %v921
        %v938 = vadd.f32 %v899, %v921
        %v939 = vadd.f32 %v900, %v921
        %v940 = vadd.f32 %v901, %v921
        %v941 = vadd.f32 %v902, %v921
        %v942 = vadd.f32 %v903, %v921
        %v943 = vadd.f32 %v904, %v921
        %v944 = vadd.f32 %v905, %v921
        %v945 = vadd.f32 %v906, %v921
        %v946 = vadd.f32 %v907, %v921
        %v947 = vadd.f32 %v908, %v921
        %v948 = vadd.f32 %v909, %v921
        %v949 = vadd.f32 %v910, %v921
        %v950 = vadd.f32 %v911, %v921
        %v951 = vadd.f32 %v912, %v921
        %v952 = vadd.f32 %v913, %v921
        %v953 = vadd.f32 %v914, %v921
        %v954 = vadd.f32 %v915, %v921
        %955 = vst [vmem:[%s265] sm:$0xff] %v923
        %956 = vst [vmem:[%s265 + $0x8] sm:$0xff] %v924
        %957 = vst [vmem:[%s265 + $0x10] sm:$0xff] %v925
        %958 = vst [vmem:[%s265 + $0x18] sm:$0xff] %v926
        %959 = vst [vmem:[%s265 + $0x20] sm:$0xff] %v927
        %960 = vst [vmem:[%s265 + $0x28] sm:$0xff] %v928
        %961 = vst [vmem:[%s265 + $0x30] sm:$0xff] %v929
        %962 = vst [vmem:[%s265 + $0x38] sm:$0xff] %v930
        %963 = vst [vmem:[%s265 + $0x40] sm:$0xff] %v931
        %964 = vst [vmem:[%s265 + $0x48] sm:$0xff] %v932
        %965 = vst [vmem:[%s265 + $0x50] sm:$0xff] %v933
        %966 = vst [vmem:[%s265 + $0x58] sm:$0xff] %v934
        %967 = vst [vmem:[%s265 + $0x60] sm:$0xff] %v935
        %968 = vst [vmem:[%s265 + $0x68] sm:$0xff] %v936
        %969 = vst [vmem:[%s265 + $0x70] sm:$0xff] %v937
        %970 = vst [vmem:[%s265 + $0x78] sm:$0xff] %v938
        %971 = vst [vmem:[%s265 + $0x80] sm:$0xff] %v939
        %972 = vst [vmem:[%s265 + $0x88] sm:$0xff] %v940
        %973 = vst [vmem:[%s265 + $0x90] sm:$0xff] %v941
        %974 = vst [vmem:[%s265 + $0x98] sm:$0xff] %v942
        %975 = vst [vmem:[%s265 + $0xa0] sm:$0xff] %v943
        %976 = vst [vmem:[%s265 + $0xa8] sm:$0xff] %v944
        %977 = vst [vmem:[%s265 + $0xb0] sm:$0xff] %v945
        %978 = vst [vmem:[%s265 + $0xb8] sm:$0xff] %v946
        %979 = vst [vmem:[%s265 + $0xc0] sm:$0xff] %v947
        %980 = vst [vmem:[%s265 + $0xc8] sm:$0xff] %v948
        %981 = vst [vmem:[%s265 + $0xd0] sm:$0xff] %v949
        %982 = vst [vmem:[%s265 + $0xd8] sm:$0xff] %v950
        %983 = vst [vmem:[%s265 + $0xe0] sm:$0xff] %v951
        %984 = vst [vmem:[%s265 + $0xe8] sm:$0xff] %v952
        %985 = vst [vmem:[%s265 + $0xf0] sm:$0xff] %v953
        %986 = vst [vmem:[%s265 + $0xf8] sm:$0xff] %v954
      $region40: #{resnet_forward.6} parent=31 // pred_fallthru
        _
      %s987 = smul.u32 32, %s19
      %p988 = scmp.lt.s32.totalorder %s987, 63
      %s989 = scalar_select %p988, %s987, 63
      %p990 = scmp.lt.s32.totalorder %s20, 0
      %s991 = scalar_select %p990, %s20, 0
      %s992 = sadd.s32 %s991, %s989
      %s993 = smul.addr %s992, 8
      %s994 = scalar_lea.vmem %s3, %s993
      // Predicated region
      $region41: #{resnet_forward.6} parent=31 // pred_check
        %p995 = pneg %p135
      $region42: #{resnet_forward.6} parent=31 // pred_check_branch
        %997 = sbr.rel (%p995) target = $region44
      $region43: #{resnet_forward.6} parent=31 // pred_region
        %s998 = smul.u32 32, %s19
      $region44: #{resnet_forward.6} parent=31 // pred_fallthru
        _
    $region32: #{resnet_forward.6} parent=5 // pred_fallthru
      _
    %p999 = scmp.le.s32.totalorder 2, %s9
    // Predicated region
    $region45: #{resnet_forward.6} parent=5 // pred_check
      %p1000 = pneg %p999
    $region46: #{resnet_forward.6} parent=5 // pred_check_branch
      %1002 = sbr.rel (%p1000) target = $region48
    $region47: #{resnet_forward.6} parent=5 // pred_region
      %s1003 = ssub.s32 %s9, 2
      // Predicated region
      $region49: #{resnet_forward.6} parent=47 // pred_check
        %p1004 = pneg %p141
      $region50: #{resnet_forward.6} parent=47 // pred_check_branch
        %1006 = sbr.rel (%p1004) target = $region52
      $region51: #{resnet_forward.6} parent=47 // pred_region
        %s1007 = smul.u32 32, %s22
        %p1008 = scmp.lt.s32.totalorder %s1007, 63
        %s1009 = scalar_select %p1008, %s1007, 63
        %p1010 = scmp.lt.s32.totalorder %s23, 0
        %s1011 = scalar_select %p1010, %s23, 0
        %s1012 = sadd.s32 %s1011, %s1009
        %s1013 = smul.addr %s1012, 8
        %s1014 = scalar_lea.vmem %s3, %s1013
      $region52: #{resnet_forward.6} parent=47 // pred_fallthru
        _
    $region48: #{resnet_forward.6} parent=5 // pred_fallthru
      _
  $region6: #{resnet_forward.6} parent=0 // loop_footer
    %s13 = sadd.s32 1, %s9
  $region7: #{resnet_forward.6} parent=0 // loop_footer_branch
    %8 = sbr.rel target = $region3
  $region8: #{resnet_forward.6} parent=0 // loop_exit
    _

// kernel: resnet_forward.8
$region0: #{resnet_forward.8}
  #allocation0 [shape = 'u32[]', space=smem, size = 0x4, offset = 0x4, fixed_abs, tag = 'smem constant byte address 0x4 - core index']
  #allocation1 [shape = 'u32[144,128]{1,0:T(1,128)}', space=vmem, size = 0x12000, scoped, tag = 'internal scratch']
  #allocation2 [shape = 'f32[104,128]{1,0:T(8,128)}', space=vmem, size = 0xd000, scoped, tag = 'scratch operand']
  %s0 = inlined_call_operand.vmem [shape: bf16[104,640], index: 0, kind: input, shape index: {}]
  %s1 = inlined_call_operand.vmem [shape: bf16[640,128], index: 1, kind: input, shape index: {}]
  %s2 = inlined_call_operand.vmem [shape: f32[1,128], index: 2, kind: input, shape index: {}]
  %s3 = inlined_call_operand.vmem [shape: f32[104,128], index: 3, kind: output, shape index: {}]
  %s4 = sld [smem:[#allocation0]]
  $region30: #{resnet_forward.8} parent=0
    _
  %s6 = ssub.s32 1, %s4
  %s7 = scalar_select 0, %s6, %s4
  // Predicated region
  $region2: #{resnet_forward.8} parent=0 // pred_check
    _
  $region3: #{resnet_forward.8} parent=0 // pred_check_branch
    %9 = sbr.rel (0) target = $region5
  $region4: #{resnet_forward.8} parent=0 // pred_region
    _
  $region5: #{resnet_forward.8} parent=0 // pred_fallthru
    _
  // Predicated region
  $region6: #{resnet_forward.8} parent=0 // pred_check
    _
  $region7: #{resnet_forward.8} parent=0 // pred_check_branch
    %11 = sbr.rel (0) target = $region9
  $region8: #{resnet_forward.8} parent=0 // pred_region
    _
  $region9: #{resnet_forward.8} parent=0 // pred_fallthru
    _
  // Predicated region
  $region10: #{resnet_forward.8} parent=0 // pred_check
    _
  $region11: #{resnet_forward.8} parent=0 // pred_check_branch
    %13 = sbr.rel (0) target = $region13
  $region12: #{resnet_forward.8} parent=0 // pred_region
    _
  $region13: #{resnet_forward.8} parent=0 // pred_fallthru
    _
  %p15 = scmp.eq.s32.totalorder 0, 0
  // Predicated region
  $region14: #{resnet_forward.8} parent=0 // pred_check
    %p16 = pneg %p15
  $region15: #{resnet_forward.8} parent=0 // pred_check_branch
    %18 = sbr.rel (%p16) target = $region17
  $region16: #{resnet_forward.8} parent=0 // pred_region
    %19 = vst [vmem:[#allocation2] sm:$0xff] 0.0
    %20 = vst [vmem:[#allocation2 + $0x8] sm:$0xff] 0.0
    %21 = vst [vmem:[#allocation2 + $0x10] sm:$0xff] 0.0
    %22 = vst [vmem:[#allocation2 + $0x18] sm:$0xff] 0.0
    %23 = vst [vmem:[#allocation2 + $0x20] sm:$0xff] 0.0
    %24 = vst [vmem:[#allocation2 + $0x28] sm:$0xff] 0.0
    %25 = vst [vmem:[#allocation2 + $0x30] sm:$0xff] 0.0
    %26 = vst [vmem:[#allocation2 + $0x38] sm:$0xff] 0.0
    %27 = vst [vmem:[#allocation2 + $0x40] sm:$0xff] 0.0
    %28 = vst [vmem:[#allocation2 + $0x48] sm:$0xff] 0.0
    %29 = vst [vmem:[#allocation2 + $0x50] sm:$0xff] 0.0
    %30 = vst [vmem:[#allocation2 + $0x58] sm:$0xff] 0.0
    %31 = vst [vmem:[#allocation2 + $0x60] sm:$0xff] 0.0
  $region17: #{resnet_forward.8} parent=0 // pred_fallthru
    _
  %v32 = vld [vmem:[#allocation2] sm:$0xff]
  %v33 = vld [vmem:[#allocation2 + $0x8] sm:$0xff]
  %v34 = vld [vmem:[#allocation2 + $0x10] sm:$0xff]
  %v35 = vld [vmem:[#allocation2 + $0x18] sm:$0xff]
  %v36 = vld [vmem:[#allocation2 + $0x20] sm:$0xff]
  %v37 = vld [vmem:[#allocation2 + $0x28] sm:$0xff]
  %v38 = vld [vmem:[#allocation2 + $0x30] sm:$0xff]
  %v39 = vld [vmem:[#allocation2 + $0x38] sm:$0xff]
  %v40 = vld [vmem:[#allocation2 + $0x40] sm:$0xff]
  %v41 = vld [vmem:[#allocation2 + $0x48] sm:$0xff]
  %v42 = vld [vmem:[#allocation2 + $0x50] sm:$0xff]
  %v43 = vld [vmem:[#allocation2 + $0x58] sm:$0xff]
  %v44 = vld [vmem:[#allocation2 + $0x60] sm:$0xff]
  %v45 = vld [vmem:[%s0] sm:$0xff]
  %v46 = vld [vmem:[%s0 + $0x8] sm:$0xff]
  %v47 = vld [vmem:[%s0 + $0x10] sm:$0xf]
  %v48 = vld [vmem:[%s0 + $0x14] sm:$0xff]
  %v49 = vld [vmem:[%s0 + $0x1c] sm:$0xff]
  %v50 = vld [vmem:[%s0 + $0x24] sm:$0xf]
  %v51 = vld [vmem:[%s0 + $0x28] sm:$0xff]
  %v52 = vld [vmem:[%s0 + $0x30] sm:$0xff]
  %v53 = vld [vmem:[%s0 + $0x38] sm:$0xf]
  %v54 = vld [vmem:[%s0 + $0x3c] sm:$0xff]
  %v55 = vld [vmem:[%s0 + $0x44] sm:$0xff]
  %v56 = vld [vmem:[%s0 + $0x4c] sm:$0xf]
  %v57 = vld [vmem:[%s0 + $0x50] sm:$0xff]
  %v58 = vld [vmem:[%s0 + $0x58] sm:$0xff]
  %v59 = vld [vmem:[%s0 + $0x60] sm:$0xf]
  %v60 = vld [vmem:[%s0 + $0x64] sm:$0xff]
  %v61 = vld [vmem:[%s0 + $0x6c] sm:$0xff]
  %v62 = vld [vmem:[%s0 + $0x74] sm:$0xf]
  %v63 = vld [vmem:[%s0 + $0x78] sm:$0xff]
  %v64 = vld [vmem:[%s0 + $0x80] sm:$0xff]
  %v65 = vld [vmem:[%s0 + $0x88] sm:$0xf]
  %v66 = vld [vmem:[%s0 + $0x8c] sm:$0xff]
  %v67 = vld [vmem:[%s0 + $0x94] sm:$0xff]
  %v68 = vld [vmem:[%s0 + $0x9c] sm:$0xf]
  %v69 = vld [vmem:[%s0 + $0xa0] sm:$0xff]
  %v70 = vld [vmem:[%s0 + $0xa8] sm:$0xff]
  %v71 = vld [vmem:[%s0 + $0xb0] sm:$0xf]
  %v72 = vld [vmem:[%s0 + $0xb4] sm:$0xff]
  %v73 = vld [vmem:[%s0 + $0xbc] sm:$0xff]
  %v74 = vld [vmem:[%s0 + $0xc4] sm:$0xf]
  %v75 = vld [vmem:[%s0 + $0xc8] sm:$0xff]
  %v76 = vld [vmem:[%s0 + $0xd0] sm:$0xff]
  %v77 = vld [vmem:[%s0 + $0xd8] sm:$0xf]
  %v78 = vld [vmem:[%s0 + $0xdc] sm:$0xff]
  %v79 = vld [vmem:[%s0 + $0xe4] sm:$0xff]
  %v80 = vld [vmem:[%s0 + $0xec] sm:$0xf]
  %v81 = vld [vmem:[%s0 + $0xf0] sm:$0xff]
  %v82 = vld [vmem:[%s0 + $0xf8] sm:$0xff]
  %v83 = vld [vmem:[%s0 + $0x100] sm:$0xf]
  %v84 = vld [vmem:[%s1] sm:$0xf]
  %v85 = vld [vmem:[%s1 + $0x4] sm:$0xf]
  %v86 = vld [vmem:[%s1 + $0x8] sm:$0xf]
  %v87 = vld [vmem:[%s1 + $0xc] sm:$0xf]
  %v88 = vld [vmem:[%s1 + $0x10] sm:$0xf]
  %v89 = vld [vmem:[%s1 + $0x14] sm:$0xf]
  %v90 = vld [vmem:[%s1 + $0x18] sm:$0xf]
  %v91 = vld [vmem:[%s1 + $0x1c] sm:$0xf]
  %v92 = vld [vmem:[%s1 + $0x20] sm:$0xf]
  %v93 = vld [vmem:[%s1 + $0x24] sm:$0xf]
  %v94 = vld [vmem:[%s1 + $0x28] sm:$0xf]
  %v95 = vld [vmem:[%s1 + $0x2c] sm:$0xf]
  %v96 = vld [vmem:[%s1 + $0x30] sm:$0xf]
  %v97 = vld [vmem:[%s1 + $0x34] sm:$0xf]
  %v98 = vld [vmem:[%s1 + $0x38] sm:$0xf]
  %v99 = vld [vmem:[%s1 + $0x3c] sm:$0xf]
  %v100 = vld [vmem:[%s1 + $0x40] sm:$0xf]
  %v101 = vld [vmem:[%s1 + $0x44] sm:$0xf]
  %v102 = vld [vmem:[%s1 + $0x48] sm:$0xf]
  %v103 = vld [vmem:[%s1 + $0x4c] sm:$0xf]
  %v104 = vld [vmem:[%s1 + $0x50] sm:$0xf]
  %v105 = vld [vmem:[%s1 + $0x54] sm:$0xf]
  %v106 = vld [vmem:[%s1 + $0x58] sm:$0xf]
  %v107 = vld [vmem:[%s1 + $0x5c] sm:$0xf]
  %v108 = vld [vmem:[%s1 + $0x60] sm:$0xf]
  %v109 = vld [vmem:[%s1 + $0x64] sm:$0xf]
  %v110 = vld [vmem:[%s1 + $0x68] sm:$0xf]
  %v111 = vld [vmem:[%s1 + $0x6c] sm:$0xf]
  %v112 = vld [vmem:[%s1 + $0x70] sm:$0xf]
  %v113 = vld [vmem:[%s1 + $0x74] sm:$0xf]
  %v114 = vld [vmem:[%s1 + $0x78] sm:$0xf]
  %v115 = vld [vmem:[%s1 + $0x7c] sm:$0xf]
  %v116 = vld [vmem:[%s1 + $0x80] sm:$0xf]
  %v117 = vld [vmem:[%s1 + $0x84] sm:$0xf]
  %v118 = vld [vmem:[%s1 + $0x88] sm:$0xf]
  %v119 = vld [vmem:[%s1 + $0x8c] sm:$0xf]
  %v120 = vld [vmem:[%s1 + $0x90] sm:$0xf]
  %v121 = vld [vmem:[%s1 + $0x94] sm:$0xf]
  %v122 = vld [vmem:[%s1 + $0x98] sm:$0xf]
  %v123 = vld [vmem:[%s1 + $0x9c] sm:$0xf]
  %v124 = vld [vmem:[%s1 + $0xa0] sm:$0xf]
  %v125 = vld [vmem:[%s1 + $0xa4] sm:$0xf]
  %v126 = vld [vmem:[%s1 + $0xa8] sm:$0xf]
  %v127 = vld [vmem:[%s1 + $0xac] sm:$0xf]
  %v128 = vld [vmem:[%s1 + $0xb0] sm:$0xf]
  %v129 = vld [vmem:[%s1 + $0xb4] sm:$0xf]
  %v130 = vld [vmem:[%s1 + $0xb8] sm:$0xf]
  %v131 = vld [vmem:[%s1 + $0xbc] sm:$0xf]
  %v132 = vld [vmem:[%s1 + $0xc0] sm:$0xf]
  %v133 = vld [vmem:[%s1 + $0xc4] sm:$0xf]
  %v134 = vld [vmem:[%s1 + $0xc8] sm:$0xf]
  %v135 = vld [vmem:[%s1 + $0xcc] sm:$0xf]
  %v136 = vld [vmem:[%s1 + $0xd0] sm:$0xf]
  %v137 = vld [vmem:[%s1 + $0xd4] sm:$0xf]
  %v138 = vld [vmem:[%s1 + $0xd8] sm:$0xf]
  %v139 = vld [vmem:[%s1 + $0xdc] sm:$0xf]
  %v140 = vld [vmem:[%s1 + $0xe0] sm:$0xf]
  %v141 = vld [vmem:[%s1 + $0xe4] sm:$0xf]
  %v142 = vld [vmem:[%s1 + $0xe8] sm:$0xf]
  %v143 = vld [vmem:[%s1 + $0xec] sm:$0xf]
  %v144 = vld [vmem:[%s1 + $0xf0] sm:$0xf]
  %v145 = vld [vmem:[%s1 + $0xf4] sm:$0xf]
  %v146 = vld [vmem:[%s1 + $0xf8] sm:$0xf]
  %v147 = vld [vmem:[%s1 + $0xfc] sm:$0xf]
  %v148 = vld [vmem:[%s1 + $0x100] sm:$0xf]
  %v149 = vld [vmem:[%s1 + $0x104] sm:$0xf]
  %v150 = vld [vmem:[%s1 + $0x108] sm:$0xf]
  %v151 = vld [vmem:[%s1 + $0x10c] sm:$0xf]
  %v152 = vld [vmem:[%s1 + $0x110] sm:$0xf]
  %v153 = vld [vmem:[%s1 + $0x114] sm:$0xf]
  %v154 = vld [vmem:[%s1 + $0x118] sm:$0xf]
  %v155 = vld [vmem:[%s1 + $0x11c] sm:$0xf]
  %v156 = vld [vmem:[%s1 + $0x120] sm:$0xf]
  %v157 = vld [vmem:[%s1 + $0x124] sm:$0xf]
  %v158 = vld [vmem:[%s1 + $0x128] sm:$0xf]
  %v159 = vld [vmem:[%s1 + $0x12c] sm:$0xf]
  %v160 = vld [vmem:[%s1 + $0x130] sm:$0xf]
  %v161 = vld [vmem:[%s1 + $0x134] sm:$0xf]
  %v162 = vld [vmem:[%s1 + $0x138] sm:$0xf]
  %v163 = vld [vmem:[%s1 + $0x13c] sm:$0xf]
  %v203 = vunpack.c.l.b16 %v45
  %v204 = vunpack.c.h.b16 %v45
  %v205 = vunpack.c.l.b16 %v46
  %v206 = vunpack.c.h.b16 %v46
  %v207 = vunpack.c.l.b16 %v47
  %v208 = vunpack.c.l.b16 %v48
  %v209 = vunpack.c.h.b16 %v48
  %v210 = vunpack.c.l.b16 %v49
  %v211 = vunpack.c.h.b16 %v49
  %v212 = vunpack.c.l.b16 %v50
  %v213 = vunpack.c.l.b16 %v51
  %v214 = vunpack.c.h.b16 %v51
  %v215 = vunpack.c.l.b16 %v52
  %v216 = vunpack.c.h.b16 %v52
  %v217 = vunpack.c.l.b16 %v53
  %v218 = vunpack.c.l.b16 %v54
  %v219 = vunpack.c.h.b16 %v54
  %v220 = vunpack.c.l.b16 %v55
  %v221 = vunpack.c.h.b16 %v55
  %v222 = vunpack.c.l.b16 %v56
  %v223 = vunpack.c.l.b16 %v57
  %v224 = vunpack.c.h.b16 %v57
  %v225 = vunpack.c.l.b16 %v58
  %v226 = vunpack.c.h.b16 %v58
  %v227 = vunpack.c.l.b16 %v59
  %v228 = vunpack.c.l.b16 %v60
  %v229 = vunpack.c.h.b16 %v60
  %v230 = vunpack.c.l.b16 %v61
  %v231 = vunpack.c.h.b16 %v61
  %v232 = vunpack.c.l.b16 %v62
  %v233 = vunpack.c.l.b16 %v63
  %v234 = vunpack.c.h.b16 %v63
  %v235 = vunpack.c.l.b16 %v64
  %v236 = vunpack.c.h.b16 %v64
  %v237 = vunpack.c.l.b16 %v65
  %v238 = vunpack.c.l.b16 %v66
  %v239 = vunpack.c.h.b16 %v66
  %v240 = vunpack.c.l.b16 %v67
  %v241 = vunpack.c.h.b16 %v67
  %v242 = vunpack.c.l.b16 %v68
  %v243 = vunpack.c.l.b16 %v69
  %v244 = vunpack.c.h.b16 %v69
  %v245 = vunpack.c.l.b16 %v70
  %v246 = vunpack.c.h.b16 %v70
  %v247 = vunpack.c.l.b16 %v71
  %v248 = vunpack.c.l.b16 %v72
  %v249 = vunpack.c.h.b16 %v72
  %v250 = vunpack.c.l.b16 %v73
  %v251 = vunpack.c.h.b16 %v73
  %v252 = vunpack.c.l.b16 %v74
  %v253 = vunpack.c.l.b16 %v75
  %v254 = vunpack.c.h.b16 %v75
  %v255 = vunpack.c.l.b16 %v76
  %v256 = vunpack.c.h.b16 %v76
  %v257 = vunpack.c.l.b16 %v77
  %v258 = vunpack.c.l.b16 %v78
  %v259 = vunpack.c.h.b16 %v78
  %v260 = vunpack.c.l.b16 %v79
  %v261 = vunpack.c.h.b16 %v79
  %v262 = vunpack.c.l.b16 %v80
  %v263 = vunpack.c.l.b16 %v81
  %v264 = vunpack.c.h.b16 %v81
  %v265 = vunpack.c.l.b16 %v82
  %v266 = vunpack.c.h.b16 %v82
  %v267 = vunpack.c.l.b16 %v83
  %v268 = vpack.c.b16 %v208, %v203
  %v269 = vpack.c.b16 %v209, %v204
  %v270 = vpack.c.b16 %v210, %v205
  %v271 = vpack.c.b16 %v211, %v206
  %v272 = vpack.c.b16 %v212, %v207
  %v273 = vpack.c.b16 %v218, %v213
  %v274 = vpack.c.b16 %v219, %v214
  %v275 = vpack.c.b16 %v220, %v215
  %v276 = vpack.c.b16 %v221, %v216
  %v277 = vpack.c.b16 %v222, %v217
  %v278 = vpack.c.b16 %v228, %v223
  %v279 = vpack.c.b16 %v229, %v224
  %v280 = vpack.c.b16 %v230, %v225
  %v281 = vpack.c.b16 %v231, %v226
  %v282 = vpack.c.b16 %v232, %v227
  %v283 = vpack.c.b16 %v238, %v233
  %v284 = vpack.c.b16 %v239, %v234
  %v285 = vpack.c.b16 %v240, %v235
  %v286 = vpack.c.b16 %v241, %v236
  %v287 = vpack.c.b16 %v242, %v237
  %v288 = vpack.c.b16 %v248, %v243
  %v289 = vpack.c.b16 %v249, %v244
  %v290 = vpack.c.b16 %v250, %v245
  %v291 = vpack.c.b16 %v251, %v246
  %v292 = vpack.c.b16 %v252, %v247
  %v293 = vpack.c.b16 %v258, %v253
  %v294 = vpack.c.b16 %v259, %v254
  %v295 = vpack.c.b16 %v260, %v255
  %v296 = vpack.c.b16 %v261, %v256
  %v297 = vpack.c.b16 %v262, %v257
  %v298 = vpack.c.b16 %v263, %v263
  %v299 = vpack.c.b16 %v264, %v264
  %v300 = vpack.c.b16 %v265, %v265
  %v301 = vpack.c.b16 %v266, %v266
  %v302 = vpack.c.b16 %v267, %v267
  %v418 = vunpack.c.l.b16 %v84
  %v419 = vunpack.c.l.b16 %v85
  %v420 = vunpack.c.l.b16 %v86
  %v421 = vunpack.c.l.b16 %v87
  %v422 = vunpack.c.l.b16 %v88
  %v423 = vunpack.c.l.b16 %v89
  %v424 = vunpack.c.l.b16 %v90
  %v425 = vunpack.c.l.b16 %v91
  %v426 = vunpack.c.l.b16 %v92
  %v427 = vunpack.c.l.b16 %v93
  %v428 = vunpack.c.l.b16 %v94
  %v429 = vunpack.c.l.b16 %v95
  %v430 = vunpack.c.l.b16 %v96
  %v431 = vunpack.c.l.b16 %v97
  %v432 = vunpack.c.l.b16 %v98
  %v433 = vunpack.c.l.b16 %v99
  %v434 = vunpack.c.l.b16 %v100
  %v435 = vunpack.c.l.b16 %v101
  %v436 = vunpack.c.l.b16 %v102
  %v437 = vunpack.c.l.b16 %v103
  %v438 = vunpack.c.l.b16 %v104
  %v439 = vunpack.c.l.b16 %v105
  %v440 = vunpack.c.l.b16 %v106
  %v441 = vunpack.c.l.b16 %v107
  %v442 = vunpack.c.l.b16 %v108
  %v443 = vunpack.c.l.b16 %v109
  %v444 = vunpack.c.l.b16 %v110
  %v445 = vunpack.c.l.b16 %v111
  %v446 = vunpack.c.l.b16 %v112
  %v447 = vunpack.c.l.b16 %v113
  %v448 = vunpack.c.l.b16 %v114
  %v449 = vunpack.c.l.b16 %v115
  %v450 = vunpack.c.l.b16 %v116
  %v451 = vunpack.c.l.b16 %v117
  %v452 = vunpack.c.l.b16 %v118
  %v453 = vunpack.c.l.b16 %v119
  %v454 = vunpack.c.l.b16 %v120
  %v455 = vunpack.c.l.b16 %v121
  %v456 = vunpack.c.l.b16 %v122
  %v457 = vunpack.c.l.b16 %v123
  %v458 = vunpack.c.l.b16 %v124
  %v459 = vunpack.c.l.b16 %v125
  %v460 = vunpack.c.l.b16 %v126
  %v461 = vunpack.c.l.b16 %v127
  %v462 = vunpack.c.l.b16 %v128
  %v463 = vunpack.c.l.b16 %v129
  %v464 = vunpack.c.l.b16 %v130
  %v465 = vunpack.c.l.b16 %v131
  %v466 = vunpack.c.l.b16 %v132
  %v467 = vunpack.c.l.b16 %v133
  %v468 = vunpack.c.l.b16 %v134
  %v469 = vunpack.c.l.b16 %v135
  %v470 = vunpack.c.l.b16 %v136
  %v471 = vunpack.c.l.b16 %v137
  %v472 = vunpack.c.l.b16 %v138
  %v473 = vunpack.c.l.b16 %v139
  %v474 = vunpack.c.l.b16 %v140
  %v475 = vunpack.c.l.b16 %v141
  %v476 = vunpack.c.l.b16 %v142
  %v477 = vunpack.c.l.b16 %v143
  %v478 = vunpack.c.l.b16 %v144
  %v479 = vunpack.c.l.b16 %v145
  %v480 = vunpack.c.l.b16 %v146
  %v481 = vunpack.c.l.b16 %v147
  %v482 = vunpack.c.l.b16 %v148
  %v483 = vunpack.c.l.b16 %v149
  %v484 = vunpack.c.l.b16 %v150
  %v485 = vunpack.c.l.b16 %v151
  %v486 = vunpack.c.l.b16 %v152
  %v487 = vunpack.c.l.b16 %v153
  %v488 = vunpack.c.l.b16 %v154
  %v489 = vunpack.c.l.b16 %v155
  %v490 = vunpack.c.l.b16 %v156
  %v491 = vunpack.c.l.b16 %v157
  %v492 = vunpack.c.l.b16 %v158
  %v493 = vunpack.c.l.b16 %v159
  %v494 = vunpack.c.l.b16 %v160
  %v495 = vunpack.c.l.b16 %v161
  %v496 = vunpack.c.l.b16 %v162
  %v497 = vunpack.c.l.b16 %v163
  %v498 = vpack.c.b16 %v419, %v418
  %v499 = vpack.c.b16 %v421, %v420
  %v500 = vpack.c.b16 %v423, %v422
  %v501 = vpack.c.b16 %v425, %v424
  %v502 = vpack.c.b16 %v427, %v426
  %v503 = vpack.c.b16 %v429, %v428
  %v504 = vpack.c.b16 %v431, %v430
  %v505 = vpack.c.b16 %v433, %v432
  %v506 = vpack.c.b16 %v435, %v434
  %v507 = vpack.c.b16 %v437, %v436
  %v508 = vpack.c.b16 %v439, %v438
  %v509 = vpack.c.b16 %v441, %v440
  %v510 = vpack.c.b16 %v443, %v442
  %v511 = vpack.c.b16 %v445, %v444
  %v512 = vpack.c.b16 %v447, %v446
  %v513 = vpack.c.b16 %v449, %v448
  %v514 = vpack.c.b16 %v451, %v450
  %v515 = vpack.c.b16 %v453, %v452
  %v516 = vpack.c.b16 %v455, %v454
  %v517 = vpack.c.b16 %v457, %v456
  %v518 = vpack.c.b16 %v459, %v458
  %v519 = vpack.c.b16 %v461, %v460
  %v520 = vpack.c.b16 %v463, %v462
  %v521 = vpack.c.b16 %v465, %v464
  %v522 = vpack.c.b16 %v467, %v466
  %v523 = vpack.c.b16 %v469, %v468
  %v524 = vpack.c.b16 %v471, %v470
  %v525 = vpack.c.b16 %v473, %v472
  %v526 = vpack.c.b16 %v475, %v474
  %v527 = vpack.c.b16 %v477, %v476
  %v528 = vpack.c.b16 %v479, %v478
  %v529 = vpack.c.b16 %v481, %v480
  %v530 = vpack.c.b16 %v483, %v482
  %v531 = vpack.c.b16 %v485, %v484
  %v532 = vpack.c.b16 %v487, %v486
  %v533 = vpack.c.b16 %v489, %v488
  %v534 = vpack.c.b16 %v491, %v490
  %v535 = vpack.c.b16 %v493, %v492
  %v536 = vpack.c.b16 %v495, %v494
  %v537 = vpack.c.b16 %v497, %v496
  %578 = vmatprep.subr.bf16.mxu0 0
  %579 = vmatpush1.bf16.msra.mxu0 %v505
  %580 = vmatprep.subr.bf16.mxu0 0
  %581 = vmatpush1.bf16.msra.mxu0 %v504
  %582 = vmatprep.subr.bf16.mxu0 0
  %583 = vmatpush1.bf16.msra.mxu0 %v503
  %584 = vmatprep.subr.bf16.mxu0 0
  %585 = vmatpush1.bf16.msra.mxu0 %v502
  %586 = vmatprep.subr.bf16.mxu0 0
  %587 = vmatpush1.bf16.msra.mxu0 %v501
  %588 = vmatprep.subr.bf16.mxu0 0
  %589 = vmatpush1.bf16.msra.mxu0 %v500
  %590 = vmatprep.subr.bf16.mxu0 0
  %591 = vmatpush1.bf16.msra.mxu0 %v499
  %592 = vmatprep.subr.bf16.mxu0 0
  %593 = vmatpush1.bf16.msra.mxu0 %v498
  %594 = vmatprep.subr.bf16.mxu0 0
  %595 = vmatpush2.bf16.msra.mxu0 %v513
  %596 = vmatprep.subr.bf16.mxu0 0
  %597 = vmatpush2.bf16.msra.mxu0 %v512
  %598 = vmatprep.subr.bf16.mxu0 0
  %599 = vmatpush2.bf16.msra.mxu0 %v511
  %600 = vmatprep.subr.bf16.mxu0 0
  %601 = vmatpush2.bf16.msra.mxu0 %v510
  %602 = vmatprep.subr.bf16.mxu0 0
  %603 = vmatpush2.bf16.msra.mxu0 %v509
  %604 = vmatprep.subr.bf16.mxu0 0
  %605 = vmatpush2.bf16.msra.mxu0 %v508
  %606 = vmatprep.subr.bf16.mxu0 0
  %607 = vmatpush2.bf16.msra.mxu0 %v507
  %608 = vmatprep.subr.bf16.mxu0 0
  %609 = vmatpush2.bf16.msra.mxu0 %v506
  %610 = vmatprep.mubr.bf16.mxu0 %v269
  %611 = vmatmul.mubr.bf16.gmra.mxu0 %v268
  %v612 = vpop.f32.mrf.mxu0
  %v613 = vadd.f32 0.0, %v612
  %v614 = vpop.f32.mrf.mxu0
  %v615 = vpop.f32.mrf.mxu0
  %v616 = vadd.f32 0.0, %v615
  %v617 = vpop.f32.mrf.mxu0
  %618 = vmatprep.mubr.bf16.mxu0 %v274
  %619 = vmatmul.mubr.bf16.gmra.mxu0 %v273
  %v620 = vpop.f32.mrf.mxu0
  %v621 = vadd.f32 0.0, %v620
  %v622 = vpop.f32.mrf.mxu0
  %v623 = vpop.f32.mrf.mxu0
  %v624 = vadd.f32 0.0, %v623
  %v625 = vpop.f32.mrf.mxu0
  %626 = vmatprep.mubr.bf16.mxu0 %v279
  %627 = vmatmul.mubr.bf16.gmra.mxu0 %v278
  %v628 = vpop.f32.mrf.mxu0
  %v629 = vadd.f32 0.0, %v628
  %v630 = vpop.f32.mrf.mxu0
  %v631 = vpop.f32.mrf.mxu0
  %v632 = vadd.f32 0.0, %v631
  %v633 = vpop.f32.mrf.mxu0
  %634 = vmatprep.mubr.bf16.mxu0 %v284
  %635 = vmatmul.mubr.bf16.gmra.mxu0 %v283
  %v636 = vpop.f32.mrf.mxu0
  %v637 = vadd.f32 0.0, %v636
  %v638 = vpop.f32.mrf.mxu0
  %v639 = vpop.f32.mrf.mxu0
  %v640 = vadd.f32 0.0, %v639
  %v641 = vpop.f32.mrf.mxu0
  %642 = vmatprep.mubr.bf16.mxu0 %v289
  %643 = vmatmul.mubr.bf16.gmra.mxu0 %v288
  %v644 = vpop.f32.mrf.mxu0
  %v645 = vadd.f32 0.0, %v644
  %v646 = vpop.f32.mrf.mxu0
  %v647 = vpop.f32.mrf.mxu0
  %v648 = vadd.f32 0.0, %v647
  %v649 = vpop.f32.mrf.mxu0
  %650 = vmatprep.mubr.bf16.mxu0 %v294
  %651 = vmatmul.mubr.bf16.gmra.mxu0 %v293
  %v652 = vpop.f32.mrf.mxu0
  %v653 = vadd.f32 0.0, %v652
  %v654 = vpop.f32.mrf.mxu0
  %v655 = vpop.f32.mrf.mxu0
  %v656 = vadd.f32 0.0, %v655
  %v657 = vpop.f32.mrf.mxu0
  %658 = vmatprep.mubr.bf16.mxu0 %v299
  %659 = vmatmul.mubr.bf16.gmra.mxu0 %v298
  %v660 = vpop.f32.mrf.mxu0
  %v661 = vadd.f32 0.0, %v660
  %v662 = vpop.f32.mrf.mxu0
  %v663 = vpop.f32.mrf.mxu0
  %v664 = vpop.f32.mrf.mxu0
  %665 = vdwg.mxu0
  %666 = vmatprep.subr.bf16.mxu0 0
  %667 = vmatpush1.bf16.msra.mxu0 %v521
  %668 = vmatprep.subr.bf16.mxu0 0
  %669 = vmatpush1.bf16.msra.mxu0 %v520
  %670 = vmatprep.subr.bf16.mxu0 0
  %671 = vmatpush1.bf16.msra.mxu0 %v519
  %672 = vmatprep.subr.bf16.mxu0 0
  %673 = vmatpush1.bf16.msra.mxu0 %v518
  %674 = vmatprep.subr.bf16.mxu0 0
  %675 = vmatpush1.bf16.msra.mxu0 %v517
  %676 = vmatprep.subr.bf16.mxu0 0
  %677 = vmatpush1.bf16.msra.mxu0 %v516
  %678 = vmatprep.subr.bf16.mxu0 0
  %679 = vmatpush1.bf16.msra.mxu0 %v515
  %680 = vmatprep.subr.bf16.mxu0 0
  %681 = vmatpush1.bf16.msra.mxu0 %v514
  %682 = vmatprep.subr.bf16.mxu0 0
  %683 = vmatpush2.bf16.msra.mxu0 %v529
  %684 = vmatprep.subr.bf16.mxu0 0
  %685 = vmatpush2.bf16.msra.mxu0 %v528
  %686 = vmatprep.subr.bf16.mxu0 0
  %687 = vmatpush2.bf16.msra.mxu0 %v527
  %688 = vmatprep.subr.bf16.mxu0 0
  %689 = vmatpush2.bf16.msra.mxu0 %v526
  %690 = vmatprep.subr.bf16.mxu0 0
  %691 = vmatpush2.bf16.msra.mxu0 %v525
  %692 = vmatprep.subr.bf16.mxu0 0
  %693 = vmatpush2.bf16.msra.mxu0 %v524
  %694 = vmatprep.subr.bf16.mxu0 0
  %695 = vmatpush2.bf16.msra.mxu0 %v523
  %696 = vmatprep.subr.bf16.mxu0 0
  %697 = vmatpush2.bf16.msra.mxu0 %v522
  %698 = vmatprep.mubr.bf16.mxu0 %v271
  %699 = vmatmul.mubr.bf16.gmra.mxu0 %v270
  %v700 = vpop.f32.mrf.mxu0
  %v701 = vadd.f32 %v613, %v700
  %v702 = vpop.f32.mrf.mxu0
  %v703 = vpop.f32.mrf.mxu0
  %v704 = vadd.f32 %v616, %v703
  %v705 = vpop.f32.mrf.mxu0
  %706 = vmatprep.mubr.bf16.mxu0 %v276
  %707 = vmatmul.mubr.bf16.gmra.mxu0 %v275
  %v708 = vpop.f32.mrf.mxu0
  %v709 = vadd.f32 %v621, %v708
  %v710 = vpop.f32.mrf.mxu0
  %v711 = vpop.f32.mrf.mxu0
  %v712 = vadd.f32 %v624, %v711
  %v713 = vpop.f32.mrf.mxu0
  %714 = vmatprep.mubr.bf16.mxu0 %v281
  %715 = vmatmul.mubr.bf16.gmra.mxu0 %v280
  %v716 = vpop.f32.mrf.mxu0
  %v717 = vadd.f32 %v629, %v716
  %v718 = vpop.f32.mrf.mxu0
  %v719 = vpop.f32.mrf.mxu0
  %v720 = vadd.f32 %v632, %v719
  %v721 = vpop.f32.mrf.mxu0
  %722 = vmatprep.mubr.bf16.mxu0 %v286
  %723 = vmatmul.mubr.bf16.gmra.mxu0 %v285
  %v724 = vpop.f32.mrf.mxu0
  %v725 = vadd.f32 %v637, %v724
  %v726 = vpop.f32.mrf.mxu0
  %v727 = vpop.f32.mrf.mxu0
  %v728 = vadd.f32 %v640, %v727
  %v729 = vpop.f32.mrf.mxu0
  %730 = vmatprep.mubr.bf16.mxu0 %v291
  %731 = vmatmul.mubr.bf16.gmra.mxu0 %v290
  %v732 = vpop.f32.mrf.mxu0
  %v733 = vadd.f32 %v645, %v732
  %v734 = vpop.f32.mrf.mxu0
  %v735 = vpop.f32.mrf.mxu0
  %v736 = vadd.f32 %v648, %v735
  %v737 = vpop.f32.mrf.mxu0
  %738 = vmatprep.mubr.bf16.mxu0 %v296
  %739 = vmatmul.mubr.bf16.gmra.mxu0 %v295
  %v740 = vpop.f32.mrf.mxu0
  %v741 = vadd.f32 %v653, %v740
  %v742 = vpop.f32.mrf.mxu0
  %v743 = vpop.f32.mrf.mxu0
  %v744 = vadd.f32 %v656, %v743
  %v745 = vpop.f32.mrf.mxu0
  %746 = vmatprep.mubr.bf16.mxu0 %v301
  %747 = vmatmul.mubr.bf16.gmra.mxu0 %v300
  %v748 = vpop.f32.mrf.mxu0
  %v749 = vadd.f32 %v661, %v748
  %v750 = vpop.f32.mrf.mxu0
  %v751 = vpop.f32.mrf.mxu0
  %v752 = vpop.f32.mrf.mxu0
  %753 = vdwg.mxu0
  %754 = vmatprep.subr.bf16.mxu0 0
  %755 = vmatpush1.bf16.msra.mxu0 %v537
  %756 = vmatprep.subr.bf16.mxu0 0
  %757 = vmatpush1.bf16.msra.mxu0 %v536
  %758 = vmatprep.subr.bf16.mxu0 0
  %759 = vmatpush1.bf16.msra.mxu0 %v535
  %760 = vmatprep.subr.bf16.mxu0 0
  %761 = vmatpush1.bf16.msra.mxu0 %v534
  %762 = vmatprep.subr.bf16.mxu0 0
  %763 = vmatpush1.bf16.msra.mxu0 %v533
  %764 = vmatprep.subr.bf16.mxu0 0
  %765 = vmatpush1.bf16.msra.mxu0 %v532
  %766 = vmatprep.subr.bf16.mxu0 0
  %767 = vmatpush1.bf16.msra.mxu0 %v531
  %768 = vmatprep.subr.bf16.mxu0 0
  %769 = vmatpush1.bf16.msra.mxu0 %v530
  %770 = vmatprep.subr.bf16.mxu0 0
  %771 = vmatpush2.bf16.msra.mxu0 0
  %772 = vmatprep.subr.bf16.mxu0 0
  %773 = vmatpush2.bf16.msra.mxu0 0
  %774 = vmatprep.subr.bf16.mxu0 0
  %775 = vmatpush2.bf16.msra.mxu0 0
  %776 = vmatprep.subr.bf16.mxu0 0
  %777 = vmatpush2.bf16.msra.mxu0 0
  %778 = vmatprep.subr.bf16.mxu0 0
  %779 = vmatpush2.bf16.msra.mxu0 0
  %780 = vmatprep.subr.bf16.mxu0 0
  %781 = vmatpush2.bf16.msra.mxu0 0
  %782 = vmatprep.subr.bf16.mxu0 0
  %783 = vmatpush2.bf16.msra.mxu0 0
  %784 = vmatprep.subr.bf16.mxu0 0
  %785 = vmatpush2.bf16.msra.mxu0 0
  %786 = vmatprep.mubr.bf16.mxu0 0
  %787 = vmatmul.mubr.bf16.gmra.mxu0 %v272
  %v788 = vpop.f32.mrf.mxu0
  %v789 = vadd.f32 %v701, %v788
  %v790 = vpop.f32.mrf.mxu0
  %v791 = vpop.f32.mrf.mxu0
  %v792 = vadd.f32 %v704, %v791
  %v793 = vpop.f32.mrf.mxu0
  %794 = vmatprep.mubr.bf16.mxu0 0
  %795 = vmatmul.mubr.bf16.gmra.mxu0 %v277
  %v796 = vpop.f32.mrf.mxu0
  %v797 = vadd.f32 %v709, %v796
  %v798 = vpop.f32.mrf.mxu0
  %v799 = vpop.f32.mrf.mxu0
  %v800 = vadd.f32 %v712, %v799
  %v801 = vpop.f32.mrf.mxu0
  %802 = vmatprep.mubr.bf16.mxu0 0
  %803 = vmatmul.mubr.bf16.gmra.mxu0 %v282
  %v804 = vpop.f32.mrf.mxu0
  %v805 = vadd.f32 %v717, %v804
  %v806 = vpop.f32.mrf.mxu0
  %v807 = vpop.f32.mrf.mxu0
  %v808 = vadd.f32 %v720, %v807
  %v809 = vpop.f32.mrf.mxu0
  %810 = vmatprep.mubr.bf16.mxu0 0
  %811 = vmatmul.mubr.bf16.gmra.mxu0 %v287
  %v812 = vpop.f32.mrf.mxu0
  %v813 = vadd.f32 %v725, %v812
  %v814 = vpop.f32.mrf.mxu0
  %v815 = vpop.f32.mrf.mxu0
  %v816 = vadd.f32 %v728, %v815
  %v817 = vpop.f32.mrf.mxu0
  %818 = vmatprep.mubr.bf16.mxu0 0
  %819 = vmatmul.mubr.bf16.gmra.mxu0 %v292
  %v820 = vpop.f32.mrf.mxu0
  %v821 = vadd.f32 %v733, %v820
  %v822 = vpop.f32.mrf.mxu0
  %v823 = vpop.f32.mrf.mxu0
  %v824 = vadd.f32 %v736, %v823
  %v825 = vpop.f32.mrf.mxu0
  %826 = vmatprep.mubr.bf16.mxu0 0
  %827 = vmatmul.mubr.bf16.gmra.mxu0 %v297
  %v828 = vpop.f32.mrf.mxu0
  %v829 = vadd.f32 %v741, %v828
  %v830 = vpop.f32.mrf.mxu0
  %v831 = vpop.f32.mrf.mxu0
  %v832 = vadd.f32 %v744, %v831
  %v833 = vpop.f32.mrf.mxu0
  %834 = vmatprep.mubr.bf16.mxu0 0
  %835 = vmatmul.mubr.bf16.gmra.mxu0 %v302
  %v836 = vpop.f32.mrf.mxu0
  %v837 = vadd.f32 %v749, %v836
  %v838 = vpop.f32.mrf.mxu0
  %v839 = vpop.f32.mrf.mxu0
  %v840 = vpop.f32.mrf.mxu0
  %841 = vdwg.mxu0
  %v842 = vadd.f32 %v32, %v789
  %v843 = vadd.f32 %v33, %v792
  %v844 = vadd.f32 %v34, %v797
  %v845 = vadd.f32 %v35, %v800
  %v846 = vadd.f32 %v36, %v805
  %v847 = vadd.f32 %v37, %v808
  %v848 = vadd.f32 %v38, %v813
  %v849 = vadd.f32 %v39, %v816
  %v850 = vadd.f32 %v40, %v821
  %v851 = vadd.f32 %v41, %v824
  %v852 = vadd.f32 %v42, %v829
  %v853 = vadd.f32 %v43, %v832
  %v854 = vadd.f32 %v44, %v837
  %855 = vst [vmem:[#allocation2] sm:$0xff] %v842
  %856 = vst [vmem:[#allocation2 + $0x8] sm:$0xff] %v843
  %857 = vst [vmem:[#allocation2 + $0x10] sm:$0xff] %v844
  %858 = vst [vmem:[#allocation2 + $0x18] sm:$0xff] %v845
  %859 = vst [vmem:[#allocation2 + $0x20] sm:$0xff] %v846
  %860 = vst [vmem:[#allocation2 + $0x28] sm:$0xff] %v847
  %861 = vst [vmem:[#allocation2 + $0x30] sm:$0xff] %v848
  %862 = vst [vmem:[#allocation2 + $0x38] sm:$0xff] %v849
  %863 = vst [vmem:[#allocation2 + $0x40] sm:$0xff] %v850
  %864 = vst [vmem:[#allocation2 + $0x48] sm:$0xff] %v851
  %865 = vst [vmem:[#allocation2 + $0x50] sm:$0xff] %v852
  %866 = vst [vmem:[#allocation2 + $0x58] sm:$0xff] %v853
  %867 = vst [vmem:[#allocation2 + $0x60] sm:$0xff] %v854
  // Predicated region
  $region18: #{resnet_forward.8} parent=0 // pred_check
    %p868 = pneg %p15
  $region19: #{resnet_forward.8} parent=0 // pred_check_branch
    %870 = sbr.rel (%p868) target = $region21
  $region20: #{resnet_forward.8} parent=0 // pred_region
    %v871 = vld [vmem:[#allocation2] sm:$0xff]
    %v872 = vld [vmem:[#allocation2 + $0x8] sm:$0xff]
    %v873 = vld [vmem:[#allocation2 + $0x10] sm:$0xff]
    %v874 = vld [vmem:[#allocation2 + $0x18] sm:$0xff]
    %v875 = vld [vmem:[#allocation2 + $0x20] sm:$0xff]
    %v876 = vld [vmem:[#allocation2 + $0x28] sm:$0xff]
    %v877 = vld [vmem:[#allocation2 + $0x30] sm:$0xff]
    %v878 = vld [vmem:[#allocation2 + $0x38] sm:$0xff]
    %v879 = vld [vmem:[#allocation2 + $0x40] sm:$0xff]
    %v880 = vld [vmem:[#allocation2 + $0x48] sm:$0xff]
    %v881 = vld [vmem:[#allocation2 + $0x50] sm:$0xff]
    %v882 = vld [vmem:[#allocation2 + $0x58] sm:$0xff]
    %v883 = vld [vmem:[#allocation2 + $0x60] sm:$0xff]
    %v884 = vld [vmem:[%s2] sm:$0x1]
    %v886 = vlaneseq
    %v887 = vshrl.u32 %v886, 7
    %v888 = vsub.s32 0, %v887
    %v889 = vrot.slane %v884, %v888
    %v891 = vadd.f32 %v871, %v889
    %v892 = vadd.f32 %v872, %v889
    %v893 = vadd.f32 %v873, %v889
    %v894 = vadd.f32 %v874, %v889
    %v895 = vadd.f32 %v875, %v889
    %v896 = vadd.f32 %v876, %v889
    %v897 = vadd.f32 %v877, %v889
    %v898 = vadd.f32 %v878, %v889
    %v899 = vadd.f32 %v879, %v889
    %v900 = vadd.f32 %v880, %v889
    %v901 = vadd.f32 %v881, %v889
    %v902 = vadd.f32 %v882, %v889
    %v903 = vadd.f32 %v883, %v889
    %904 = vst [vmem:[%s3] sm:$0xff] %v891
    %905 = vst [vmem:[%s3 + $0x8] sm:$0xff] %v892
    %906 = vst [vmem:[%s3 + $0x10] sm:$0xff] %v893
    %907 = vst [vmem:[%s3 + $0x18] sm:$0xff] %v894
    %908 = vst [vmem:[%s3 + $0x20] sm:$0xff] %v895
    %909 = vst [vmem:[%s3 + $0x28] sm:$0xff] %v896
    %910 = vst [vmem:[%s3 + $0x30] sm:$0xff] %v897
    %911 = vst [vmem:[%s3 + $0x38] sm:$0xff] %v898
    %912 = vst [vmem:[%s3 + $0x40] sm:$0xff] %v899
    %913 = vst [vmem:[%s3 + $0x48] sm:$0xff] %v900
    %914 = vst [vmem:[%s3 + $0x50] sm:$0xff] %v901
    %915 = vst [vmem:[%s3 + $0x58] sm:$0xff] %v902
    %916 = vst [vmem:[%s3 + $0x60] sm:$0xff] %v903
  $region21: #{resnet_forward.8} parent=0 // pred_fallthru
    _
  // Predicated region
  $region22: #{resnet_forward.8} parent=0 // pred_check
    _
  $region23: #{resnet_forward.8} parent=0 // pred_check_branch
    %918 = sbr.rel (0) target = $region25
  $region24: #{resnet_forward.8} parent=0 // pred_region
    _
  $region25: #{resnet_forward.8} parent=0 // pred_fallthru
    _
  // Predicated region
  $region26: #{resnet_forward.8} parent=0 // pred_check
    _
  $region27: #{resnet_forward.8} parent=0 // pred_check_branch
    %920 = sbr.rel (0) target = $region29
  $region28: #{resnet_forward.8} parent=0 // pred_region
    _
  $region29: #{resnet_forward.8} parent=0 // pred_fallthru
    _

// kernel: resnet_forward.9
$region0: #{resnet_forward.9}
  #allocation0 [shape = 'u32[]', space=smem, size = 0x4, offset = 0x4, fixed_abs, tag = 'smem constant byte address 0x4 - core index']
  #allocation1 [shape = 'u32[144,128]{1,0:T(1,128)}', space=vmem, size = 0x12000, scoped, tag = 'internal scratch']
  #allocation2 [shape = 'f32[32,128]{1,0:T(8,128)}', space=vmem, size = 0x4000, scoped, tag = 'scratch operand']
  %s0 = inlined_call_operand.vmem [shape: bf16[32,640], index: 0, kind: input, shape index: {}]
  %s1 = inlined_call_operand.vmem [shape: bf16[640,128], index: 1, kind: input, shape index: {}]
  %s2 = inlined_call_operand.vmem [shape: f32[1,128], index: 2, kind: input, shape index: {}]
  %s3 = inlined_call_operand.vmem [shape: f32[32,128], index: 3, kind: output, shape index: {}]
  %s4 = sld [smem:[#allocation0]]
  $region30: #{resnet_forward.9} parent=0
    _
  %s6 = ssub.s32 1, %s4
  %s7 = scalar_select 0, %s6, %s4
  // Predicated region
  $region2: #{resnet_forward.9} parent=0 // pred_check
    _
  $region3: #{resnet_forward.9} parent=0 // pred_check_branch
    %9 = sbr.rel (0) target = $region5
  $region4: #{resnet_forward.9} parent=0 // pred_region
    _
  $region5: #{resnet_forward.9} parent=0 // pred_fallthru
    _
  // Predicated region
  $region6: #{resnet_forward.9} parent=0 // pred_check
    _
  $region7: #{resnet_forward.9} parent=0 // pred_check_branch
    %11 = sbr.rel (0) target = $region9
  $region8: #{resnet_forward.9} parent=0 // pred_region
    _
  $region9: #{resnet_forward.9} parent=0 // pred_fallthru
    _
  // Predicated region
  $region10: #{resnet_forward.9} parent=0 // pred_check
    _
  $region11: #{resnet_forward.9} parent=0 // pred_check_branch
    %13 = sbr.rel (0) target = $region13
  $region12: #{resnet_forward.9} parent=0 // pred_region
    _
  $region13: #{resnet_forward.9} parent=0 // pred_fallthru
    _
  %p15 = scmp.eq.s32.totalorder 0, 0
  // Predicated region
  $region14: #{resnet_forward.9} parent=0 // pred_check
    %p16 = pneg %p15
  $region15: #{resnet_forward.9} parent=0 // pred_check_branch
    %18 = sbr.rel (%p16) target = $region17
  $region16: #{resnet_forward.9} parent=0 // pred_region
    %19 = vst [vmem:[#allocation2] sm:$0xff] 0.0
    %20 = vst [vmem:[#allocation2 + $0x8] sm:$0xff] 0.0
    %21 = vst [vmem:[#allocation2 + $0x10] sm:$0xff] 0.0
    %22 = vst [vmem:[#allocation2 + $0x18] sm:$0xff] 0.0
  $region17: #{resnet_forward.9} parent=0 // pred_fallthru
    _
  %v23 = vld [vmem:[#allocation2] sm:$0xff]
  %v24 = vld [vmem:[#allocation2 + $0x8] sm:$0xff]
  %v25 = vld [vmem:[#allocation2 + $0x10] sm:$0xff]
  %v26 = vld [vmem:[#allocation2 + $0x18] sm:$0xff]
  %v27 = vld [vmem:[%s0] sm:$0xff]
  %v28 = vld [vmem:[%s0 + $0x8] sm:$0xff]
  %v29 = vld [vmem:[%s0 + $0x10] sm:$0xf]
  %v30 = vld [vmem:[%s0 + $0x14] sm:$0xff]
  %v31 = vld [vmem:[%s0 + $0x1c] sm:$0xff]
  %v32 = vld [vmem:[%s0 + $0x24] sm:$0xf]
  %v33 = vld [vmem:[%s0 + $0x28] sm:$0xff]
  %v34 = vld [vmem:[%s0 + $0x30] sm:$0xff]
  %v35 = vld [vmem:[%s0 + $0x38] sm:$0xf]
  %v36 = vld [vmem:[%s0 + $0x3c] sm:$0xff]
  %v37 = vld [vmem:[%s0 + $0x44] sm:$0xff]
  %v38 = vld [vmem:[%s0 + $0x4c] sm:$0xf]
  %v39 = vld [vmem:[%s1] sm:$0xf]
  %v40 = vld [vmem:[%s1 + $0x4] sm:$0xf]
  %v41 = vld [vmem:[%s1 + $0x8] sm:$0xf]
  %v42 = vld [vmem:[%s1 + $0xc] sm:$0xf]
  %v43 = vld [vmem:[%s1 + $0x10] sm:$0xf]
  %v44 = vld [vmem:[%s1 + $0x14] sm:$0xf]
  %v45 = vld [vmem:[%s1 + $0x18] sm:$0xf]
  %v46 = vld [vmem:[%s1 + $0x1c] sm:$0xf]
  %v47 = vld [vmem:[%s1 + $0x20] sm:$0xf]
  %v48 = vld [vmem:[%s1 + $0x24] sm:$0xf]
  %v49 = vld [vmem:[%s1 + $0x28] sm:$0xf]
  %v50 = vld [vmem:[%s1 + $0x2c] sm:$0xf]
  %v51 = vld [vmem:[%s1 + $0x30] sm:$0xf]
  %v52 = vld [vmem:[%s1 + $0x34] sm:$0xf]
  %v53 = vld [vmem:[%s1 + $0x38] sm:$0xf]
  %v54 = vld [vmem:[%s1 + $0x3c] sm:$0xf]
  %v55 = vld [vmem:[%s1 + $0x40] sm:$0xf]
  %v56 = vld [vmem:[%s1 + $0x44] sm:$0xf]
  %v57 = vld [vmem:[%s1 + $0x48] sm:$0xf]
  %v58 = vld [vmem:[%s1 + $0x4c] sm:$0xf]
  %v59 = vld [vmem:[%s1 + $0x50] sm:$0xf]
  %v60 = vld [vmem:[%s1 + $0x54] sm:$0xf]
  %v61 = vld [vmem:[%s1 + $0x58] sm:$0xf]
  %v62 = vld [vmem:[%s1 + $0x5c] sm:$0xf]
  %v63 = vld [vmem:[%s1 + $0x60] sm:$0xf]
  %v64 = vld [vmem:[%s1 + $0x64] sm:$0xf]
  %v65 = vld [vmem:[%s1 + $0x68] sm:$0xf]
  %v66 = vld [vmem:[%s1 + $0x6c] sm:$0xf]
  %v67 = vld [vmem:[%s1 + $0x70] sm:$0xf]
  %v68 = vld [vmem:[%s1 + $0x74] sm:$0xf]
  %v69 = vld [vmem:[%s1 + $0x78] sm:$0xf]
  %v70 = vld [vmem:[%s1 + $0x7c] sm:$0xf]
  %v71 = vld [vmem:[%s1 + $0x80] sm:$0xf]
  %v72 = vld [vmem:[%s1 + $0x84] sm:$0xf]
  %v73 = vld [vmem:[%s1 + $0x88] sm:$0xf]
  %v74 = vld [vmem:[%s1 + $0x8c] sm:$0xf]
  %v75 = vld [vmem:[%s1 + $0x90] sm:$0xf]
  %v76 = vld [vmem:[%s1 + $0x94] sm:$0xf]
  %v77 = vld [vmem:[%s1 + $0x98] sm:$0xf]
  %v78 = vld [vmem:[%s1 + $0x9c] sm:$0xf]
  %v79 = vld [vmem:[%s1 + $0xa0] sm:$0xf]
  %v80 = vld [vmem:[%s1 + $0xa4] sm:$0xf]
  %v81 = vld [vmem:[%s1 + $0xa8] sm:$0xf]
  %v82 = vld [vmem:[%s1 + $0xac] sm:$0xf]
  %v83 = vld [vmem:[%s1 + $0xb0] sm:$0xf]
  %v84 = vld [vmem:[%s1 + $0xb4] sm:$0xf]
  %v85 = vld [vmem:[%s1 + $0xb8] sm:$0xf]
  %v86 = vld [vmem:[%s1 + $0xbc] sm:$0xf]
  %v87 = vld [vmem:[%s1 + $0xc0] sm:$0xf]
  %v88 = vld [vmem:[%s1 + $0xc4] sm:$0xf]
  %v89 = vld [vmem:[%s1 + $0xc8] sm:$0xf]
  %v90 = vld [vmem:[%s1 + $0xcc] sm:$0xf]
  %v91 = vld [vmem:[%s1 + $0xd0] sm:$0xf]
  %v92 = vld [vmem:[%s1 + $0xd4] sm:$0xf]
  %v93 = vld [vmem:[%s1 + $0xd8] sm:$0xf]
  %v94 = vld [vmem:[%s1 + $0xdc] sm:$0xf]
  %v95 = vld [vmem:[%s1 + $0xe0] sm:$0xf]
  %v96 = vld [vmem:[%s1 + $0xe4] sm:$0xf]
  %v97 = vld [vmem:[%s1 + $0xe8] sm:$0xf]
  %v98 = vld [vmem:[%s1 + $0xec] sm:$0xf]
  %v99 = vld [vmem:[%s1 + $0xf0] sm:$0xf]
  %v100 = vld [vmem:[%s1 + $0xf4] sm:$0xf]
  %v101 = vld [vmem:[%s1 + $0xf8] sm:$0xf]
  %v102 = vld [vmem:[%s1 + $0xfc] sm:$0xf]
  %v103 = vld [vmem:[%s1 + $0x100] sm:$0xf]
  %v104 = vld [vmem:[%s1 + $0x104] sm:$0xf]
  %v105 = vld [vmem:[%s1 + $0x108] sm:$0xf]
  %v106 = vld [vmem:[%s1 + $0x10c] sm:$0xf]
  %v107 = vld [vmem:[%s1 + $0x110] sm:$0xf]
  %v108 = vld [vmem:[%s1 + $0x114] sm:$0xf]
  %v109 = vld [vmem:[%s1 + $0x118] sm:$0xf]
  %v110 = vld [vmem:[%s1 + $0x11c] sm:$0xf]
  %v111 = vld [vmem:[%s1 + $0x120] sm:$0xf]
  %v112 = vld [vmem:[%s1 + $0x124] sm:$0xf]
  %v113 = vld [vmem:[%s1 + $0x128] sm:$0xf]
  %v114 = vld [vmem:[%s1 + $0x12c] sm:$0xf]
  %v115 = vld [vmem:[%s1 + $0x130] sm:$0xf]
  %v116 = vld [vmem:[%s1 + $0x134] sm:$0xf]
  %v117 = vld [vmem:[%s1 + $0x138] sm:$0xf]
  %v118 = vld [vmem:[%s1 + $0x13c] sm:$0xf]
  %v131 = vunpack.c.l.b16 %v27
  %v132 = vunpack.c.h.b16 %v27
  %v133 = vunpack.c.l.b16 %v28
  %v134 = vunpack.c.h.b16 %v28
  %v135 = vunpack.c.l.b16 %v29
  %v136 = vunpack.c.l.b16 %v30
  %v137 = vunpack.c.h.b16 %v30
  %v138 = vunpack.c.l.b16 %v31
  %v139 = vunpack.c.h.b16 %v31
  %v140 = vunpack.c.l.b16 %v32
  %v141 = vunpack.c.l.b16 %v33
  %v142 = vunpack.c.h.b16 %v33
  %v143 = vunpack.c.l.b16 %v34
  %v144 = vunpack.c.h.b16 %v34
  %v145 = vunpack.c.l.b16 %v35
  %v146 = vunpack.c.l.b16 %v36
  %v147 = vunpack.c.h.b16 %v36
  %v148 = vunpack.c.l.b16 %v37
  %v149 = vunpack.c.h.b16 %v37
  %v150 = vunpack.c.l.b16 %v38
  %v151 = vpack.c.b16 %v136, %v131
  %v152 = vpack.c.b16 %v137, %v132
  %v153 = vpack.c.b16 %v138, %v133
  %v154 = vpack.c.b16 %v139, %v134
  %v155 = vpack.c.b16 %v140, %v135
  %v156 = vpack.c.b16 %v146, %v141
  %v157 = vpack.c.b16 %v147, %v142
  %v158 = vpack.c.b16 %v148, %v143
  %v159 = vpack.c.b16 %v149, %v144
  %v160 = vpack.c.b16 %v150, %v145
  %v251 = vunpack.c.l.b16 %v39
  %v252 = vunpack.c.l.b16 %v40
  %v253 = vunpack.c.l.b16 %v41
  %v254 = vunpack.c.l.b16 %v42
  %v255 = vunpack.c.l.b16 %v43
  %v256 = vunpack.c.l.b16 %v44
  %v257 = vunpack.c.l.b16 %v45
  %v258 = vunpack.c.l.b16 %v46
  %v259 = vunpack.c.l.b16 %v47
  %v260 = vunpack.c.l.b16 %v48
  %v261 = vunpack.c.l.b16 %v49
  %v262 = vunpack.c.l.b16 %v50
  %v263 = vunpack.c.l.b16 %v51
  %v264 = vunpack.c.l.b16 %v52
  %v265 = vunpack.c.l.b16 %v53
  %v266 = vunpack.c.l.b16 %v54
  %v267 = vunpack.c.l.b16 %v55
  %v268 = vunpack.c.l.b16 %v56
  %v269 = vunpack.c.l.b16 %v57
  %v270 = vunpack.c.l.b16 %v58
  %v271 = vunpack.c.l.b16 %v59
  %v272 = vunpack.c.l.b16 %v60
  %v273 = vunpack.c.l.b16 %v61
  %v274 = vunpack.c.l.b16 %v62
  %v275 = vunpack.c.l.b16 %v63
  %v276 = vunpack.c.l.b16 %v64
  %v277 = vunpack.c.l.b16 %v65
  %v278 = vunpack.c.l.b16 %v66
  %v279 = vunpack.c.l.b16 %v67
  %v280 = vunpack.c.l.b16 %v68
  %v281 = vunpack.c.l.b16 %v69
  %v282 = vunpack.c.l.b16 %v70
  %v283 = vunpack.c.l.b16 %v71
  %v284 = vunpack.c.l.b16 %v72
  %v285 = vunpack.c.l.b16 %v73
  %v286 = vunpack.c.l.b16 %v74
  %v287 = vunpack.c.l.b16 %v75
  %v288 = vunpack.c.l.b16 %v76
  %v289 = vunpack.c.l.b16 %v77
  %v290 = vunpack.c.l.b16 %v78
  %v291 = vunpack.c.l.b16 %v79
  %v292 = vunpack.c.l.b16 %v80
  %v293 = vunpack.c.l.b16 %v81
  %v294 = vunpack.c.l.b16 %v82
  %v295 = vunpack.c.l.b16 %v83
  %v296 = vunpack.c.l.b16 %v84
  %v297 = vunpack.c.l.b16 %v85
  %v298 = vunpack.c.l.b16 %v86
  %v299 = vunpack.c.l.b16 %v87
  %v300 = vunpack.c.l.b16 %v88
  %v301 = vunpack.c.l.b16 %v89
  %v302 = vunpack.c.l.b16 %v90
  %v303 = vunpack.c.l.b16 %v91
  %v304 = vunpack.c.l.b16 %v92
  %v305 = vunpack.c.l.b16 %v93
  %v306 = vunpack.c.l.b16 %v94
  %v307 = vunpack.c.l.b16 %v95
  %v308 = vunpack.c.l.b16 %v96
  %v309 = vunpack.c.l.b16 %v97
  %v310 = vunpack.c.l.b16 %v98
  %v311 = vunpack.c.l.b16 %v99
  %v312 = vunpack.c.l.b16 %v100
  %v313 = vunpack.c.l.b16 %v101
  %v314 = vunpack.c.l.b16 %v102
  %v315 = vunpack.c.l.b16 %v103
  %v316 = vunpack.c.l.b16 %v104
  %v317 = vunpack.c.l.b16 %v105
  %v318 = vunpack.c.l.b16 %v106
  %v319 = vunpack.c.l.b16 %v107
  %v320 = vunpack.c.l.b16 %v108
  %v321 = vunpack.c.l.b16 %v109
  %v322 = vunpack.c.l.b16 %v110
  %v323 = vunpack.c.l.b16 %v111
  %v324 = vunpack.c.l.b16 %v112
  %v325 = vunpack.c.l.b16 %v113
  %v326 = vunpack.c.l.b16 %v114
  %v327 = vunpack.c.l.b16 %v115
  %v328 = vunpack.c.l.b16 %v116
  %v329 = vunpack.c.l.b16 %v117
  %v330 = vunpack.c.l.b16 %v118
  %v331 = vpack.c.b16 %v252, %v251
  %v332 = vpack.c.b16 %v254, %v253
  %v333 = vpack.c.b16 %v256, %v255
  %v334 = vpack.c.b16 %v258, %v257
  %v335 = vpack.c.b16 %v260, %v259
  %v336 = vpack.c.b16 %v262, %v261
  %v337 = vpack.c.b16 %v264, %v263
  %v338 = vpack.c.b16 %v266, %v265
  %v339 = vpack.c.b16 %v268, %v267
  %v340 = vpack.c.b16 %v270, %v269
  %v341 = vpack.c.b16 %v272, %v271
  %v342 = vpack.c.b16 %v274, %v273
  %v343 = vpack.c.b16 %v276, %v275
  %v344 = vpack.c.b16 %v278, %v277
  %v345 = vpack.c.b16 %v280, %v279
  %v346 = vpack.c.b16 %v282, %v281
  %v347 = vpack.c.b16 %v284, %v283
  %v348 = vpack.c.b16 %v286, %v285
  %v349 = vpack.c.b16 %v288, %v287
  %v350 = vpack.c.b16 %v290, %v289
  %v351 = vpack.c.b16 %v292, %v291
  %v352 = vpack.c.b16 %v294, %v293
  %v353 = vpack.c.b16 %v296, %v295
  %v354 = vpack.c.b16 %v298, %v297
  %v355 = vpack.c.b16 %v300, %v299
  %v356 = vpack.c.b16 %v302, %v301
  %v357 = vpack.c.b16 %v304, %v303
  %v358 = vpack.c.b16 %v306, %v305
  %v359 = vpack.c.b16 %v308, %v307
  %v360 = vpack.c.b16 %v310, %v309
  %v361 = vpack.c.b16 %v312, %v311
  %v362 = vpack.c.b16 %v314, %v313
  %v363 = vpack.c.b16 %v316, %v315
  %v364 = vpack.c.b16 %v318, %v317
  %v365 = vpack.c.b16 %v320, %v319
  %v366 = vpack.c.b16 %v322, %v321
  %v367 = vpack.c.b16 %v324, %v323
  %v368 = vpack.c.b16 %v326, %v325
  %v369 = vpack.c.b16 %v328, %v327
  %v370 = vpack.c.b16 %v330, %v329
  %411 = vmatprep.subr.bf16.mxu0 0
  %412 = vmatpush1.bf16.msra.mxu0 %v338
  %413 = vmatprep.subr.bf16.mxu0 0
  %414 = vmatpush1.bf16.msra.mxu0 %v337
  %415 = vmatprep.subr.bf16.mxu0 0
  %416 = vmatpush1.bf16.msra.mxu0 %v336
  %417 = vmatprep.subr.bf16.mxu0 0
  %418 = vmatpush1.bf16.msra.mxu0 %v335
  %419 = vmatprep.subr.bf16.mxu0 0
  %420 = vmatpush1.bf16.msra.mxu0 %v334
  %421 = vmatprep.subr.bf16.mxu0 0
  %422 = vmatpush1.bf16.msra.mxu0 %v333
  %423 = vmatprep.subr.bf16.mxu0 0
  %424 = vmatpush1.bf16.msra.mxu0 %v332
  %425 = vmatprep.subr.bf16.mxu0 0
  %426 = vmatpush1.bf16.msra.mxu0 %v331
  %427 = vmatprep.subr.bf16.mxu0 0
  %428 = vmatpush2.bf16.msra.mxu0 %v346
  %429 = vmatprep.subr.bf16.mxu0 0
  %430 = vmatpush2.bf16.msra.mxu0 %v345
  %431 = vmatprep.subr.bf16.mxu0 0
  %432 = vmatpush2.bf16.msra.mxu0 %v344
  %433 = vmatprep.subr.bf16.mxu0 0
  %434 = vmatpush2.bf16.msra.mxu0 %v343
  %435 = vmatprep.subr.bf16.mxu0 0
  %436 = vmatpush2.bf16.msra.mxu0 %v342
  %437 = vmatprep.subr.bf16.mxu0 0
  %438 = vmatpush2.bf16.msra.mxu0 %v341
  %439 = vmatprep.subr.bf16.mxu0 0
  %440 = vmatpush2.bf16.msra.mxu0 %v340
  %441 = vmatprep.subr.bf16.mxu0 0
  %442 = vmatpush2.bf16.msra.mxu0 %v339
  %443 = vmatprep.mubr.bf16.mxu0 %v152
  %444 = vmatmul.mubr.bf16.gmra.mxu0 %v151
  %v445 = vpop.f32.mrf.mxu0
  %v446 = vadd.f32 0.0, %v445
  %v447 = vpop.f32.mrf.mxu0
  %v448 = vpop.f32.mrf.mxu0
  %v449 = vadd.f32 0.0, %v448
  %v450 = vpop.f32.mrf.mxu0
  %451 = vmatprep.mubr.bf16.mxu0 %v157
  %452 = vmatmul.mubr.bf16.gmra.mxu0 %v156
  %v453 = vpop.f32.mrf.mxu0
  %v454 = vadd.f32 0.0, %v453
  %v455 = vpop.f32.mrf.mxu0
  %v456 = vpop.f32.mrf.mxu0
  %v457 = vadd.f32 0.0, %v456
  %v458 = vpop.f32.mrf.mxu0
  %459 = vdwg.mxu0
  %460 = vmatprep.subr.bf16.mxu0 0
  %461 = vmatpush1.bf16.msra.mxu0 %v354
  %462 = vmatprep.subr.bf16.mxu0 0
  %463 = vmatpush1.bf16.msra.mxu0 %v353
  %464 = vmatprep.subr.bf16.mxu0 0
  %465 = vmatpush1.bf16.msra.mxu0 %v352
  %466 = vmatprep.subr.bf16.mxu0 0
  %467 = vmatpush1.bf16.msra.mxu0 %v351
  %468 = vmatprep.subr.bf16.mxu0 0
  %469 = vmatpush1.bf16.msra.mxu0 %v350
  %470 = vmatprep.subr.bf16.mxu0 0
  %471 = vmatpush1.bf16.msra.mxu0 %v349
  %472 = vmatprep.subr.bf16.mxu0 0
  %473 = vmatpush1.bf16.msra.mxu0 %v348
  %474 = vmatprep.subr.bf16.mxu0 0
  %475 = vmatpush1.bf16.msra.mxu0 %v347
  %476 = vmatprep.subr.bf16.mxu0 0
  %477 = vmatpush2.bf16.msra.mxu0 %v362
  %478 = vmatprep.subr.bf16.mxu0 0
  %479 = vmatpush2.bf16.msra.mxu0 %v361
  %480 = vmatprep.subr.bf16.mxu0 0
  %481 = vmatpush2.bf16.msra.mxu0 %v360
  %482 = vmatprep.subr.bf16.mxu0 0
  %483 = vmatpush2.bf16.msra.mxu0 %v359
  %484 = vmatprep.subr.bf16.mxu0 0
  %485 = vmatpush2.bf16.msra.mxu0 %v358
  %486 = vmatprep.subr.bf16.mxu0 0
  %487 = vmatpush2.bf16.msra.mxu0 %v357
  %488 = vmatprep.subr.bf16.mxu0 0
  %489 = vmatpush2.bf16.msra.mxu0 %v356
  %490 = vmatprep.subr.bf16.mxu0 0
  %491 = vmatpush2.bf16.msra.mxu0 %v355
  %492 = vmatprep.mubr.bf16.mxu0 %v154
  %493 = vmatmul.mubr.bf16.gmra.mxu0 %v153
  %v494 = vpop.f32.mrf.mxu0
  %v495 = vadd.f32 %v446, %v494
  %v496 = vpop.f32.mrf.mxu0
  %v497 = vpop.f32.mrf.mxu0
  %v498 = vadd.f32 %v449, %v497
  %v499 = vpop.f32.mrf.mxu0
  %500 = vmatprep.mubr.bf16.mxu0 %v159
  %501 = vmatmul.mubr.bf16.gmra.mxu0 %v158
  %v502 = vpop.f32.mrf.mxu0
  %v503 = vadd.f32 %v454, %v502
  %v504 = vpop.f32.mrf.mxu0
  %v505 = vpop.f32.mrf.mxu0
  %v506 = vadd.f32 %v457, %v505
  %v507 = vpop.f32.mrf.mxu0
  %508 = vdwg.mxu0
  %509 = vmatprep.subr.bf16.mxu0 0
  %510 = vmatpush1.bf16.msra.mxu0 %v370
  %511 = vmatprep.subr.bf16.mxu0 0
  %512 = vmatpush1.bf16.msra.mxu0 %v369
  %513 = vmatprep.subr.bf16.mxu0 0
  %514 = vmatpush1.bf16.msra.mxu0 %v368
  %515 = vmatprep.subr.bf16.mxu0 0
  %516 = vmatpush1.bf16.msra.mxu0 %v367
  %517 = vmatprep.subr.bf16.mxu0 0
  %518 = vmatpush1.bf16.msra.mxu0 %v366
  %519 = vmatprep.subr.bf16.mxu0 0
  %520 = vmatpush1.bf16.msra.mxu0 %v365
  %521 = vmatprep.subr.bf16.mxu0 0
  %522 = vmatpush1.bf16.msra.mxu0 %v364
  %523 = vmatprep.subr.bf16.mxu0 0
  %524 = vmatpush1.bf16.msra.mxu0 %v363
  %525 = vmatprep.subr.bf16.mxu0 0
  %526 = vmatpush2.bf16.msra.mxu0 0
  %527 = vmatprep.subr.bf16.mxu0 0
  %528 = vmatpush2.bf16.msra.mxu0 0
  %529 = vmatprep.subr.bf16.mxu0 0
  %530 = vmatpush2.bf16.msra.mxu0 0
  %531 = vmatprep.subr.bf16.mxu0 0
  %532 = vmatpush2.bf16.msra.mxu0 0
  %533 = vmatprep.subr.bf16.mxu0 0
  %534 = vmatpush2.bf16.msra.mxu0 0
  %535 = vmatprep.subr.bf16.mxu0 0
  %536 = vmatpush2.bf16.msra.mxu0 0
  %537 = vmatprep.subr.bf16.mxu0 0
  %538 = vmatpush2.bf16.msra.mxu0 0
  %539 = vmatprep.subr.bf16.mxu0 0
  %540 = vmatpush2.bf16.msra.mxu0 0
  %541 = vmatprep.mubr.bf16.mxu0 0
  %542 = vmatmul.mubr.bf16.gmra.mxu0 %v155
  %v543 = vpop.f32.mrf.mxu0
  %v544 = vadd.f32 %v495, %v543
  %v545 = vpop.f32.mrf.mxu0
  %v546 = vpop.f32.mrf.mxu0
  %v547 = vadd.f32 %v498, %v546
  %v548 = vpop.f32.mrf.mxu0
  %549 = vmatprep.mubr.bf16.mxu0 0
  %550 = vmatmul.mubr.bf16.gmra.mxu0 %v160
  %v551 = vpop.f32.mrf.mxu0
  %v552 = vadd.f32 %v503, %v551
  %v553 = vpop.f32.mrf.mxu0
  %v554 = vpop.f32.mrf.mxu0
  %v555 = vadd.f32 %v506, %v554
  %v556 = vpop.f32.mrf.mxu0
  %557 = vdwg.mxu0
  %v558 = vadd.f32 %v23, %v544
  %v559 = vadd.f32 %v24, %v547
  %v560 = vadd.f32 %v25, %v552
  %v561 = vadd.f32 %v26, %v555
  %562 = vst [vmem:[#allocation2] sm:$0xff] %v558
  %563 = vst [vmem:[#allocation2 + $0x8] sm:$0xff] %v559
  %564 = vst [vmem:[#allocation2 + $0x10] sm:$0xff] %v560
  %565 = vst [vmem:[#allocation2 + $0x18] sm:$0xff] %v561
  // Predicated region
  $region18: #{resnet_forward.9} parent=0 // pred_check
    %p566 = pneg %p15
  $region19: #{resnet_forward.9} parent=0 // pred_check_branch
    %568 = sbr.rel (%p566) target = $region21
  $region20: #{resnet_forward.9} parent=0 // pred_region
    %v569 = vld [vmem:[#allocation2] sm:$0xff]
    %v570 = vld [vmem:[#allocation2 + $0x8] sm:$0xff]
    %v571 = vld [vmem:[#allocation2 + $0x10] sm:$0xff]
    %v572 = vld [vmem:[#allocation2 + $0x18] sm:$0xff]
    %v573 = vld [vmem:[%s2] sm:$0x1]
    %v575 = vlaneseq
    %v576 = vshrl.u32 %v575, 7
    %v577 = vsub.s32 0, %v576
    %v578 = vrot.slane %v573, %v577
    %v580 = vadd.f32 %v569, %v578
    %v581 = vadd.f32 %v570, %v578
    %v582 = vadd.f32 %v571, %v578
    %v583 = vadd.f32 %v572, %v578
    %584 = vst [vmem:[%s3] sm:$0xff] %v580
    %585 = vst [vmem:[%s3 + $0x8] sm:$0xff] %v581
    %586 = vst [vmem:[%s3 + $0x10] sm:$0xff] %v582
    %587 = vst [vmem:[%s3 + $0x18] sm:$0xff] %v583
  $region21: #{resnet_forward.9} parent=0 // pred_fallthru
    _
  // Predicated region
  $region22: #{resnet_forward.9} parent=0 // pred_check
    _
  $region23: #{resnet_forward.9} parent=0 // pred_check_branch
    %589 = sbr.rel (0) target = $region25
  $region24: #{resnet_forward.9} parent=0 // pred_region
    _
  $region25: #{resnet_forward.9} parent=0 // pred_fallthru
    _
  // Predicated region
  $region26: #{resnet_forward.9} parent=0 // pred_check
    _
  $region27: #{resnet_forward.9} parent=0 // pred_check_branch
    %591 = sbr.rel (0) target = $region29
  $region28: #{resnet_forward.9} parent=0 // pred_region
    _
  $region29: #{resnet_forward.9} parent=0 // pred_fallthru
    _

// kernel: resnet_forward.10
$region0: #{resnet_forward.10}
  #allocation0 [shape = 'u32[]', space=smem, size = 0x4, offset = 0x4, fixed_abs, tag = 'smem constant byte address 0x4 - core index']
  #allocation1 [shape = 'u32[144,128]{1,0:T(1,128)}', space=vmem, size = 0x12000, scoped, tag = 'internal scratch']
  #allocation2 [shape = 'f32[8,256]{1,0:T(8,128)}', space=vmem, size = 0x2000, scoped, tag = 'scratch operand']
  %s0 = inlined_call_operand.vmem [shape: bf16[8,2048], index: 0, kind: input, shape index: {}]
  %s1 = inlined_call_operand.vmem [shape: bf16[2048,1024], index: 1, kind: input, shape index: {}]
  %s2 = inlined_call_operand.vmem [shape: f32[1,1024], index: 2, kind: input, shape index: {}]
  %s3 = inlined_call_operand.vmem [shape: f32[8,1024], index: 3, kind: output, shape index: {}]
  %s4 = sld [smem:[#allocation0]]
  $region91: #{resnet_forward.10} parent=0
    _
  %s6 = ssub.s32 1, %s4
  %s7 = scalar_select 0, %s6, %s4
  $region1: #{resnet_forward.10} parent=0
    #allocation3 [shape = 'u8[524288]{0}', space=vmem, size = 0x80000, scoped, tag = 'input window, operand 1']
    loop: start=0, step=1, limit=18
    $region2: #{resnet_forward.10} parent=1 // loop_pre_header
      _
    $region3: #{resnet_forward.10} parent=1 // loop_header
      %s9 = sphi 0, %s13
      %p10 = scmp.ge.s32.totalorder %s9, 18
      %s16 = sphi 0, %s35
      %s17 = sphi 0, %s31
      %s18 = sphi 0, %s27
      %s19 = sphi 0, %s16
      %s20 = sphi 0, %s17
      %s21 = sphi 0, %s18
      %s22 = sphi 0, %s19
      %s23 = sphi 0, %s20
      %s24 = sphi 0, %s21
      %s40 = sphi 0, %s42
      %s43 = sphi 0, %s40
      %s44 = sphi 0, %s43
      %s60 = sphi 0, %s44
      %s68 = sphi 0, %s70
      %s71 = sphi 0, %s68
      %s72 = sphi 0, %s71
      %s88 = sphi 0, %s72
      %s94 = sphi 0, %s96
      %s97 = sphi 0, %s94
      %s98 = sphi 0, %s97
      %s114 = sphi 0, %s98
      %s122 = sphi 0, %s124
      %s125 = sphi 0, %s122
      %s126 = sphi 0, %s125
      %s142 = sphi 0, %s126
    $region4: #{resnet_forward.10} parent=1 // loop_header_branch
      %12 = sbr.rel (%p10) target = $region8
    $region5: #{resnet_forward.10} parent=1 // loop_body
      %s14 = ssub.s32 %s9, 1
      %s15 = ssub.s32 %s9, 2
      %s25 = sadd.s32 1, %s18
      %p26 = scmp.ge.s32.totalorder %s25, 4
      %s27 = scalar_select %p26, 0, %s25
      %s28 = sadd.s32 1, %s17
      %s29 = scalar_select %p26, %s28, %s17
      %p30 = scmp.ge.s32.totalorder %s29, 4
      %s31 = scalar_select %p30, 0, %s29
      %s32 = sadd.s32 1, %s16
      %s33 = scalar_select %p30, %s32, %s16
      %p34 = scmp.ge.s32.totalorder %s33, 1
      %s35 = scalar_select %p34, 0, %s33
      %s36 = ssub.s32 %s16, %s35
      %s37 = ssub.s32 %s18, %s27
      %s38 = sor.u32 %s36, %s37
      %p39 = scmp.eq.s32.totalorder %s38, 0
      %s41 = sadd.s32 %s40, 1
      %s42 = scalar_select %p39, %s40, %s41
      %p45 = pneg %p39
      %p46 = scmp.eq.s32.totalorder %s9, 15
      %p47 = por %p45, %p46
      %p48 = scmp.ne.s32.totalorder %s40, %s43
      %p49 = scmp.eq.s32.totalorder %s9, 0
      %p50 = por %p48, %p49
      %p51 = scmp.ne.s32.totalorder %s40, %s43
      %p52 = scmp.eq.s32.totalorder %s14, 15
      %p53 = por %p51, %p52
      %p54 = scmp.ne.s32.totalorder %s43, %s44
      %p55 = scmp.eq.s32.totalorder %s14, 0
      %p56 = por %p54, %p55
      %p57 = scmp.ne.s32.totalorder %s43, %s44
      %p58 = scmp.eq.s32.totalorder %s15, 15
      %p59 = por %p57, %p58
      %p61 = scmp.ne.s32.totalorder %s44, %s60
      %p62 = scmp.eq.s32.totalorder %s15, 0
      %p63 = por %p61, %p62
      %s64 = ssub.s32 %s18, %s27
      %s65 = ssub.s32 %s17, %s31
      %s66 = sor.u32 %s64, %s65
      %p67 = scmp.eq.s32.totalorder %s66, 0
      %s69 = sadd.s32 %s68, 1
      %s70 = scalar_select %p67, %s68, %s69
      %p73 = pneg %p67
      %p74 = scmp.eq.s32.totalorder %s9, 15
      %p75 = por %p73, %p74
      %p76 = scmp.ne.s32.totalorder %s68, %s71
      %p77 = scmp.eq.s32.totalorder %s9, 0
      %p78 = por %p76, %p77
      %p79 = scmp.ne.s32.totalorder %s68, %s71
      %p80 = scmp.eq.s32.totalorder %s14, 15
      %p81 = por %p79, %p80
      %p82 = scmp.ne.s32.totalorder %s71, %s72
      %p83 = scmp.eq.s32.totalorder %s14, 0
      %p84 = por %p82, %p83
      %p85 = scmp.ne.s32.totalorder %s71, %s72
      %p86 = scmp.eq.s32.totalorder %s15, 15
      %p87 = por %p85, %p86
      %p89 = scmp.ne.s32.totalorder %s72, %s88
      %p90 = scmp.eq.s32.totalorder %s15, 0
      %p91 = por %p89, %p90
      %s92 = ssub.s32 %s17, %s31
      %p93 = scmp.eq.s32.totalorder %s92, 0
      %s95 = sadd.s32 %s94, 1
      %s96 = scalar_select %p93, %s94, %s95
      %p99 = pneg %p93
      %p100 = scmp.eq.s32.totalorder %s9, 15
      %p101 = por %p99, %p100
      %p102 = scmp.ne.s32.totalorder %s94, %s97
      %p103 = scmp.eq.s32.totalorder %s9, 0
      %p104 = por %p102, %p103
      %p105 = scmp.ne.s32.totalorder %s94, %s97
      %p106 = scmp.eq.s32.totalorder %s14, 15
      %p107 = por %p105, %p106
      %p108 = scmp.ne.s32.totalorder %s97, %s98
      %p109 = scmp.eq.s32.totalorder %s14, 0
      %p110 = por %p108, %p109
      %p111 = scmp.ne.s32.totalorder %s97, %s98
      %p112 = scmp.eq.s32.totalorder %s15, 15
      %p113 = por %p111, %p112
      %p115 = scmp.ne.s32.totalorder %s98, %s114
      %p116 = scmp.eq.s32.totalorder %s15, 0
      %p117 = por %p115, %p116
      %s118 = ssub.s32 %s16, %s35
      %s119 = ssub.s32 %s17, %s31
      %s120 = sor.u32 %s118, %s119
      %p121 = scmp.eq.s32.totalorder %s120, 0
      %s123 = sadd.s32 %s122, 1
      %s124 = scalar_select %p121, %s122, %s123
      %p127 = pneg %p121
      %p128 = scmp.eq.s32.totalorder %s9, 15
      %p129 = por %p127, %p128
      %p130 = scmp.ne.s32.totalorder %s122, %s125
      %p131 = scmp.eq.s32.totalorder %s9, 0
      %p132 = por %p130, %p131
      %p133 = scmp.ne.s32.totalorder %s122, %s125
      %p134 = scmp.eq.s32.totalorder %s14, 15
      %p135 = por %p133, %p134
      %p136 = scmp.ne.s32.totalorder %s125, %s126
      %p137 = scmp.eq.s32.totalorder %s14, 0
      %p138 = por %p136, %p137
      %p139 = scmp.ne.s32.totalorder %s125, %s126
      %p140 = scmp.eq.s32.totalorder %s15, 15
      %p141 = por %p139, %p140
      %p143 = scmp.ne.s32.totalorder %s126, %s142
      %p144 = scmp.eq.s32.totalorder %s15, 0
      %p145 = por %p143, %p144
      %p146 = scmp.le.s32.totalorder 1, %s9
      %p147 = scmp.lt.s32.totalorder %s9, 17
      %p148 = pnand %p146, %p147
      %p149 = pneg %p148
      // Predicated region
      $region9: #{resnet_forward.10} parent=5 // pred_check
        _
      $region10: #{resnet_forward.10} parent=5 // pred_check_branch
        %151 = sbr.rel (%p148) target = $region12
      $region11: #{resnet_forward.10} parent=5 // pred_region
        %s152 = ssub.s32 %s9, 1
      $region12: #{resnet_forward.10} parent=5 // pred_fallthru
        _
      %p153 = scmp.lt.s32.totalorder %s9, 16
      // Predicated region
      $region13: #{resnet_forward.10} parent=5 // pred_check
        %p154 = pneg %p153
      $region14: #{resnet_forward.10} parent=5 // pred_check_branch
        %156 = sbr.rel (%p154) target = $region16
      $region15: #{resnet_forward.10} parent=5 // pred_region
        // Predicated region
        $region17: #{resnet_forward.10} parent=15 // pred_check
          %p157 = pneg %p50
        $region18: #{resnet_forward.10} parent=15 // pred_check_branch
          %159 = sbr.rel (%p157) target = $region20
        $region19: #{resnet_forward.10} parent=15 // pred_region
          %s160 = smul.u32 4, %s18
          %p161 = scmp.lt.s32.totalorder %s16, 0
          %s162 = scalar_select %p161, %s16, 0
          %p163 = scmp.lt.s32.totalorder %s160, 15
          %s164 = scalar_select %p163, %s160, 15
          %s165 = smul.addr %s162, 16
          %s166 = sadd.s32 %s164, %s165
          %s167 = smul.addr %s166, 4
          %s168 = scalar_lea.vmem %s0, %s167
          %s169 = smul.u32 4, %s18
        $region20: #{resnet_forward.10} parent=15 // pred_fallthru
          _
        // Predicated region
        $region21: #{resnet_forward.10} parent=15 // pred_check
          %p170 = pneg %p78
        $region22: #{resnet_forward.10} parent=15 // pred_check_branch
          %172 = sbr.rel (%p170) target = $region24
        $region23: #{resnet_forward.10} parent=15 // pred_region
          %s173 = sand.u32 %s68, 1
          %s174 = sand.u32 %s68, 1
          %s175 = smul.addr %s174, 512
          %s176 = scalar_lea.vmem [#allocation3], %s175
          %s177 = smul.u32 64, %s18
          %s178 = smul.u32 2, %s17
          %s179 = smul.addr %s177, 8
          %s180 = sadd.s32 %s178, %s179
          %s181 = smul.addr %s180, 4
          %s182 = scalar_lea.vmem %s1, %s181
          // Predicated region
          $region25: #{resnet_forward.10} parent=23 // pred_check
            _
          $region26: #{resnet_forward.10} parent=23 // pred_check_branch
            %184 = sbr.rel (0) target = $region28
          $region27: #{resnet_forward.10} parent=23 // pred_region
            // Predicated region
            $region29: #{resnet_forward.10} parent=27 // pred_check
              _
            $region30: #{resnet_forward.10} parent=27 // pred_check_branch
              %186 = sbr.rel (0) target = $region32
            $region31: #{resnet_forward.10} parent=27 // pred_region
              // Predicated region
              $region44: #{resnet_forward.10} parent=31 // pred_check
                _
              $region45: #{resnet_forward.10} parent=31 // pred_check_branch
                %328 = sbr.rel (0) target = $region47
              $region46: #{resnet_forward.10} parent=31 // pred_region
                loop: start=0, step=1, limit=1
                $region48: #{resnet_forward.10} parent=46 // loop_pre_header
                  _
                $region49: #{resnet_forward.10} parent=46 // loop_header
                  %s330 = sphi 0, %s334
                  %p331 = scmp.ge.s32.totalorder %s330, 1
                  %s335 = sphi %s182, %s182
                  %s336 = sphi %s176, %s176
                $region50: #{resnet_forward.10} parent=46 // loop_header_branch
                  %333 = sbr.rel (%p331) target = $region54
                $region51: #{resnet_forward.10} parent=46 // loop_body
                  %v337 = vld [vmem:[%s335] sm:$0xff]
                  %338 = vst [vmem:[%s336] sm:$0xff] %v337
                  %v339 = vld [vmem:[%s335 + $0x20] sm:$0xff]
                  %340 = vst [vmem:[%s336 + $0x8] sm:$0xff] %v339
                  %v341 = vld [vmem:[%s335 + $0x40] sm:$0xff]
                  %342 = vst [vmem:[%s336 + $0x10] sm:$0xff] %v341
                  %v343 = vld [vmem:[%s335 + $0x60] sm:$0xff]
                  %344 = vst [vmem:[%s336 + $0x18] sm:$0xff] %v343
                  %v345 = vld [vmem:[%s335 + $0x80] sm:$0xff]
                  %346 = vst [vmem:[%s336 + $0x20] sm:$0xff] %v345
                  %v347 = vld [vmem:[%s335 + $0xa0] sm:$0xff]
                  %348 = vst [vmem:[%s336 + $0x28] sm:$0xff] %v347
                  %v349 = vld [vmem:[%s335 + $0xc0] sm:$0xff]
                  %350 = vst [vmem:[%s336 + $0x30] sm:$0xff] %v349
                  %v351 = vld [vmem:[%s335 + $0xe0] sm:$0xff]
                  %352 = vst [vmem:[%s336 + $0x38] sm:$0xff] %v351
                  %v353 = vld [vmem:[%s335 + $0x100] sm:$0xff]
                  %354 = vst [vmem:[%s336 + $0x40] sm:$0xff] %v353
                  %v355 = vld [vmem:[%s335 + $0x120] sm:$0xff]
                  %356 = vst [vmem:[%s336 + $0x48] sm:$0xff] %v355
                  %v357 = vld [vmem:[%s335 + $0x140] sm:$0xff]
                  %358 = vst [vmem:[%s336 + $0x50] sm:$0xff] %v357
                  %v359 = vld [vmem:[%s335 + $0x160] sm:$0xff]
                  %360 = vst [vmem:[%s336 + $0x58] sm:$0xff] %v359
                  %v361 = vld [vmem:[%s335 + $0x180] sm:$0xff]
                  %362 = vst [vmem:[%s336 + $0x60] sm:$0xff] %v361
                  %v363 = vld [vmem:[%s335 + $0x1a0] sm:$0xff]
                  %364 = vst [vmem:[%s336 + $0x68] sm:$0xff] %v363
                  %v365 = vld [vmem:[%s335 + $0x1c0] sm:$0xff]
                  %366 = vst [vmem:[%s336 + $0x70] sm:$0xff] %v365
                  %v367 = vld [vmem:[%s335 + $0x1e0] sm:$0xff]
                  %368 = vst [vmem:[%s336 + $0x78] sm:$0xff] %v367
                  %v369 = vld [vmem:[%s335 + $0x200] sm:$0xff]
                  %370 = vst [vmem:[%s336 + $0x80] sm:$0xff] %v369
                  %v371 = vld [vmem:[%s335 + $0x220] sm:$0xff]
                  %372 = vst [vmem:[%s336 + $0x88] sm:$0xff] %v371
                  %v373 = vld [vmem:[%s335 + $0x240] sm:$0xff]
                  %374 = vst [vmem:[%s336 + $0x90] sm:$0xff] %v373
                  %v375 = vld [vmem:[%s335 + $0x260] sm:$0xff]
                  %376 = vst [vmem:[%s336 + $0x98] sm:$0xff] %v375
                  %v377 = vld [vmem:[%s335 + $0x280] sm:$0xff]
                  %378 = vst [vmem:[%s336 + $0xa0] sm:$0xff] %v377
                  %v379 = vld [vmem:[%s335 + $0x2a0] sm:$0xff]
                  %380 = vst [vmem:[%s336 + $0xa8] sm:$0xff] %v379
                  %v381 = vld [vmem:[%s335 + $0x2c0] sm:$0xff]
                  %382 = vst [vmem:[%s336 + $0xb0] sm:$0xff] %v381
                  %v383 = vld [vmem:[%s335 + $0x2e0] sm:$0xff]
                  %384 = vst [vmem:[%s336 + $0xb8] sm:$0xff] %v383
                  %v385 = vld [vmem:[%s335 + $0x300] sm:$0xff]
                  %386 = vst [vmem:[%s336 + $0xc0] sm:$0xff] %v385
                  %v387 = vld [vmem:[%s335 + $0x320] sm:$0xff]
                  %388 = vst [vmem:[%s336 + $0xc8] sm:$0xff] %v387
                  %v389 = vld [vmem:[%s335 + $0x340] sm:$0xff]
                  %390 = vst [vmem:[%s336 + $0xd0] sm:$0xff] %v389
                  %v391 = vld [vmem:[%s335 + $0x360] sm:$0xff]
                  %392 = vst [vmem:[%s336 + $0xd8] sm:$0xff] %v391
                  %v393 = vld [vmem:[%s335 + $0x380] sm:$0xff]
                  %394 = vst [vmem:[%s336 + $0xe0] sm:$0xff] %v393
                  %v395 = vld [vmem:[%s335 + $0x3a0] sm:$0xff]
                  %396 = vst [vmem:[%s336 + $0xe8] sm:$0xff] %v395
                  %v397 = vld [vmem:[%s335 + $0x3c0] sm:$0xff]
                  %398 = vst [vmem:[%s336 + $0xf0] sm:$0xff] %v397
                  %v399 = vld [vmem:[%s335 + $0x3e0] sm:$0xff]
                  %400 = vst [vmem:[%s336 + $0xf8] sm:$0xff] %v399
                  %v401 = vld [vmem:[%s335 + $0x400] sm:$0xff]
                  %402 = vst [vmem:[%s336 + $0x100] sm:$0xff] %v401
                  %v403 = vld [vmem:[%s335 + $0x420] sm:$0xff]
                  %404 = vst [vmem:[%s336 + $0x108] sm:$0xff] %v403
                  %v405 = vld [vmem:[%s335 + $0x440] sm:$0xff]
                  %406 = vst [vmem:[%s336 + $0x110] sm:$0xff] %v405
                  %v407 = vld [vmem:[%s335 + $0x460] sm:$0xff]
                  %408 = vst [vmem:[%s336 + $0x118] sm:$0xff] %v407
                  %v409 = vld [vmem:[%s335 + $0x480] sm:$0xff]
                  %410 = vst [vmem:[%s336 + $0x120] sm:$0xff] %v409
                  %v411 = vld [vmem:[%s335 + $0x4a0] sm:$0xff]
                  %412 = vst [vmem:[%s336 + $0x128] sm:$0xff] %v411
                  %v413 = vld [vmem:[%s335 + $0x4c0] sm:$0xff]
                  %414 = vst [vmem:[%s336 + $0x130] sm:$0xff] %v413
                  %v415 = vld [vmem:[%s335 + $0x4e0] sm:$0xff]
                  %416 = vst [vmem:[%s336 + $0x138] sm:$0xff] %v415
                  %v417 = vld [vmem:[%s335 + $0x500] sm:$0xff]
                  %418 = vst [vmem:[%s336 + $0x140] sm:$0xff] %v417
                  %v419 = vld [vmem:[%s335 + $0x520] sm:$0xff]
                  %420 = vst [vmem:[%s336 + $0x148] sm:$0xff] %v419
                  %v421 = vld [vmem:[%s335 + $0x540] sm:$0xff]
                  %422 = vst [vmem:[%s336 + $0x150] sm:$0xff] %v421
                  %v423 = vld [vmem:[%s335 + $0x560] sm:$0xff]
                  %424 = vst [vmem:[%s336 + $0x158] sm:$0xff] %v423
                  %v425 = vld [vmem:[%s335 + $0x580] sm:$0xff]
                  %426 = vst [vmem:[%s336 + $0x160] sm:$0xff] %v425
                  %v427 = vld [vmem:[%s335 + $0x5a0] sm:$0xff]
                  %428 = vst [vmem:[%s336 + $0x168] sm:$0xff] %v427
                  %v429 = vld [vmem:[%s335 + $0x5c0] sm:$0xff]
                  %430 = vst [vmem:[%s336 + $0x170] sm:$0xff] %v429
                  %v431 = vld [vmem:[%s335 + $0x5e0] sm:$0xff]
                  %432 = vst [vmem:[%s336 + $0x178] sm:$0xff] %v431
                  %v433 = vld [vmem:[%s335 + $0x600] sm:$0xff]
                  %434 = vst [vmem:[%s336 + $0x180] sm:$0xff] %v433
                  %v435 = vld [vmem:[%s335 + $0x620] sm:$0xff]
                  %436 = vst [vmem:[%s336 + $0x188] sm:$0xff] %v435
                  %v437 = vld [vmem:[%s335 + $0x640] sm:$0xff]
                  %438 = vst [vmem:[%s336 + $0x190] sm:$0xff] %v437
                  %v439 = vld [vmem:[%s335 + $0x660] sm:$0xff]
                  %440 = vst [vmem:[%s336 + $0x198] sm:$0xff] %v439
                  %v441 = vld [vmem:[%s335 + $0x680] sm:$0xff]
                  %442 = vst [vmem:[%s336 + $0x1a0] sm:$0xff] %v441
                  %v443 = vld [vmem:[%s335 + $0x6a0] sm:$0xff]
                  %444 = vst [vmem:[%s336 + $0x1a8] sm:$0xff] %v443
                  %v445 = vld [vmem:[%s335 + $0x6c0] sm:$0xff]
                  %446 = vst [vmem:[%s336 + $0x1b0] sm:$0xff] %v445
                  %v447 = vld [vmem:[%s335 + $0x6e0] sm:$0xff]
                  %448 = vst [vmem:[%s336 + $0x1b8] sm:$0xff] %v447
                  %v449 = vld [vmem:[%s335 + $0x700] sm:$0xff]
                  %450 = vst [vmem:[%s336 + $0x1c0] sm:$0xff] %v449
                  %v451 = vld [vmem:[%s335 + $0x720] sm:$0xff]
                  %452 = vst [vmem:[%s336 + $0x1c8] sm:$0xff] %v451
                  %v453 = vld [vmem:[%s335 + $0x740] sm:$0xff]
                  %454 = vst [vmem:[%s336 + $0x1d0] sm:$0xff] %v453
                  %v455 = vld [vmem:[%s335 + $0x760] sm:$0xff]
                  %456 = vst [vmem:[%s336 + $0x1d8] sm:$0xff] %v455
                  %v457 = vld [vmem:[%s335 + $0x780] sm:$0xff]
                  %458 = vst [vmem:[%s336 + $0x1e0] sm:$0xff] %v457
                  %v459 = vld [vmem:[%s335 + $0x7a0] sm:$0xff]
                  %460 = vst [vmem:[%s336 + $0x1e8] sm:$0xff] %v459
                  %v461 = vld [vmem:[%s335 + $0x7c0] sm:$0xff]
                  %462 = vst [vmem:[%s336 + $0x1f0] sm:$0xff] %v461
                  %v463 = vld [vmem:[%s335 + $0x7e0] sm:$0xff]
                  %464 = vst [vmem:[%s336 + $0x1f8] sm:$0xff] %v463
                $region52: #{resnet_forward.10} parent=46 // loop_footer
                  %s334 = sadd.s32 1, %s330
                $region53: #{resnet_forward.10} parent=46 // loop_footer_branch
                  %329 = sbr.rel target = $region49
                $region54: #{resnet_forward.10} parent=46 // loop_exit
                  _
              $region47: #{resnet_forward.10} parent=31 // pred_fallthru
                _
              // Predicated region
              $region55: #{resnet_forward.10} parent=31 // pred_check
                _
              $region56: #{resnet_forward.10} parent=31 // pred_check_branch
                %466 = sbr.rel target = $region58
              $region57: #{resnet_forward.10} parent=31 // pred_region
                _
              $region58: #{resnet_forward.10} parent=31 // pred_fallthru
                _
            $region32: #{resnet_forward.10} parent=27 // pred_fallthru
              _
            // Predicated region
            $region33: #{resnet_forward.10} parent=27 // pred_check
              _
            $region34: #{resnet_forward.10} parent=27 // pred_check_branch
              %188 = sbr.rel target = $region36
            $region35: #{resnet_forward.10} parent=27 // pred_region
              %s190 = ssub.s32 256, 1
              loop: start=0, step=1, limit=1
              $region37: #{resnet_forward.10} parent=35 // loop_pre_header
                _
              $region38: #{resnet_forward.10} parent=35 // loop_header
                %s192 = sphi 0, %s196
                %p193 = scmp.ge.s32.totalorder %s192, 1
                %s197 = sphi %s182, %s182
                %s198 = sphi %s176, %s176
              $region39: #{resnet_forward.10} parent=35 // loop_header_branch
                %195 = sbr.rel (%p193) target = $region43
              $region40: #{resnet_forward.10} parent=35 // loop_body
                %v199 = vld [vmem:[%s197] sm:%s190]
                %200 = vst [vmem:[%s198] sm:%s190] %v199
                %v201 = vld [vmem:[%s197 + $0x20] sm:%s190]
                %202 = vst [vmem:[%s198 + $0x8] sm:%s190] %v201
                %v203 = vld [vmem:[%s197 + $0x40] sm:%s190]
                %204 = vst [vmem:[%s198 + $0x10] sm:%s190] %v203
                %v205 = vld [vmem:[%s197 + $0x60] sm:%s190]
                %206 = vst [vmem:[%s198 + $0x18] sm:%s190] %v205
                %v207 = vld [vmem:[%s197 + $0x80] sm:%s190]
                %208 = vst [vmem:[%s198 + $0x20] sm:%s190] %v207
                %v209 = vld [vmem:[%s197 + $0xa0] sm:%s190]
                %210 = vst [vmem:[%s198 + $0x28] sm:%s190] %v209
                %v211 = vld [vmem:[%s197 + $0xc0] sm:%s190]
                %212 = vst [vmem:[%s198 + $0x30] sm:%s190] %v211
                %v213 = vld [vmem:[%s197 + $0xe0] sm:%s190]
                %214 = vst [vmem:[%s198 + $0x38] sm:%s190] %v213
                %v215 = vld [vmem:[%s197 + $0x100] sm:%s190]
                %216 = vst [vmem:[%s198 + $0x40] sm:%s190] %v215
                %v217 = vld [vmem:[%s197 + $0x120] sm:%s190]
                %218 = vst [vmem:[%s198 + $0x48] sm:%s190] %v217
                %v219 = vld [vmem:[%s197 + $0x140] sm:%s190]
                %220 = vst [vmem:[%s198 + $0x50] sm:%s190] %v219
                %v221 = vld [vmem:[%s197 + $0x160] sm:%s190]
                %222 = vst [vmem:[%s198 + $0x58] sm:%s190] %v221
                %v223 = vld [vmem:[%s197 + $0x180] sm:%s190]
                %224 = vst [vmem:[%s198 + $0x60] sm:%s190] %v223
                %v225 = vld [vmem:[%s197 + $0x1a0] sm:%s190]
                %226 = vst [vmem:[%s198 + $0x68] sm:%s190] %v225
                %v227 = vld [vmem:[%s197 + $0x1c0] sm:%s190]
                %228 = vst [vmem:[%s198 + $0x70] sm:%s190] %v227
                %v229 = vld [vmem:[%s197 + $0x1e0] sm:%s190]
                %230 = vst [vmem:[%s198 + $0x78] sm:%s190] %v229
                %v231 = vld [vmem:[%s197 + $0x200] sm:%s190]
                %232 = vst [vmem:[%s198 + $0x80] sm:%s190] %v231
                %v233 = vld [vmem:[%s197 + $0x220] sm:%s190]
                %234 = vst [vmem:[%s198 + $0x88] sm:%s190] %v233
                %v235 = vld [vmem:[%s197 + $0x240] sm:%s190]
                %236 = vst [vmem:[%s198 + $0x90] sm:%s190] %v235
                %v237 = vld [vmem:[%s197 + $0x260] sm:%s190]
                %238 = vst [vmem:[%s198 + $0x98] sm:%s190] %v237
                %v239 = vld [vmem:[%s197 + $0x280] sm:%s190]
                %240 = vst [vmem:[%s198 + $0xa0] sm:%s190] %v239
                %v241 = vld [vmem:[%s197 + $0x2a0] sm:%s190]
                %242 = vst [vmem:[%s198 + $0xa8] sm:%s190] %v241
                %v243 = vld [vmem:[%s197 + $0x2c0] sm:%s190]
                %244 = vst [vmem:[%s198 + $0xb0] sm:%s190] %v243
                %v245 = vld [vmem:[%s197 + $0x2e0] sm:%s190]
                %246 = vst [vmem:[%s198 + $0xb8] sm:%s190] %v245
                %v247 = vld [vmem:[%s197 + $0x300] sm:%s190]
                %248 = vst [vmem:[%s198 + $0xc0] sm:%s190] %v247
                %v249 = vld [vmem:[%s197 + $0x320] sm:%s190]
                %250 = vst [vmem:[%s198 + $0xc8] sm:%s190] %v249
                %v251 = vld [vmem:[%s197 + $0x340] sm:%s190]
                %252 = vst [vmem:[%s198 + $0xd0] sm:%s190] %v251
                %v253 = vld [vmem:[%s197 + $0x360] sm:%s190]
                %254 = vst [vmem:[%s198 + $0xd8] sm:%s190] %v253
                %v255 = vld [vmem:[%s197 + $0x380] sm:%s190]
                %256 = vst [vmem:[%s198 + $0xe0] sm:%s190] %v255
                %v257 = vld [vmem:[%s197 + $0x3a0] sm:%s190]
                %258 = vst [vmem:[%s198 + $0xe8] sm:%s190] %v257
                %v259 = vld [vmem:[%s197 + $0x3c0] sm:%s190]
                %260 = vst [vmem:[%s198 + $0xf0] sm:%s190] %v259
                %v261 = vld [vmem:[%s197 + $0x3e0] sm:%s190]
                %262 = vst [vmem:[%s198 + $0xf8] sm:%s190] %v261
                %v263 = vld [vmem:[%s197 + $0x400] sm:%s190]
                %264 = vst [vmem:[%s198 + $0x100] sm:%s190] %v263
                %v265 = vld [vmem:[%s197 + $0x420] sm:%s190]
                %266 = vst [vmem:[%s198 + $0x108] sm:%s190] %v265
                %v267 = vld [vmem:[%s197 + $0x440] sm:%s190]
                %268 = vst [vmem:[%s198 + $0x110] sm:%s190] %v267
                %v269 = vld [vmem:[%s197 + $0x460] sm:%s190]
                %270 = vst [vmem:[%s198 + $0x118] sm:%s190] %v269
                %v271 = vld [vmem:[%s197 + $0x480] sm:%s190]
                %272 = vst [vmem:[%s198 + $0x120] sm:%s190] %v271
                %v273 = vld [vmem:[%s197 + $0x4a0] sm:%s190]
                %274 = vst [vmem:[%s198 + $0x128] sm:%s190] %v273
                %v275 = vld [vmem:[%s197 + $0x4c0] sm:%s190]
                %276 = vst [vmem:[%s198 + $0x130] sm:%s190] %v275
                %v277 = vld [vmem:[%s197 + $0x4e0] sm:%s190]
                %278 = vst [vmem:[%s198 + $0x138] sm:%s190] %v277
                %v279 = vld [vmem:[%s197 + $0x500] sm:%s190]
                %280 = vst [vmem:[%s198 + $0x140] sm:%s190] %v279
                %v281 = vld [vmem:[%s197 + $0x520] sm:%s190]
                %282 = vst [vmem:[%s198 + $0x148] sm:%s190] %v281
                %v283 = vld [vmem:[%s197 + $0x540] sm:%s190]
                %284 = vst [vmem:[%s198 + $0x150] sm:%s190] %v283
                %v285 = vld [vmem:[%s197 + $0x560] sm:%s190]
                %286 = vst [vmem:[%s198 + $0x158] sm:%s190] %v285
                %v287 = vld [vmem:[%s197 + $0x580] sm:%s190]
                %288 = vst [vmem:[%s198 + $0x160] sm:%s190] %v287
                %v289 = vld [vmem:[%s197 + $0x5a0] sm:%s190]
                %290 = vst [vmem:[%s198 + $0x168] sm:%s190] %v289
                %v291 = vld [vmem:[%s197 + $0x5c0] sm:%s190]
                %292 = vst [vmem:[%s198 + $0x170] sm:%s190] %v291
                %v293 = vld [vmem:[%s197 + $0x5e0] sm:%s190]
                %294 = vst [vmem:[%s198 + $0x178] sm:%s190] %v293
                %v295 = vld [vmem:[%s197 + $0x600] sm:%s190]
                %296 = vst [vmem:[%s198 + $0x180] sm:%s190] %v295
                %v297 = vld [vmem:[%s197 + $0x620] sm:%s190]
                %298 = vst [vmem:[%s198 + $0x188] sm:%s190] %v297
                %v299 = vld [vmem:[%s197 + $0x640] sm:%s190]
                %300 = vst [vmem:[%s198 + $0x190] sm:%s190] %v299
                %v301 = vld [vmem:[%s197 + $0x660] sm:%s190]
                %302 = vst [vmem:[%s198 + $0x198] sm:%s190] %v301
                %v303 = vld [vmem:[%s197 + $0x680] sm:%s190]
                %304 = vst [vmem:[%s198 + $0x1a0] sm:%s190] %v303
                %v305 = vld [vmem:[%s197 + $0x6a0] sm:%s190]
                %306 = vst [vmem:[%s198 + $0x1a8] sm:%s190] %v305
                %v307 = vld [vmem:[%s197 + $0x6c0] sm:%s190]
                %308 = vst [vmem:[%s198 + $0x1b0] sm:%s190] %v307
                %v309 = vld [vmem:[%s197 + $0x6e0] sm:%s190]
                %310 = vst [vmem:[%s198 + $0x1b8] sm:%s190] %v309
                %v311 = vld [vmem:[%s197 + $0x700] sm:%s190]
                %312 = vst [vmem:[%s198 + $0x1c0] sm:%s190] %v311
                %v313 = vld [vmem:[%s197 + $0x720] sm:%s190]
                %314 = vst [vmem:[%s198 + $0x1c8] sm:%s190] %v313
                %v315 = vld [vmem:[%s197 + $0x740] sm:%s190]
                %316 = vst [vmem:[%s198 + $0x1d0] sm:%s190] %v315
                %v317 = vld [vmem:[%s197 + $0x760] sm:%s190]
                %318 = vst [vmem:[%s198 + $0x1d8] sm:%s190] %v317
                %v319 = vld [vmem:[%s197 + $0x780] sm:%s190]
                %320 = vst [vmem:[%s198 + $0x1e0] sm:%s190] %v319
                %v321 = vld [vmem:[%s197 + $0x7a0] sm:%s190]
                %322 = vst [vmem:[%s198 + $0x1e8] sm:%s190] %v321
                %v323 = vld [vmem:[%s197 + $0x7c0] sm:%s190]
                %324 = vst [vmem:[%s198 + $0x1f0] sm:%s190] %v323
                %v325 = vld [vmem:[%s197 + $0x7e0] sm:%s190]
                %326 = vst [vmem:[%s198 + $0x1f8] sm:%s190] %v325
              $region41: #{resnet_forward.10} parent=35 // loop_footer
                %s196 = sadd.s32 1, %s192
              $region42: #{resnet_forward.10} parent=35 // loop_footer_branch
                %191 = sbr.rel target = $region38
              $region43: #{resnet_forward.10} parent=35 // loop_exit
                _
            $region36: #{resnet_forward.10} parent=27 // pred_fallthru
              _
          $region28: #{resnet_forward.10} parent=23 // pred_fallthru
            _
          %467 = vnop
        $region24: #{resnet_forward.10} parent=15 // pred_fallthru
          _
        // Predicated region
        $region59: #{resnet_forward.10} parent=15 // pred_check
          %p468 = pneg %p104
        $region60: #{resnet_forward.10} parent=15 // pred_check_branch
          %470 = sbr.rel (%p468) target = $region62
        $region61: #{resnet_forward.10} parent=15 // pred_region
          %s471 = smul.u32 2, %s17
          %p472 = scmp.lt.s32.totalorder %s471, 7
          %s473 = scalar_select %p472, %s471, 7
          %s474 = scalar_lea.vmem %s2, %s473
          %s475 = smul.u32 2, %s17
        $region62: #{resnet_forward.10} parent=15 // pred_fallthru
          _
      $region16: #{resnet_forward.10} parent=5 // pred_fallthru
        _
      %p476 = scmp.le.s32.totalorder 1, %s9
      %p477 = scmp.lt.s32.totalorder %s9, 17
      %p478 = pnand %p476, %p477
      %p479 = pneg %p478
      // Predicated region
      $region63: #{resnet_forward.10} parent=5 // pred_check
        _
      $region64: #{resnet_forward.10} parent=5 // pred_check_branch
        %481 = sbr.rel (%p478) target = $region66
      $region65: #{resnet_forward.10} parent=5 // pred_region
        %s482 = ssub.s32 %s9, 1
        %s483 = sand.u32 %s71, 1
        %s484 = sand.u32 %s71, 1
        %s485 = smul.addr %s484, 512
        %s486 = scalar_lea.vmem [#allocation3], %s485
        // Predicated region
        $region67: #{resnet_forward.10} parent=65 // pred_check
          %p487 = pneg %p84
        $region68: #{resnet_forward.10} parent=65 // pred_check_branch
          %489 = sbr.rel (%p487) target = $region70
        $region69: #{resnet_forward.10} parent=65 // pred_region
          _
        $region70: #{resnet_forward.10} parent=65 // pred_fallthru
          _
        %s490 = smul.u32 4, %s21
        %p491 = scmp.lt.s32.totalorder %s19, 0
        %s492 = scalar_select %p491, %s19, 0
        %p493 = scmp.lt.s32.totalorder %s490, 15
        %s494 = scalar_select %p493, %s490, 15
        %s495 = smul.addr %s492, 16
        %s496 = sadd.s32 %s494, %s495
        %s497 = smul.addr %s496, 4
        %s498 = scalar_lea.vmem %s0, %s497
        %p499 = pneg %p56
        %p500 = pneg %p53
        %s501 = sand.u32 %s71, 1
        %s502 = sand.u32 %s71, 1
        %s503 = smul.addr %s502, 512
        %s504 = scalar_lea.vmem [#allocation3], %s503
        %p505 = pneg %p84
        %p506 = pneg %p81
        %s507 = smul.u32 2, %s20
        %p508 = scmp.lt.s32.totalorder %s507, 7
        %s509 = scalar_select %p508, %s507, 7
        %s510 = scalar_lea.vmem %s2, %s509
        %p511 = pneg %p110
        %p512 = pneg %p107
        %p513 = pneg %p138
        %p514 = pneg %p135
        %s515 = smul.u32 2, %s20
        %p516 = scmp.lt.s32.totalorder %s19, 0
        %s517 = scalar_select %p516, %s19, 0
        %p518 = scmp.lt.s32.totalorder %s515, 7
        %s519 = scalar_select %p518, %s515, 7
        %s520 = smul.addr %s517, 8
        %s521 = sadd.s32 %s519, %s520
        %s522 = smul.addr %s521, 8
        %s523 = scalar_lea.vmem %s3, %s522
        %s524 = smul.u32 4, %s21
        %p525 = scmp.lt.s32.totalorder %s19, 0
        %s526 = scalar_select %p525, %s19, 0
        %p527 = scmp.lt.s32.totalorder %s524, 15
        %s528 = scalar_select %p527, %s524, 15
        %s529 = smul.addr %s526, 16
        %s530 = sadd.s32 %s528, %s529
        %s531 = smul.addr %s530, 4
        %s532 = scalar_lea.vmem %s0, %s531
        %s533 = smul.u32 4, %s21
        %s534 = smul.u32 64, %s21
        %s535 = smul.u32 2, %s20
        %s536 = smul.u32 2, %s20
        %p537 = scmp.lt.s32.totalorder %s536, 7
        %s538 = scalar_select %p537, %s536, 7
        %s539 = scalar_lea.vmem %s2, %s538
        %s540 = smul.u32 2, %s20
        %s541 = smul.u32 2, %s20
        %p542 = scmp.lt.s32.totalorder %s19, 0
        %s543 = scalar_select %p542, %s19, 0
        %p544 = scmp.lt.s32.totalorder %s541, 7
        %s545 = scalar_select %p544, %s541, 7
        %s546 = smul.addr %s543, 8
        %s547 = sadd.s32 %s545, %s546
        %s548 = smul.addr %s547, 8
        %s549 = scalar_lea.vmem %s3, %s548
        %s550 = smul.u32 2, %s20
        %p551 = scmp.eq.s32.totalorder %s21, 0
        // Predicated region
        $region71: #{resnet_forward.10} parent=65 // pred_check
          %p552 = pneg %p551
        $region72: #{resnet_forward.10} parent=65 // pred_check_branch
          %554 = sbr.rel (%p552) target = $region74
        $region73: #{resnet_forward.10} parent=65 // pred_region
          %555 = vst [vmem:[#allocation2] sm:$0xff] 0.0
          %556 = vst [vmem:[#allocation2 + $0x8] sm:$0xff] 0.0
        $region74: #{resnet_forward.10} parent=65 // pred_fallthru
          _
        %v557 = vld [vmem:[#allocation2] sm:$0xff]
        %v558 = vld [vmem:[#allocation2 + $0x8] sm:$0xff]
        %v559 = vld [vmem:[%s532] sm:$0xff]
        %v560 = vld [vmem:[%s532 + $0x8] sm:$0xff]
        %v561 = vld [vmem:[%s486] sm:$0xff]
        %v562 = vld [vmem:[%s486 + $0x8] sm:$0xff]
        %v563 = vld [vmem:[%s486 + $0x10] sm:$0xff]
        %v564 = vld [vmem:[%s486 + $0x18] sm:$0xff]
        %v565 = vld [vmem:[%s486 + $0x20] sm:$0xff]
        %v566 = vld [vmem:[%s486 + $0x28] sm:$0xff]
        %v567 = vld [vmem:[%s486 + $0x30] sm:$0xff]
        %v568 = vld [vmem:[%s486 + $0x38] sm:$0xff]
        %v569 = vld [vmem:[%s486 + $0x40] sm:$0xff]
        %v570 = vld [vmem:[%s486 + $0x48] sm:$0xff]
        %v571 = vld [vmem:[%s486 + $0x50] sm:$0xff]
        %v572 = vld [vmem:[%s486 + $0x58] sm:$0xff]
        %v573 = vld [vmem:[%s486 + $0x60] sm:$0xff]
        %v574 = vld [vmem:[%s486 + $0x68] sm:$0xff]
        %v575 = vld [vmem:[%s486 + $0x70] sm:$0xff]
        %v576 = vld [vmem:[%s486 + $0x78] sm:$0xff]
        %v577 = vld [vmem:[%s486 + $0x80] sm:$0xff]
        %v578 = vld [vmem:[%s486 + $0x88] sm:$0xff]
        %v579 = vld [vmem:[%s486 + $0x90] sm:$0xff]
        %v580 = vld [vmem:[%s486 + $0x98] sm:$0xff]
        %v581 = vld [vmem:[%s486 + $0xa0] sm:$0xff]
        %v582 = vld [vmem:[%s486 + $0xa8] sm:$0xff]
        %v583 = vld [vmem:[%s486 + $0xb0] sm:$0xff]
        %v584 = vld [vmem:[%s486 + $0xb8] sm:$0xff]
        %v585 = vld [vmem:[%s486 + $0xc0] sm:$0xff]
        %v586 = vld [vmem:[%s486 + $0xc8] sm:$0xff]
        %v587 = vld [vmem:[%s486 + $0xd0] sm:$0xff]
        %v588 = vld [vmem:[%s486 + $0xd8] sm:$0xff]
        %v589 = vld [vmem:[%s486 + $0xe0] sm:$0xff]
        %v590 = vld [vmem:[%s486 + $0xe8] sm:$0xff]
        %v591 = vld [vmem:[%s486 + $0xf0] sm:$0xff]
        %v592 = vld [vmem:[%s486 + $0xf8] sm:$0xff]
        %v593 = vld [vmem:[%s486 + $0x100] sm:$0xff]
        %v594 = vld [vmem:[%s486 + $0x108] sm:$0xff]
        %v595 = vld [vmem:[%s486 + $0x110] sm:$0xff]
        %v596 = vld [vmem:[%s486 + $0x118] sm:$0xff]
        %v597 = vld [vmem:[%s486 + $0x120] sm:$0xff]
        %v598 = vld [vmem:[%s486 + $0x128] sm:$0xff]
        %v599 = vld [vmem:[%s486 + $0x130] sm:$0xff]
        %v600 = vld [vmem:[%s486 + $0x138] sm:$0xff]
        %v601 = vld [vmem:[%s486 + $0x140] sm:$0xff]
        %v602 = vld [vmem:[%s486 + $0x148] sm:$0xff]
        %v603 = vld [vmem:[%s486 + $0x150] sm:$0xff]
        %v604 = vld [vmem:[%s486 + $0x158] sm:$0xff]
        %v605 = vld [vmem:[%s486 + $0x160] sm:$0xff]
        %v606 = vld [vmem:[%s486 + $0x168] sm:$0xff]
        %v607 = vld [vmem:[%s486 + $0x170] sm:$0xff]
        %v608 = vld [vmem:[%s486 + $0x178] sm:$0xff]
        %v609 = vld [vmem:[%s486 + $0x180] sm:$0xff]
        %v610 = vld [vmem:[%s486 + $0x188] sm:$0xff]
        %v611 = vld [vmem:[%s486 + $0x190] sm:$0xff]
        %v612 = vld [vmem:[%s486 + $0x198] sm:$0xff]
        %v613 = vld [vmem:[%s486 + $0x1a0] sm:$0xff]
        %v614 = vld [vmem:[%s486 + $0x1a8] sm:$0xff]
        %v615 = vld [vmem:[%s486 + $0x1b0] sm:$0xff]
        %v616 = vld [vmem:[%s486 + $0x1b8] sm:$0xff]
        %v617 = vld [vmem:[%s486 + $0x1c0] sm:$0xff]
        %v618 = vld [vmem:[%s486 + $0x1c8] sm:$0xff]
        %v619 = vld [vmem:[%s486 + $0x1d0] sm:$0xff]
        %v620 = vld [vmem:[%s486 + $0x1d8] sm:$0xff]
        %v621 = vld [vmem:[%s486 + $0x1e0] sm:$0xff]
        %v622 = vld [vmem:[%s486 + $0x1e8] sm:$0xff]
        %v623 = vld [vmem:[%s486 + $0x1f0] sm:$0xff]
        %v624 = vld [vmem:[%s486 + $0x1f8] sm:$0xff]
        %v627 = vunpack.c.l.b16 %v559
        %v628 = vunpack.c.h.b16 %v559
        %v629 = vunpack.c.l.b16 %v560
        %v630 = vunpack.c.h.b16 %v560
        %v631 = vpack.c.b16 %v627, %v627
        %v632 = vpack.c.b16 %v628, %v628
        %v633 = vpack.c.b16 %v629, %v629
        %v634 = vpack.c.b16 %v630, %v630
        %v703 = vunpack.c.l.b16 %v561
        %v704 = vunpack.c.h.b16 %v561
        %v705 = vunpack.c.l.b16 %v562
        %v706 = vunpack.c.h.b16 %v562
        %v707 = vunpack.c.l.b16 %v563
        %v708 = vunpack.c.h.b16 %v563
        %v709 = vunpack.c.l.b16 %v564
        %v710 = vunpack.c.h.b16 %v564
        %v711 = vunpack.c.l.b16 %v565
        %v712 = vunpack.c.h.b16 %v565
        %v713 = vunpack.c.l.b16 %v566
        %v714 = vunpack.c.h.b16 %v566
        %v715 = vunpack.c.l.b16 %v567
        %v716 = vunpack.c.h.b16 %v567
        %v717 = vunpack.c.l.b16 %v568
        %v718 = vunpack.c.h.b16 %v568
        %v719 = vunpack.c.l.b16 %v569
        %v720 = vunpack.c.h.b16 %v569
        %v721 = vunpack.c.l.b16 %v570
        %v722 = vunpack.c.h.b16 %v570
        %v723 = vunpack.c.l.b16 %v571
        %v724 = vunpack.c.h.b16 %v571
        %v725 = vunpack.c.l.b16 %v572
        %v726 = vunpack.c.h.b16 %v572
        %v727 = vunpack.c.l.b16 %v573
        %v728 = vunpack.c.h.b16 %v573
        %v729 = vunpack.c.l.b16 %v574
        %v730 = vunpack.c.h.b16 %v574
        %v731 = vunpack.c.l.b16 %v575
        %v732 = vunpack.c.h.b16 %v575
        %v733 = vunpack.c.l.b16 %v576
        %v734 = vunpack.c.h.b16 %v576
        %v735 = vunpack.c.l.b16 %v577
        %v736 = vunpack.c.h.b16 %v577
        %v737 = vunpack.c.l.b16 %v578
        %v738 = vunpack.c.h.b16 %v578
        %v739 = vunpack.c.l.b16 %v579
        %v740 = vunpack.c.h.b16 %v579
        %v741 = vunpack.c.l.b16 %v580
        %v742 = vunpack.c.h.b16 %v580
        %v743 = vunpack.c.l.b16 %v581
        %v744 = vunpack.c.h.b16 %v581
        %v745 = vunpack.c.l.b16 %v582
        %v746 = vunpack.c.h.b16 %v582
        %v747 = vunpack.c.l.b16 %v583
        %v748 = vunpack.c.h.b16 %v583
        %v749 = vunpack.c.l.b16 %v584
        %v750 = vunpack.c.h.b16 %v584
        %v751 = vunpack.c.l.b16 %v585
        %v752 = vunpack.c.h.b16 %v585
        %v753 = vunpack.c.l.b16 %v586
        %v754 = vunpack.c.h.b16 %v586
        %v755 = vunpack.c.l.b16 %v587
        %v756 = vunpack.c.h.b16 %v587
        %v757 = vunpack.c.l.b16 %v588
        %v758 = vunpack.c.h.b16 %v588
        %v759 = vunpack.c.l.b16 %v589
        %v760 = vunpack.c.h.b16 %v589
        %v761 = vunpack.c.l.b16 %v590
        %v762 = vunpack.c.h.b16 %v590
        %v763 = vunpack.c.l.b16 %v591
        %v764 = vunpack.c.h.b16 %v591
        %v765 = vunpack.c.l.b16 %v592
        %v766 = vunpack.c.h.b16 %v592
        %v767 = vunpack.c.l.b16 %v593
        %v768 = vunpack.c.h.b16 %v593
        %v769 = vunpack.c.l.b16 %v594
        %v770 = vunpack.c.h.b16 %v594
        %v771 = vunpack.c.l.b16 %v595
        %v772 = vunpack.c.h.b16 %v595
        %v773 = vunpack.c.l.b16 %v596
        %v774 = vunpack.c.h.b16 %v596
        %v775 = vunpack.c.l.b16 %v597
        %v776 = vunpack.c.h.b16 %v597
        %v777 = vunpack.c.l.b16 %v598
        %v778 = vunpack.c.h.b16 %v598
        %v779 = vunpack.c.l.b16 %v599
        %v780 = vunpack.c.h.b16 %v599
        %v781 = vunpack.c.l.b16 %v600
        %v782 = vunpack.c.h.b16 %v600
        %v783 = vunpack.c.l.b16 %v601
        %v784 = vunpack.c.h.b16 %v601
        %v785 = vunpack.c.l.b16 %v602
        %v786 = vunpack.c.h.b16 %v602
        %v787 = vunpack.c.l.b16 %v603
        %v788 = vunpack.c.h.b16 %v603
        %v789 = vunpack.c.l.b16 %v604
        %v790 = vunpack.c.h.b16 %v604
        %v791 = vunpack.c.l.b16 %v605
        %v792 = vunpack.c.h.b16 %v605
        %v793 = vunpack.c.l.b16 %v606
        %v794 = vunpack.c.h.b16 %v606
        %v795 = vunpack.c.l.b16 %v607
        %v796 = vunpack.c.h.b16 %v607
        %v797 = vunpack.c.l.b16 %v608
        %v798 = vunpack.c.h.b16 %v608
        %v799 = vunpack.c.l.b16 %v609
        %v800 = vunpack.c.h.b16 %v609
        %v801 = vunpack.c.l.b16 %v610
        %v802 = vunpack.c.h.b16 %v610
        %v803 = vunpack.c.l.b16 %v611
        %v804 = vunpack.c.h.b16 %v611
        %v805 = vunpack.c.l.b16 %v612
        %v806 = vunpack.c.h.b16 %v612
        %v807 = vunpack.c.l.b16 %v613
        %v808 = vunpack.c.h.b16 %v613
        %v809 = vunpack.c.l.b16 %v614
        %v810 = vunpack.c.h.b16 %v614
        %v811 = vunpack.c.l.b16 %v615
        %v812 = vunpack.c.h.b16 %v615
        %v813 = vunpack.c.l.b16 %v616
        %v814 = vunpack.c.h.b16 %v616
        %v815 = vunpack.c.l.b16 %v617
        %v816 = vunpack.c.h.b16 %v617
        %v817 = vunpack.c.l.b16 %v618
        %v818 = vunpack.c.h.b16 %v618
        %v819 = vunpack.c.l.b16 %v619
        %v820 = vunpack.c.h.b16 %v619
        %v821 = vunpack.c.l.b16 %v620
        %v822 = vunpack.c.h.b16 %v620
        %v823 = vunpack.c.l.b16 %v621
        %v824 = vunpack.c.h.b16 %v621
        %v825 = vunpack.c.l.b16 %v622
        %v826 = vunpack.c.h.b16 %v622
        %v827 = vunpack.c.l.b16 %v623
        %v828 = vunpack.c.h.b16 %v623
        %v829 = vunpack.c.l.b16 %v624
        %v830 = vunpack.c.h.b16 %v624
        %v831 = vpack.c.b16 %v705, %v703
        %v832 = vpack.c.b16 %v706, %v704
        %v833 = vpack.c.b16 %v709, %v707
        %v834 = vpack.c.b16 %v710, %v708
        %v835 = vpack.c.b16 %v713, %v711
        %v836 = vpack.c.b16 %v714, %v712
        %v837 = vpack.c.b16 %v717, %v715
        %v838 = vpack.c.b16 %v718, %v716
        %v839 = vpack.c.b16 %v721, %v719
        %v840 = vpack.c.b16 %v722, %v720
        %v841 = vpack.c.b16 %v725, %v723
        %v842 = vpack.c.b16 %v726, %v724
        %v843 = vpack.c.b16 %v729, %v727
        %v844 = vpack.c.b16 %v730, %v728
        %v845 = vpack.c.b16 %v733, %v731
        %v846 = vpack.c.b16 %v734, %v732
        %v847 = vpack.c.b16 %v737, %v735
        %v848 = vpack.c.b16 %v738, %v736
        %v849 = vpack.c.b16 %v741, %v739
        %v850 = vpack.c.b16 %v742, %v740
        %v851 = vpack.c.b16 %v745, %v743
        %v852 = vpack.c.b16 %v746, %v744
        %v853 = vpack.c.b16 %v749, %v747
        %v854 = vpack.c.b16 %v750, %v748
        %v855 = vpack.c.b16 %v753, %v751
        %v856 = vpack.c.b16 %v754, %v752
        %v857 = vpack.c.b16 %v757, %v755
        %v858 = vpack.c.b16 %v758, %v756
        %v859 = vpack.c.b16 %v761, %v759
        %v860 = vpack.c.b16 %v762, %v760
        %v861 = vpack.c.b16 %v765, %v763
        %v862 = vpack.c.b16 %v766, %v764
        %v863 = vpack.c.b16 %v769, %v767
        %v864 = vpack.c.b16 %v770, %v768
        %v865 = vpack.c.b16 %v773, %v771
        %v866 = vpack.c.b16 %v774, %v772
        %v867 = vpack.c.b16 %v777, %v775
        %v868 = vpack.c.b16 %v778, %v776
        %v869 = vpack.c.b16 %v781, %v779
        %v870 = vpack.c.b16 %v782, %v780
        %v871 = vpack.c.b16 %v785, %v783
        %v872 = vpack.c.b16 %v786, %v784
        %v873 = vpack.c.b16 %v789, %v787
        %v874 = vpack.c.b16 %v790, %v788
        %v875 = vpack.c.b16 %v793, %v791
        %v876 = vpack.c.b16 %v794, %v792
        %v877 = vpack.c.b16 %v797, %v795
        %v878 = vpack.c.b16 %v798, %v796
        %v879 = vpack.c.b16 %v801, %v799
        %v880 = vpack.c.b16 %v802, %v800
        %v881 = vpack.c.b16 %v805, %v803
        %v882 = vpack.c.b16 %v806, %v804
        %v883 = vpack.c.b16 %v809, %v807
        %v884 = vpack.c.b16 %v810, %v808
        %v885 = vpack.c.b16 %v813, %v811
        %v886 = vpack.c.b16 %v814, %v812
        %v887 = vpack.c.b16 %v817, %v815
        %v888 = vpack.c.b16 %v818, %v816
        %v889 = vpack.c.b16 %v821, %v819
        %v890 = vpack.c.b16 %v822, %v820
        %v891 = vpack.c.b16 %v825, %v823
        %v892 = vpack.c.b16 %v826, %v824
        %v893 = vpack.c.b16 %v829, %v827
        %v894 = vpack.c.b16 %v830, %v828
        %959 = vmatprep.subr.bf16.mxu0 %v846
        %960 = vmatpush1.bf16.msra.mxu0 %v845
        %961 = vmatprep.subr.bf16.mxu0 %v844
        %962 = vmatpush1.bf16.msra.mxu0 %v843
        %963 = vmatprep.subr.bf16.mxu0 %v842
        %964 = vmatpush1.bf16.msra.mxu0 %v841
        %965 = vmatprep.subr.bf16.mxu0 %v840
        %966 = vmatpush1.bf16.msra.mxu0 %v839
        %967 = vmatprep.subr.bf16.mxu0 %v838
        %968 = vmatpush1.bf16.msra.mxu0 %v837
        %969 = vmatprep.subr.bf16.mxu0 %v836
        %970 = vmatpush1.bf16.msra.mxu0 %v835
        %971 = vmatprep.subr.bf16.mxu0 %v834
        %972 = vmatpush1.bf16.msra.mxu0 %v833
        %973 = vmatprep.subr.bf16.mxu0 %v832
        %974 = vmatpush1.bf16.msra.mxu0 %v831
        %975 = vmatprep.subr.bf16.mxu0 %v862
        %976 = vmatpush2.bf16.msra.mxu0 %v861
        %977 = vmatprep.subr.bf16.mxu0 %v860
        %978 = vmatpush2.bf16.msra.mxu0 %v859
        %979 = vmatprep.subr.bf16.mxu0 %v858
        %980 = vmatpush2.bf16.msra.mxu0 %v857
        %981 = vmatprep.subr.bf16.mxu0 %v856
        %982 = vmatpush2.bf16.msra.mxu0 %v855
        %983 = vmatprep.subr.bf16.mxu0 %v854
        %984 = vmatpush2.bf16.msra.mxu0 %v853
        %985 = vmatprep.subr.bf16.mxu0 %v852
        %986 = vmatpush2.bf16.msra.mxu0 %v851
        %987 = vmatprep.subr.bf16.mxu0 %v850
        %988 = vmatpush2.bf16.msra.mxu0 %v849
        %989 = vmatprep.subr.bf16.mxu0 %v848
        %990 = vmatpush2.bf16.msra.mxu0 %v847
        %991 = vmatprep.mubr.bf16.mxu0 %v632
        %992 = vmatmul.mubr.bf16.gmra.mxu0 %v631
        %v993 = vpop.f32.mrf.mxu0
        %v994 = vadd.f32 0.0, %v993
        %v995 = vpop.f32.mrf.mxu0
        %v996 = vadd.f32 0.0, %v995
        %v997 = vpop.f32.mrf.mxu0
        %v998 = vpop.f32.mrf.mxu0
        %999 = vdwg.mxu0
        %1000 = vmatprep.subr.bf16.mxu0 %v878
        %1001 = vmatpush1.bf16.msra.mxu0 %v877
        %1002 = vmatprep.subr.bf16.mxu0 %v876
        %1003 = vmatpush1.bf16.msra.mxu0 %v875
        %1004 = vmatprep.subr.bf16.mxu0 %v874
        %1005 = vmatpush1.bf16.msra.mxu0 %v873
        %1006 = vmatprep.subr.bf16.mxu0 %v872
        %1007 = vmatpush1.bf16.msra.mxu0 %v871
        %1008 = vmatprep.subr.bf16.mxu0 %v870
        %1009 = vmatpush1.bf16.msra.mxu0 %v869
        %1010 = vmatprep.subr.bf16.mxu0 %v868
        %1011 = vmatpush1.bf16.msra.mxu0 %v867
        %1012 = vmatprep.subr.bf16.mxu0 %v866
        %1013 = vmatpush1.bf16.msra.mxu0 %v865
        %1014 = vmatprep.subr.bf16.mxu0 %v864
        %1015 = vmatpush1.bf16.msra.mxu0 %v863
        %1016 = vmatprep.subr.bf16.mxu0 %v894
        %1017 = vmatpush2.bf16.msra.mxu0 %v893
        %1018 = vmatprep.subr.bf16.mxu0 %v892
        %1019 = vmatpush2.bf16.msra.mxu0 %v891
        %1020 = vmatprep.subr.bf16.mxu0 %v890
        %1021 = vmatpush2.bf16.msra.mxu0 %v889
        %1022 = vmatprep.subr.bf16.mxu0 %v888
        %1023 = vmatpush2.bf16.msra.mxu0 %v887
        %1024 = vmatprep.subr.bf16.mxu0 %v886
        %1025 = vmatpush2.bf16.msra.mxu0 %v885
        %1026 = vmatprep.subr.bf16.mxu0 %v884
        %1027 = vmatpush2.bf16.msra.mxu0 %v883
        %1028 = vmatprep.subr.bf16.mxu0 %v882
        %1029 = vmatpush2.bf16.msra.mxu0 %v881
        %1030 = vmatprep.subr.bf16.mxu0 %v880
        %1031 = vmatpush2.bf16.msra.mxu0 %v879
        %1032 = vmatprep.mubr.bf16.mxu0 %v634
        %1033 = vmatmul.mubr.bf16.gmra.mxu0 %v633
        %v1034 = vpop.f32.mrf.mxu0
        %v1035 = vadd.f32 %v994, %v1034
        %v1036 = vpop.f32.mrf.mxu0
        %v1037 = vadd.f32 %v996, %v1036
        %v1038 = vpop.f32.mrf.mxu0
        %v1039 = vpop.f32.mrf.mxu0
        %1040 = vdwg.mxu0
        %v1041 = vadd.f32 %v557, %v1035
        %v1042 = vadd.f32 %v558, %v1037
        %1043 = vst [vmem:[#allocation2] sm:$0xff] %v1041
        %1044 = vst [vmem:[#allocation2 + $0x8] sm:$0xff] %v1042
        %p1045 = scmp.eq.s32.totalorder %s21, 3
        // Predicated region
        $region75: #{resnet_forward.10} parent=65 // pred_check
          %p1046 = pneg %p1045
        $region76: #{resnet_forward.10} parent=65 // pred_check_branch
          %1048 = sbr.rel (%p1046) target = $region78
        $region77: #{resnet_forward.10} parent=65 // pred_region
          %v1049 = vld [vmem:[#allocation2] sm:$0xff]
          %v1050 = vld [vmem:[#allocation2 + $0x8] sm:$0xff]
          %v1051 = vld [vmem:[%s539] sm:$0x3]
          %v1053 = vlaneseq
          %v1054 = vshrl.u32 %v1053, 7
          %v1055 = vsub.s32 0, %v1054
          %v1056 = vrot.slane %v1051, %v1055
          %v1057 = vlaneseq
          %v1058 = vshrl.u32 %v1057, 7
          %v1059 = vsub.s32 1, %v1058
          %v1060 = vrot.slane %v1051, %v1059
          %v1063 = vadd.f32 %v1049, %v1056
          %v1064 = vadd.f32 %v1050, %v1060
          %1065 = vst [vmem:[%s549] sm:$0xff] %v1063
          %1066 = vst [vmem:[%s549 + $0x8] sm:$0xff] %v1064
        $region78: #{resnet_forward.10} parent=65 // pred_fallthru
          _
        %s1067 = smul.u32 2, %s20
        %p1068 = scmp.lt.s32.totalorder %s19, 0
        %s1069 = scalar_select %p1068, %s19, 0
        %p1070 = scmp.lt.s32.totalorder %s1067, 7
        %s1071 = scalar_select %p1070, %s1067, 7
        %s1072 = smul.addr %s1069, 8
        %s1073 = sadd.s32 %s1071, %s1072
        %s1074 = smul.addr %s1073, 8
        %s1075 = scalar_lea.vmem %s3, %s1074
        // Predicated region
        $region79: #{resnet_forward.10} parent=65 // pred_check
          %p1076 = pneg %p135
        $region80: #{resnet_forward.10} parent=65 // pred_check_branch
          %1078 = sbr.rel (%p1076) target = $region82
        $region81: #{resnet_forward.10} parent=65 // pred_region
          %s1079 = smul.u32 2, %s20
        $region82: #{resnet_forward.10} parent=65 // pred_fallthru
          _
      $region66: #{resnet_forward.10} parent=5 // pred_fallthru
        _
      %p1080 = scmp.le.s32.totalorder 2, %s9
      // Predicated region
      $region83: #{resnet_forward.10} parent=5 // pred_check
        %p1081 = pneg %p1080
      $region84: #{resnet_forward.10} parent=5 // pred_check_branch
        %1083 = sbr.rel (%p1081) target = $region86
      $region85: #{resnet_forward.10} parent=5 // pred_region
        %s1084 = ssub.s32 %s9, 2
        // Predicated region
        $region87: #{resnet_forward.10} parent=85 // pred_check
          %p1085 = pneg %p141
        $region88: #{resnet_forward.10} parent=85 // pred_check_branch
          %1087 = sbr.rel (%p1085) target = $region90
        $region89: #{resnet_forward.10} parent=85 // pred_region
          %s1088 = smul.u32 2, %s23
          %p1089 = scmp.lt.s32.totalorder %s22, 0
          %s1090 = scalar_select %p1089, %s22, 0
          %p1091 = scmp.lt.s32.totalorder %s1088, 7
          %s1092 = scalar_select %p1091, %s1088, 7
          %s1093 = smul.addr %s1090, 8
          %s1094 = sadd.s32 %s1092, %s1093
          %s1095 = smul.addr %s1094, 8
          %s1096 = scalar_lea.vmem %s3, %s1095
        $region90: #{resnet_forward.10} parent=85 // pred_fallthru
          _
      $region86: #{resnet_forward.10} parent=5 // pred_fallthru
        _
    $region6: #{resnet_forward.10} parent=1 // loop_footer
      %s13 = sadd.s32 1, %s9
    $region7: #{resnet_forward.10} parent=1 // loop_footer_branch
      %8 = sbr.rel target = $region3
    $region8: #{resnet_forward.10} parent=1 // loop_exit
      _

// kernel: resnet_forward.11
$region0: #{resnet_forward.11}
  #allocation0 [shape = 'u32[]', space=smem, size = 0x4, offset = 0x4, fixed_abs, tag = 'smem constant byte address 0x4 - core index']
  #allocation1 [shape = 'u32[144,128]{1,0:T(1,128)}', space=vmem, size = 0x12000, scoped, tag = 'internal scratch']
  #allocation2 [shape = 'f32[8,128]{1,0:T(8,128)}', space=vmem, size = 0x1000, scoped, tag = 'scratch operand']
  %s0 = inlined_call_operand.vmem [shape: bf16[8,1024], index: 0, kind: input, shape index: {}]
  %s1 = inlined_call_operand.vmem [shape: bf16[1024,128], index: 1, kind: input, shape index: {}]
  %s2 = inlined_call_operand.vmem [shape: f32[1,128], index: 2, kind: input, shape index: {}]
  %s3 = inlined_call_operand.vmem [shape: f32[8,128], index: 3, kind: output, shape index: {}]
  %s4 = sld [smem:[#allocation0]]
  $region30: #{resnet_forward.11} parent=0
    _
  %s6 = ssub.s32 1, %s4
  %s7 = scalar_select 0, %s6, %s4
  // Predicated region
  $region2: #{resnet_forward.11} parent=0 // pred_check
    _
  $region3: #{resnet_forward.11} parent=0 // pred_check_branch
    %9 = sbr.rel (0) target = $region5
  $region4: #{resnet_forward.11} parent=0 // pred_region
    _
  $region5: #{resnet_forward.11} parent=0 // pred_fallthru
    _
  // Predicated region
  $region6: #{resnet_forward.11} parent=0 // pred_check
    _
  $region7: #{resnet_forward.11} parent=0 // pred_check_branch
    %11 = sbr.rel (0) target = $region9
  $region8: #{resnet_forward.11} parent=0 // pred_region
    _
  $region9: #{resnet_forward.11} parent=0 // pred_fallthru
    _
  // Predicated region
  $region10: #{resnet_forward.11} parent=0 // pred_check
    _
  $region11: #{resnet_forward.11} parent=0 // pred_check_branch
    %13 = sbr.rel (0) target = $region13
  $region12: #{resnet_forward.11} parent=0 // pred_region
    _
  $region13: #{resnet_forward.11} parent=0 // pred_fallthru
    _
  %p15 = scmp.eq.s32.totalorder 0, 0
  // Predicated region
  $region14: #{resnet_forward.11} parent=0 // pred_check
    %p16 = pneg %p15
  $region15: #{resnet_forward.11} parent=0 // pred_check_branch
    %18 = sbr.rel (%p16) target = $region17
  $region16: #{resnet_forward.11} parent=0 // pred_region
    %19 = vst [vmem:[#allocation2] sm:$0xff] 0.0
  $region17: #{resnet_forward.11} parent=0 // pred_fallthru
    _
  %v20 = vld [vmem:[#allocation2] sm:$0xff]
  %v21 = vld [vmem:[%s0] sm:$0xff]
  %v22 = vld [vmem:[%s0 + $0x8] sm:$0xff]
  %v23 = vld [vmem:[%s0 + $0x10] sm:$0xff]
  %v24 = vld [vmem:[%s0 + $0x18] sm:$0xff]
  %v25 = vld [vmem:[%s1] sm:$0xf]
  %v26 = vld [vmem:[%s1 + $0x4] sm:$0xf]
  %v27 = vld [vmem:[%s1 + $0x8] sm:$0xf]
  %v28 = vld [vmem:[%s1 + $0xc] sm:$0xf]
  %v29 = vld [vmem:[%s1 + $0x10] sm:$0xf]
  %v30 = vld [vmem:[%s1 + $0x14] sm:$0xf]
  %v31 = vld [vmem:[%s1 + $0x18] sm:$0xf]
  %v32 = vld [vmem:[%s1 + $0x1c] sm:$0xf]
  %v33 = vld [vmem:[%s1 + $0x20] sm:$0xf]
  %v34 = vld [vmem:[%s1 + $0x24] sm:$0xf]
  %v35 = vld [vmem:[%s1 + $0x28] sm:$0xf]
  %v36 = vld [vmem:[%s1 + $0x2c] sm:$0xf]
  %v37 = vld [vmem:[%s1 + $0x30] sm:$0xf]
  %v38 = vld [vmem:[%s1 + $0x34] sm:$0xf]
  %v39 = vld [vmem:[%s1 + $0x38] sm:$0xf]
  %v40 = vld [vmem:[%s1 + $0x3c] sm:$0xf]
  %v41 = vld [vmem:[%s1 + $0x40] sm:$0xf]
  %v42 = vld [vmem:[%s1 + $0x44] sm:$0xf]
  %v43 = vld [vmem:[%s1 + $0x48] sm:$0xf]
  %v44 = vld [vmem:[%s1 + $0x4c] sm:$0xf]
  %v45 = vld [vmem:[%s1 + $0x50] sm:$0xf]
  %v46 = vld [vmem:[%s1 + $0x54] sm:$0xf]
  %v47 = vld [vmem:[%s1 + $0x58] sm:$0xf]
  %v48 = vld [vmem:[%s1 + $0x5c] sm:$0xf]
  %v49 = vld [vmem:[%s1 + $0x60] sm:$0xf]
  %v50 = vld [vmem:[%s1 + $0x64] sm:$0xf]
  %v51 = vld [vmem:[%s1 + $0x68] sm:$0xf]
  %v52 = vld [vmem:[%s1 + $0x6c] sm:$0xf]
  %v53 = vld [vmem:[%s1 + $0x70] sm:$0xf]
  %v54 = vld [vmem:[%s1 + $0x74] sm:$0xf]
  %v55 = vld [vmem:[%s1 + $0x78] sm:$0xf]
  %v56 = vld [vmem:[%s1 + $0x7c] sm:$0xf]
  %v57 = vld [vmem:[%s1 + $0x80] sm:$0xf]
  %v58 = vld [vmem:[%s1 + $0x84] sm:$0xf]
  %v59 = vld [vmem:[%s1 + $0x88] sm:$0xf]
  %v60 = vld [vmem:[%s1 + $0x8c] sm:$0xf]
  %v61 = vld [vmem:[%s1 + $0x90] sm:$0xf]
  %v62 = vld [vmem:[%s1 + $0x94] sm:$0xf]
  %v63 = vld [vmem:[%s1 + $0x98] sm:$0xf]
  %v64 = vld [vmem:[%s1 + $0x9c] sm:$0xf]
  %v65 = vld [vmem:[%s1 + $0xa0] sm:$0xf]
  %v66 = vld [vmem:[%s1 + $0xa4] sm:$0xf]
  %v67 = vld [vmem:[%s1 + $0xa8] sm:$0xf]
  %v68 = vld [vmem:[%s1 + $0xac] sm:$0xf]
  %v69 = vld [vmem:[%s1 + $0xb0] sm:$0xf]
  %v70 = vld [vmem:[%s1 + $0xb4] sm:$0xf]
  %v71 = vld [vmem:[%s1 + $0xb8] sm:$0xf]
  %v72 = vld [vmem:[%s1 + $0xbc] sm:$0xf]
  %v73 = vld [vmem:[%s1 + $0xc0] sm:$0xf]
  %v74 = vld [vmem:[%s1 + $0xc4] sm:$0xf]
  %v75 = vld [vmem:[%s1 + $0xc8] sm:$0xf]
  %v76 = vld [vmem:[%s1 + $0xcc] sm:$0xf]
  %v77 = vld [vmem:[%s1 + $0xd0] sm:$0xf]
  %v78 = vld [vmem:[%s1 + $0xd4] sm:$0xf]
  %v79 = vld [vmem:[%s1 + $0xd8] sm:$0xf]
  %v80 = vld [vmem:[%s1 + $0xdc] sm:$0xf]
  %v81 = vld [vmem:[%s1 + $0xe0] sm:$0xf]
  %v82 = vld [vmem:[%s1 + $0xe4] sm:$0xf]
  %v83 = vld [vmem:[%s1 + $0xe8] sm:$0xf]
  %v84 = vld [vmem:[%s1 + $0xec] sm:$0xf]
  %v85 = vld [vmem:[%s1 + $0xf0] sm:$0xf]
  %v86 = vld [vmem:[%s1 + $0xf4] sm:$0xf]
  %v87 = vld [vmem:[%s1 + $0xf8] sm:$0xf]
  %v88 = vld [vmem:[%s1 + $0xfc] sm:$0xf]
  %v89 = vld [vmem:[%s1 + $0x100] sm:$0xf]
  %v90 = vld [vmem:[%s1 + $0x104] sm:$0xf]
  %v91 = vld [vmem:[%s1 + $0x108] sm:$0xf]
  %v92 = vld [vmem:[%s1 + $0x10c] sm:$0xf]
  %v93 = vld [vmem:[%s1 + $0x110] sm:$0xf]
  %v94 = vld [vmem:[%s1 + $0x114] sm:$0xf]
  %v95 = vld [vmem:[%s1 + $0x118] sm:$0xf]
  %v96 = vld [vmem:[%s1 + $0x11c] sm:$0xf]
  %v97 = vld [vmem:[%s1 + $0x120] sm:$0xf]
  %v98 = vld [vmem:[%s1 + $0x124] sm:$0xf]
  %v99 = vld [vmem:[%s1 + $0x128] sm:$0xf]
  %v100 = vld [vmem:[%s1 + $0x12c] sm:$0xf]
  %v101 = vld [vmem:[%s1 + $0x130] sm:$0xf]
  %v102 = vld [vmem:[%s1 + $0x134] sm:$0xf]
  %v103 = vld [vmem:[%s1 + $0x138] sm:$0xf]
  %v104 = vld [vmem:[%s1 + $0x13c] sm:$0xf]
  %v105 = vld [vmem:[%s1 + $0x140] sm:$0xf]
  %v106 = vld [vmem:[%s1 + $0x144] sm:$0xf]
  %v107 = vld [vmem:[%s1 + $0x148] sm:$0xf]
  %v108 = vld [vmem:[%s1 + $0x14c] sm:$0xf]
  %v109 = vld [vmem:[%s1 + $0x150] sm:$0xf]
  %v110 = vld [vmem:[%s1 + $0x154] sm:$0xf]
  %v111 = vld [vmem:[%s1 + $0x158] sm:$0xf]
  %v112 = vld [vmem:[%s1 + $0x15c] sm:$0xf]
  %v113 = vld [vmem:[%s1 + $0x160] sm:$0xf]
  %v114 = vld [vmem:[%s1 + $0x164] sm:$0xf]
  %v115 = vld [vmem:[%s1 + $0x168] sm:$0xf]
  %v116 = vld [vmem:[%s1 + $0x16c] sm:$0xf]
  %v117 = vld [vmem:[%s1 + $0x170] sm:$0xf]
  %v118 = vld [vmem:[%s1 + $0x174] sm:$0xf]
  %v119 = vld [vmem:[%s1 + $0x178] sm:$0xf]
  %v120 = vld [vmem:[%s1 + $0x17c] sm:$0xf]
  %v121 = vld [vmem:[%s1 + $0x180] sm:$0xf]
  %v122 = vld [vmem:[%s1 + $0x184] sm:$0xf]
  %v123 = vld [vmem:[%s1 + $0x188] sm:$0xf]
  %v124 = vld [vmem:[%s1 + $0x18c] sm:$0xf]
  %v125 = vld [vmem:[%s1 + $0x190] sm:$0xf]
  %v126 = vld [vmem:[%s1 + $0x194] sm:$0xf]
  %v127 = vld [vmem:[%s1 + $0x198] sm:$0xf]
  %v128 = vld [vmem:[%s1 + $0x19c] sm:$0xf]
  %v129 = vld [vmem:[%s1 + $0x1a0] sm:$0xf]
  %v130 = vld [vmem:[%s1 + $0x1a4] sm:$0xf]
  %v131 = vld [vmem:[%s1 + $0x1a8] sm:$0xf]
  %v132 = vld [vmem:[%s1 + $0x1ac] sm:$0xf]
  %v133 = vld [vmem:[%s1 + $0x1b0] sm:$0xf]
  %v134 = vld [vmem:[%s1 + $0x1b4] sm:$0xf]
  %v135 = vld [vmem:[%s1 + $0x1b8] sm:$0xf]
  %v136 = vld [vmem:[%s1 + $0x1bc] sm:$0xf]
  %v137 = vld [vmem:[%s1 + $0x1c0] sm:$0xf]
  %v138 = vld [vmem:[%s1 + $0x1c4] sm:$0xf]
  %v139 = vld [vmem:[%s1 + $0x1c8] sm:$0xf]
  %v140 = vld [vmem:[%s1 + $0x1cc] sm:$0xf]
  %v141 = vld [vmem:[%s1 + $0x1d0] sm:$0xf]
  %v142 = vld [vmem:[%s1 + $0x1d4] sm:$0xf]
  %v143 = vld [vmem:[%s1 + $0x1d8] sm:$0xf]
  %v144 = vld [vmem:[%s1 + $0x1dc] sm:$0xf]
  %v145 = vld [vmem:[%s1 + $0x1e0] sm:$0xf]
  %v146 = vld [vmem:[%s1 + $0x1e4] sm:$0xf]
  %v147 = vld [vmem:[%s1 + $0x1e8] sm:$0xf]
  %v148 = vld [vmem:[%s1 + $0x1ec] sm:$0xf]
  %v149 = vld [vmem:[%s1 + $0x1f0] sm:$0xf]
  %v150 = vld [vmem:[%s1 + $0x1f4] sm:$0xf]
  %v151 = vld [vmem:[%s1 + $0x1f8] sm:$0xf]
  %v152 = vld [vmem:[%s1 + $0x1fc] sm:$0xf]
  %v157 = vunpack.c.l.b16 %v21
  %v158 = vunpack.c.h.b16 %v21
  %v159 = vunpack.c.l.b16 %v22
  %v160 = vunpack.c.h.b16 %v22
  %v161 = vunpack.c.l.b16 %v23
  %v162 = vunpack.c.h.b16 %v23
  %v163 = vunpack.c.l.b16 %v24
  %v164 = vunpack.c.h.b16 %v24
  %v165 = vpack.c.b16 %v157, %v157
  %v166 = vpack.c.b16 %v158, %v158
  %v167 = vpack.c.b16 %v159, %v159
  %v168 = vpack.c.b16 %v160, %v160
  %v169 = vpack.c.b16 %v161, %v161
  %v170 = vpack.c.b16 %v162, %v162
  %v171 = vpack.c.b16 %v163, %v163
  %v172 = vpack.c.b16 %v164, %v164
  %v309 = vunpack.c.l.b16 %v25
  %v310 = vunpack.c.l.b16 %v26
  %v311 = vunpack.c.l.b16 %v27
  %v312 = vunpack.c.l.b16 %v28
  %v313 = vunpack.c.l.b16 %v29
  %v314 = vunpack.c.l.b16 %v30
  %v315 = vunpack.c.l.b16 %v31
  %v316 = vunpack.c.l.b16 %v32
  %v317 = vunpack.c.l.b16 %v33
  %v318 = vunpack.c.l.b16 %v34
  %v319 = vunpack.c.l.b16 %v35
  %v320 = vunpack.c.l.b16 %v36
  %v321 = vunpack.c.l.b16 %v37
  %v322 = vunpack.c.l.b16 %v38
  %v323 = vunpack.c.l.b16 %v39
  %v324 = vunpack.c.l.b16 %v40
  %v325 = vunpack.c.l.b16 %v41
  %v326 = vunpack.c.l.b16 %v42
  %v327 = vunpack.c.l.b16 %v43
  %v328 = vunpack.c.l.b16 %v44
  %v329 = vunpack.c.l.b16 %v45
  %v330 = vunpack.c.l.b16 %v46
  %v331 = vunpack.c.l.b16 %v47
  %v332 = vunpack.c.l.b16 %v48
  %v333 = vunpack.c.l.b16 %v49
  %v334 = vunpack.c.l.b16 %v50
  %v335 = vunpack.c.l.b16 %v51
  %v336 = vunpack.c.l.b16 %v52
  %v337 = vunpack.c.l.b16 %v53
  %v338 = vunpack.c.l.b16 %v54
  %v339 = vunpack.c.l.b16 %v55
  %v340 = vunpack.c.l.b16 %v56
  %v341 = vunpack.c.l.b16 %v57
  %v342 = vunpack.c.l.b16 %v58
  %v343 = vunpack.c.l.b16 %v59
  %v344 = vunpack.c.l.b16 %v60
  %v345 = vunpack.c.l.b16 %v61
  %v346 = vunpack.c.l.b16 %v62
  %v347 = vunpack.c.l.b16 %v63
  %v348 = vunpack.c.l.b16 %v64
  %v349 = vunpack.c.l.b16 %v65
  %v350 = vunpack.c.l.b16 %v66
  %v351 = vunpack.c.l.b16 %v67
  %v352 = vunpack.c.l.b16 %v68
  %v353 = vunpack.c.l.b16 %v69
  %v354 = vunpack.c.l.b16 %v70
  %v355 = vunpack.c.l.b16 %v71
  %v356 = vunpack.c.l.b16 %v72
  %v357 = vunpack.c.l.b16 %v73
  %v358 = vunpack.c.l.b16 %v74
  %v359 = vunpack.c.l.b16 %v75
  %v360 = vunpack.c.l.b16 %v76
  %v361 = vunpack.c.l.b16 %v77
  %v362 = vunpack.c.l.b16 %v78
  %v363 = vunpack.c.l.b16 %v79
  %v364 = vunpack.c.l.b16 %v80
  %v365 = vunpack.c.l.b16 %v81
  %v366 = vunpack.c.l.b16 %v82
  %v367 = vunpack.c.l.b16 %v83
  %v368 = vunpack.c.l.b16 %v84
  %v369 = vunpack.c.l.b16 %v85
  %v370 = vunpack.c.l.b16 %v86
  %v371 = vunpack.c.l.b16 %v87
  %v372 = vunpack.c.l.b16 %v88
  %v373 = vunpack.c.l.b16 %v89
  %v374 = vunpack.c.l.b16 %v90
  %v375 = vunpack.c.l.b16 %v91
  %v376 = vunpack.c.l.b16 %v92
  %v377 = vunpack.c.l.b16 %v93
  %v378 = vunpack.c.l.b16 %v94
  %v379 = vunpack.c.l.b16 %v95
  %v380 = vunpack.c.l.b16 %v96
  %v381 = vunpack.c.l.b16 %v97
  %v382 = vunpack.c.l.b16 %v98
  %v383 = vunpack.c.l.b16 %v99
  %v384 = vunpack.c.l.b16 %v100
  %v385 = vunpack.c.l.b16 %v101
  %v386 = vunpack.c.l.b16 %v102
  %v387 = vunpack.c.l.b16 %v103
  %v388 = vunpack.c.l.b16 %v104
  %v389 = vunpack.c.l.b16 %v105
  %v390 = vunpack.c.l.b16 %v106
  %v391 = vunpack.c.l.b16 %v107
  %v392 = vunpack.c.l.b16 %v108
  %v393 = vunpack.c.l.b16 %v109
  %v394 = vunpack.c.l.b16 %v110
  %v395 = vunpack.c.l.b16 %v111
  %v396 = vunpack.c.l.b16 %v112
  %v397 = vunpack.c.l.b16 %v113
  %v398 = vunpack.c.l.b16 %v114
  %v399 = vunpack.c.l.b16 %v115
  %v400 = vunpack.c.l.b16 %v116
  %v401 = vunpack.c.l.b16 %v117
  %v402 = vunpack.c.l.b16 %v118
  %v403 = vunpack.c.l.b16 %v119
  %v404 = vunpack.c.l.b16 %v120
  %v405 = vunpack.c.l.b16 %v121
  %v406 = vunpack.c.l.b16 %v122
  %v407 = vunpack.c.l.b16 %v123
  %v408 = vunpack.c.l.b16 %v124
  %v409 = vunpack.c.l.b16 %v125
  %v410 = vunpack.c.l.b16 %v126
  %v411 = vunpack.c.l.b16 %v127
  %v412 = vunpack.c.l.b16 %v128
  %v413 = vunpack.c.l.b16 %v129
  %v414 = vunpack.c.l.b16 %v130
  %v415 = vunpack.c.l.b16 %v131
  %v416 = vunpack.c.l.b16 %v132
  %v417 = vunpack.c.l.b16 %v133
  %v418 = vunpack.c.l.b16 %v134
  %v419 = vunpack.c.l.b16 %v135
  %v420 = vunpack.c.l.b16 %v136
  %v421 = vunpack.c.l.b16 %v137
  %v422 = vunpack.c.l.b16 %v138
  %v423 = vunpack.c.l.b16 %v139
  %v424 = vunpack.c.l.b16 %v140
  %v425 = vunpack.c.l.b16 %v141
  %v426 = vunpack.c.l.b16 %v142
  %v427 = vunpack.c.l.b16 %v143
  %v428 = vunpack.c.l.b16 %v144
  %v429 = vunpack.c.l.b16 %v145
  %v430 = vunpack.c.l.b16 %v146
  %v431 = vunpack.c.l.b16 %v147
  %v432 = vunpack.c.l.b16 %v148
  %v433 = vunpack.c.l.b16 %v149
  %v434 = vunpack.c.l.b16 %v150
  %v435 = vunpack.c.l.b16 %v151
  %v436 = vunpack.c.l.b16 %v152
  %v437 = vpack.c.b16 %v310, %v309
  %v438 = vpack.c.b16 %v312, %v311
  %v439 = vpack.c.b16 %v314, %v313
  %v440 = vpack.c.b16 %v316, %v315
  %v441 = vpack.c.b16 %v318, %v317
  %v442 = vpack.c.b16 %v320, %v319
  %v443 = vpack.c.b16 %v322, %v321
  %v444 = vpack.c.b16 %v324, %v323
  %v445 = vpack.c.b16 %v326, %v325
  %v446 = vpack.c.b16 %v328, %v327
  %v447 = vpack.c.b16 %v330, %v329
  %v448 = vpack.c.b16 %v332, %v331
  %v449 = vpack.c.b16 %v334, %v333
  %v450 = vpack.c.b16 %v336, %v335
  %v451 = vpack.c.b16 %v338, %v337
  %v452 = vpack.c.b16 %v340, %v339
  %v453 = vpack.c.b16 %v342, %v341
  %v454 = vpack.c.b16 %v344, %v343
  %v455 = vpack.c.b16 %v346, %v345
  %v456 = vpack.c.b16 %v348, %v347
  %v457 = vpack.c.b16 %v350, %v349
  %v458 = vpack.c.b16 %v352, %v351
  %v459 = vpack.c.b16 %v354, %v353
  %v460 = vpack.c.b16 %v356, %v355
  %v461 = vpack.c.b16 %v358, %v357
  %v462 = vpack.c.b16 %v360, %v359
  %v463 = vpack.c.b16 %v362, %v361
  %v464 = vpack.c.b16 %v364, %v363
  %v465 = vpack.c.b16 %v366, %v365
  %v466 = vpack.c.b16 %v368, %v367
  %v467 = vpack.c.b16 %v370, %v369
  %v468 = vpack.c.b16 %v372, %v371
  %v469 = vpack.c.b16 %v374, %v373
  %v470 = vpack.c.b16 %v376, %v375
  %v471 = vpack.c.b16 %v378, %v377
  %v472 = vpack.c.b16 %v380, %v379
  %v473 = vpack.c.b16 %v382, %v381
  %v474 = vpack.c.b16 %v384, %v383
  %v475 = vpack.c.b16 %v386, %v385
  %v476 = vpack.c.b16 %v388, %v387
  %v477 = vpack.c.b16 %v390, %v389
  %v478 = vpack.c.b16 %v392, %v391
  %v479 = vpack.c.b16 %v394, %v393
  %v480 = vpack.c.b16 %v396, %v395
  %v481 = vpack.c.b16 %v398, %v397
  %v482 = vpack.c.b16 %v400, %v399
  %v483 = vpack.c.b16 %v402, %v401
  %v484 = vpack.c.b16 %v404, %v403
  %v485 = vpack.c.b16 %v406, %v405
  %v486 = vpack.c.b16 %v408, %v407
  %v487 = vpack.c.b16 %v410, %v409
  %v488 = vpack.c.b16 %v412, %v411
  %v489 = vpack.c.b16 %v414, %v413
  %v490 = vpack.c.b16 %v416, %v415
  %v491 = vpack.c.b16 %v418, %v417
  %v492 = vpack.c.b16 %v420, %v419
  %v493 = vpack.c.b16 %v422, %v421
  %v494 = vpack.c.b16 %v424, %v423
  %v495 = vpack.c.b16 %v426, %v425
  %v496 = vpack.c.b16 %v428, %v427
  %v497 = vpack.c.b16 %v430, %v429
  %v498 = vpack.c.b16 %v432, %v431
  %v499 = vpack.c.b16 %v434, %v433
  %v500 = vpack.c.b16 %v436, %v435
  %565 = vmatprep.subr.bf16.mxu0 0
  %566 = vmatpush1.bf16.msra.mxu0 %v444
  %567 = vmatprep.subr.bf16.mxu0 0
  %568 = vmatpush1.bf16.msra.mxu0 %v443
  %569 = vmatprep.subr.bf16.mxu0 0
  %570 = vmatpush1.bf16.msra.mxu0 %v442
  %571 = vmatprep.subr.bf16.mxu0 0
  %572 = vmatpush1.bf16.msra.mxu0 %v441
  %573 = vmatprep.subr.bf16.mxu0 0
  %574 = vmatpush1.bf16.msra.mxu0 %v440
  %575 = vmatprep.subr.bf16.mxu0 0
  %576 = vmatpush1.bf16.msra.mxu0 %v439
  %577 = vmatprep.subr.bf16.mxu0 0
  %578 = vmatpush1.bf16.msra.mxu0 %v438
  %579 = vmatprep.subr.bf16.mxu0 0
  %580 = vmatpush1.bf16.msra.mxu0 %v437
  %581 = vmatprep.subr.bf16.mxu0 0
  %582 = vmatpush2.bf16.msra.mxu0 %v452
  %583 = vmatprep.subr.bf16.mxu0 0
  %584 = vmatpush2.bf16.msra.mxu0 %v451
  %585 = vmatprep.subr.bf16.mxu0 0
  %586 = vmatpush2.bf16.msra.mxu0 %v450
  %587 = vmatprep.subr.bf16.mxu0 0
  %588 = vmatpush2.bf16.msra.mxu0 %v449
  %589 = vmatprep.subr.bf16.mxu0 0
  %590 = vmatpush2.bf16.msra.mxu0 %v448
  %591 = vmatprep.subr.bf16.mxu0 0
  %592 = vmatpush2.bf16.msra.mxu0 %v447
  %593 = vmatprep.subr.bf16.mxu0 0
  %594 = vmatpush2.bf16.msra.mxu0 %v446
  %595 = vmatprep.subr.bf16.mxu0 0
  %596 = vmatpush2.bf16.msra.mxu0 %v445
  %597 = vmatprep.mubr.bf16.mxu0 %v166
  %598 = vmatmul.mubr.bf16.gmra.mxu0 %v165
  %v599 = vpop.f32.mrf.mxu0
  %v600 = vadd.f32 0.0, %v599
  %v601 = vpop.f32.mrf.mxu0
  %v602 = vpop.f32.mrf.mxu0
  %v603 = vpop.f32.mrf.mxu0
  %604 = vdwg.mxu0
  %605 = vmatprep.subr.bf16.mxu0 0
  %606 = vmatpush1.bf16.msra.mxu0 %v460
  %607 = vmatprep.subr.bf16.mxu0 0
  %608 = vmatpush1.bf16.msra.mxu0 %v459
  %609 = vmatprep.subr.bf16.mxu0 0
  %610 = vmatpush1.bf16.msra.mxu0 %v458
  %611 = vmatprep.subr.bf16.mxu0 0
  %612 = vmatpush1.bf16.msra.mxu0 %v457
  %613 = vmatprep.subr.bf16.mxu0 0
  %614 = vmatpush1.bf16.msra.mxu0 %v456
  %615 = vmatprep.subr.bf16.mxu0 0
  %616 = vmatpush1.bf16.msra.mxu0 %v455
  %617 = vmatprep.subr.bf16.mxu0 0
  %618 = vmatpush1.bf16.msra.mxu0 %v454
  %619 = vmatprep.subr.bf16.mxu0 0
  %620 = vmatpush1.bf16.msra.mxu0 %v453
  %621 = vmatprep.subr.bf16.mxu0 0
  %622 = vmatpush2.bf16.msra.mxu0 %v468
  %623 = vmatprep.subr.bf16.mxu0 0
  %624 = vmatpush2.bf16.msra.mxu0 %v467
  %625 = vmatprep.subr.bf16.mxu0 0
  %626 = vmatpush2.bf16.msra.mxu0 %v466
  %627 = vmatprep.subr.bf16.mxu0 0
  %628 = vmatpush2.bf16.msra.mxu0 %v465
  %629 = vmatprep.subr.bf16.mxu0 0
  %630 = vmatpush2.bf16.msra.mxu0 %v464
  %631 = vmatprep.subr.bf16.mxu0 0
  %632 = vmatpush2.bf16.msra.mxu0 %v463
  %633 = vmatprep.subr.bf16.mxu0 0
  %634 = vmatpush2.bf16.msra.mxu0 %v462
  %635 = vmatprep.subr.bf16.mxu0 0
  %636 = vmatpush2.bf16.msra.mxu0 %v461
  %637 = vmatprep.mubr.bf16.mxu0 %v168
  %638 = vmatmul.mubr.bf16.gmra.mxu0 %v167
  %v639 = vpop.f32.mrf.mxu0
  %v640 = vadd.f32 %v600, %v639
  %v641 = vpop.f32.mrf.mxu0
  %v642 = vpop.f32.mrf.mxu0
  %v643 = vpop.f32.mrf.mxu0
  %644 = vdwg.mxu0
  %645 = vmatprep.subr.bf16.mxu0 0
  %646 = vmatpush1.bf16.msra.mxu0 %v476
  %647 = vmatprep.subr.bf16.mxu0 0
  %648 = vmatpush1.bf16.msra.mxu0 %v475
  %649 = vmatprep.subr.bf16.mxu0 0
  %650 = vmatpush1.bf16.msra.mxu0 %v474
  %651 = vmatprep.subr.bf16.mxu0 0
  %652 = vmatpush1.bf16.msra.mxu0 %v473
  %653 = vmatprep.subr.bf16.mxu0 0
  %654 = vmatpush1.bf16.msra.mxu0 %v472
  %655 = vmatprep.subr.bf16.mxu0 0
  %656 = vmatpush1.bf16.msra.mxu0 %v471
  %657 = vmatprep.subr.bf16.mxu0 0
  %658 = vmatpush1.bf16.msra.mxu0 %v470
  %659 = vmatprep.subr.bf16.mxu0 0
  %660 = vmatpush1.bf16.msra.mxu0 %v469
  %661 = vmatprep.subr.bf16.mxu0 0
  %662 = vmatpush2.bf16.msra.mxu0 %v484
  %663 = vmatprep.subr.bf16.mxu0 0
  %664 = vmatpush2.bf16.msra.mxu0 %v483
  %665 = vmatprep.subr.bf16.mxu0 0
  %666 = vmatpush2.bf16.msra.mxu0 %v482
  %667 = vmatprep.subr.bf16.mxu0 0
  %668 = vmatpush2.bf16.msra.mxu0 %v481
  %669 = vmatprep.subr.bf16.mxu0 0
  %670 = vmatpush2.bf16.msra.mxu0 %v480
  %671 = vmatprep.subr.bf16.mxu0 0
  %672 = vmatpush2.bf16.msra.mxu0 %v479
  %673 = vmatprep.subr.bf16.mxu0 0
  %674 = vmatpush2.bf16.msra.mxu0 %v478
  %675 = vmatprep.subr.bf16.mxu0 0
  %676 = vmatpush2.bf16.msra.mxu0 %v477
  %677 = vmatprep.mubr.bf16.mxu0 %v170
  %678 = vmatmul.mubr.bf16.gmra.mxu0 %v169
  %v679 = vpop.f32.mrf.mxu0
  %v680 = vadd.f32 %v640, %v679
  %v681 = vpop.f32.mrf.mxu0
  %v682 = vpop.f32.mrf.mxu0
  %v683 = vpop.f32.mrf.mxu0
  %684 = vdwg.mxu0
  %685 = vmatprep.subr.bf16.mxu0 0
  %686 = vmatpush1.bf16.msra.mxu0 %v492
  %687 = vmatprep.subr.bf16.mxu0 0
  %688 = vmatpush1.bf16.msra.mxu0 %v491
  %689 = vmatprep.subr.bf16.mxu0 0
  %690 = vmatpush1.bf16.msra.mxu0 %v490
  %691 = vmatprep.subr.bf16.mxu0 0
  %692 = vmatpush1.bf16.msra.mxu0 %v489
  %693 = vmatprep.subr.bf16.mxu0 0
  %694 = vmatpush1.bf16.msra.mxu0 %v488
  %695 = vmatprep.subr.bf16.mxu0 0
  %696 = vmatpush1.bf16.msra.mxu0 %v487
  %697 = vmatprep.subr.bf16.mxu0 0
  %698 = vmatpush1.bf16.msra.mxu0 %v486
  %699 = vmatprep.subr.bf16.mxu0 0
  %700 = vmatpush1.bf16.msra.mxu0 %v485
  %701 = vmatprep.subr.bf16.mxu0 0
  %702 = vmatpush2.bf16.msra.mxu0 %v500
  %703 = vmatprep.subr.bf16.mxu0 0
  %704 = vmatpush2.bf16.msra.mxu0 %v499
  %705 = vmatprep.subr.bf16.mxu0 0
  %706 = vmatpush2.bf16.msra.mxu0 %v498
  %707 = vmatprep.subr.bf16.mxu0 0
  %708 = vmatpush2.bf16.msra.mxu0 %v497
  %709 = vmatprep.subr.bf16.mxu0 0
  %710 = vmatpush2.bf16.msra.mxu0 %v496
  %711 = vmatprep.subr.bf16.mxu0 0
  %712 = vmatpush2.bf16.msra.mxu0 %v495
  %713 = vmatprep.subr.bf16.mxu0 0
  %714 = vmatpush2.bf16.msra.mxu0 %v494
  %715 = vmatprep.subr.bf16.mxu0 0
  %716 = vmatpush2.bf16.msra.mxu0 %v493
  %717 = vmatprep.mubr.bf16.mxu0 %v172
  %718 = vmatmul.mubr.bf16.gmra.mxu0 %v171
  %v719 = vpop.f32.mrf.mxu0
  %v720 = vadd.f32 %v680, %v719
  %v721 = vpop.f32.mrf.mxu0
  %v722 = vpop.f32.mrf.mxu0
  %v723 = vpop.f32.mrf.mxu0
  %724 = vdwg.mxu0
  %v725 = vadd.f32 %v20, %v720
  %726 = vst [vmem:[#allocation2] sm:$0xff] %v725
  // Predicated region
  $region18: #{resnet_forward.11} parent=0 // pred_check
    %p727 = pneg %p15
  $region19: #{resnet_forward.11} parent=0 // pred_check_branch
    %729 = sbr.rel (%p727) target = $region21
  $region20: #{resnet_forward.11} parent=0 // pred_region
    %v730 = vld [vmem:[#allocation2] sm:$0xff]
    %v731 = vld [vmem:[%s2] sm:$0x1]
    %v733 = vlaneseq
    %v734 = vshrl.u32 %v733, 7
    %v735 = vsub.s32 0, %v734
    %v736 = vrot.slane %v731, %v735
    %v738 = vadd.f32 %v730, %v736
    %739 = vst [vmem:[%s3] sm:$0xff] %v738
  $region21: #{resnet_forward.11} parent=0 // pred_fallthru
    _
  // Predicated region
  $region22: #{resnet_forward.11} parent=0 // pred_check
    _
  $region23: #{resnet_forward.11} parent=0 // pred_check_branch
    %741 = sbr.rel (0) target = $region25
  $region24: #{resnet_forward.11} parent=0 // pred_region
    _
  $region25: #{resnet_forward.11} parent=0 // pred_fallthru
    _
  // Predicated region
  $region26: #{resnet_forward.11} parent=0 // pred_check
    _
  $region27: #{resnet_forward.11} parent=0 // pred_check_branch
    %743 = sbr.rel (0) target = $region29
  $region28: #{resnet_forward.11} parent=0 // pred_region
    _
  $region29: #{resnet_forward.11} parent=0 // pred_fallthru
    _

</llo_original>
